<compile_context>
chip_gen: v7x
topology: tpu7x:2x2x1
jax: 0.10.0
libtpu: 0.0.40
codegen_flags: <defaults>
</compile_context>

<pallas_src>
import functools

import numpy as np
import jax
import jax.numpy as jnp
from jax.experimental import pallas as pl
from jax.experimental.pallas import tpu as pltpu

# ----------------------------- config ---------------------------------------
K_BANK = 4                  # bank kernels 1..4  -> 4 taps, 4*32 = 128 lanes
IN_CHANNELS = 32
CHANNELS = 32               # == in_channels == proj_channels[-1] (no pre_highway)
PROJ_CHANNELS = (32, 32)
NUM_HIGHWAYS = 2
GRU_H = CHANNELS // 2
BN_EPS = 1e-5
LANES = 128

BATCH = 2
SEQ = 8


# ----------------------------- fused CBHG kernel ----------------------------
def _cbhg_kernel(cols_ref, wbig_ref, vecs_ref, out_ref, *, B, T, C, D, H, NH):
    f32 = jnp.float32
    R = B * T            # valid (time, batch) rows, time-major: r = t*B + b
    RB = B * (T + 1)     # bank rows incl. extra t == T row (even kernels)

    # packed weight row offsets (must mirror pack_params)
    o_p1 = 4 * C
    o_p2 = o_p1 + K_BANK * D
    o_hw = o_p2 + D
    o_wih = o_hw + NH * D
    o_whh = o_wih + D

    vecs = vecs_ref[...]
    bkg, bkb = vecs[0:1, :], vecs[1:2, :]
    p1g, p1b = vecs[2:3, 0:D], vecs[2:3, D:2 * D]
    p2g, p2b = vecs[2:3, 2 * D:3 * D], vecs[2:3, 3 * D:4 * D]
    bih, bhh = vecs[4:5, :], vecs[5:6, :]
    bninv, oddc = vecs[6:7, :], vecs[7:8, :]

    rows_rb = jax.lax.broadcasted_iota(jnp.int32, (RB, 1), 0)
    rows_r = jax.lax.broadcasted_iota(jnp.int32, (R, 1), 0)
    extra_row = (rows_rb >= R).astype(f32)     # the t == T rows
    is_t0 = rows_r < B                         # t == 0 rows
    is_tlast = rows_r >= R - B                 # t == T-1 rows

    def shift_prev(v):     # v[t-1] per row, zeros at t == 0   (XLU roll + mask)
        return jnp.where(is_t0, 0.0, pltpu.roll(v, B, axis=0))

    def shift_next(v):     # v[t+1] per row, zeros at t == T-1
        return jnp.where(is_tlast, 0.0, pltpu.roll(v, R - B, axis=0))

    def bn_train(v, g, b):  # training-mode BN over all rows (two-pass, biased var)
        m = jnp.mean(v, axis=0, keepdims=True)
        d = v - m
        var = jnp.mean(d * d, axis=0, keepdims=True)
        return g * d * jax.lax.rsqrt(var + BN_EPS) + b

    # --- conv bank: ONE (RB,128)@(128,128) MXU dot + ReLU + masked per-bank BN ---
    cols = cols_ref[...]
    y = jnp.maximum(jnp.dot(cols, wbig_ref[0:4 * C, :],
                            preferred_element_type=f32), 0.0)
    # odd kernels normalize over T positions, even kernels over T+1 (PyTorch
    # normalizes BEFORE the [:, :, :seq_len] slice); mask the stats accordingly.
    smask = 1.0 - extra_row * oddc
    mean = jnp.sum(y * smask, axis=0, keepdims=True) * bninv
    d = (y - mean) * smask
    var = jnp.sum(d * d, axis=0, keepdims=True) * bninv
    cb_full = bkg * (y - mean) * jax.lax.rsqrt(var + BN_EPS) + bkb
    cb = cb_full[0:R, :]                                     # [:seq_len]

    # --- MaxPool1d(2, 1, 1)[:T] : max(x[t-1], x[t]) ---------------------------
    cb_prev = pltpu.roll(cb, B, axis=0)
    mp = jnp.maximum(cb, jnp.where(is_t0, cb, cb_prev))

    # --- conv projection 1: k=3, 4D -> D, ReLU, BN (one wide-N dot + rolls) ----
    y1 = jnp.dot(mp, wbig_ref[o_p1:o_p1 + K_BANK * D, :], preferred_element_type=f32)
    p1 = shift_prev(y1)[:, 0:D] + y1[:, D:2 * D] + shift_next(y1)[:, 2 * D:3 * D]
    p1 = bn_train(jnp.maximum(p1, 0.0), p1g, p1b)

    # --- conv projection 2: k=3, D -> D, no ReLU, BN; residual add -------------
    y2 = jnp.dot(p1, wbig_ref[o_p2:o_p2 + D, :], preferred_element_type=f32)
    p2 = shift_prev(y2)[:, 0:D] + y2[:, D:2 * D] + shift_next(y2)[:, 2 * D:3 * D]
    xres = cols[0:R, 2 * C:3 * C]          # tap-0 block of the im2col == x[t]
    hwy = bn_train(p2, p2g, p2b) + xres

    # --- highway stack: one fused [W1|W2] dot per layer ------------------------
    for i in range(NH):
        yh = jnp.dot(hwy, wbig_ref[o_hw + i * D:o_hw + (i + 1) * D, :],
                     preferred_element_type=f32)
        x1 = yh[:, 0:D] + vecs[3:4, i * 2 * D:i * 2 * D + D]
        g = jax.nn.sigmoid(yh[:, D:2 * D] + vecs[3:4, i * 2 * D + D:(i + 1) * 2 * D])
        hwy = g * jnp.maximum(x1, 0.0) + (1.0 - g) * hwy

    # --- GRU input projection: both directions / all gates, one dot ------------
    gx = jnp.dot(hwy, wbig_ref[o_wih:o_wih + D, :], preferred_element_type=f32) + bih
    whh = wbig_ref[o_whh:o_whh + 2 * H, :]        # block-diag (2H, 6H), lane-padded

    def cell(gx_t, gh_t, hp):   # PyTorch GRU gate algebra, gates packed [r|z|n]
        r = jax.nn.sigmoid(gx_t[:, 0:H] + gh_t[:, 0:H])
        z = jax.nn.sigmoid(gx_t[:, H:2 * H] + gh_t[:, H:2 * H])
        n = jnp.tanh(gx_t[:, 2 * H:3 * H] + r * gh_t[:, 2 * H:3 * H])
        return (1.0 - z) * n + z * hp

    # --- bidirectional recurrence: ONE (B,2H)@(2H,6H) dot per timestep ---------
    h_cat = jnp.zeros((B, 2 * H), f32)
    hf_steps, hb_steps = [], []
    for s in range(T):
        gh = jnp.dot(h_cat, whh, preferred_element_type=f32) + bhh
        hf = cell(gx[s * B:(s + 1) * B, 0:3 * H], gh[:, 0:3 * H], h_cat[:, 0:H])
        hb = cell(gx[(T - 1 - s) * B:(T - s) * B, 3 * H:6 * H],
                  gh[:, 3 * H:6 * H], h_cat[:, H:2 * H])
        h_cat = jnp.concatenate([hf, hb], axis=1)
        hf_steps.append(hf)
        hb_steps.append(hb)

    # --- single lane-dense store: (B, T*2H) = (2, 256) --------------------------
    pieces = []
    for t in range(T):
        pieces.append(hf_steps[t])              # forward state at time t
        pieces.append(hb_steps[T - 1 - t])      # backward state at time t
    out_ref[...] = jnp.concatenate(pieces, axis=1)


# ----------------------------- one-time parameter packing --------------------
def pack_params(params, batch, seq):
    """Pack all CBHG parameters into wbig (rows,128) and vecs (8,128)."""
    C, D, H, K, NH = IN_CHANNELS, CHANNELS, GRU_H, K_BANK, NUM_HIGHWAYS
    assert K <= 4 and NH * 2 * D <= LANES and 6 * H <= LANES
    p = {k: np.asarray(v, np.float32) for k, v in params.items()}

    def pad_lanes(w):
        w = np.asarray(w, np.float32).reshape(-1, w.shape[-1]) if w.ndim == 2 else w
        return np.pad(w, ((0, 0), (0, LANES - w.shape[1])))

    # conv bank: rows grouped by time tap (-2,-1,0,+1), cols grouped by bank k
    wbank = np.zeros((4 * C, K * D), np.float32)
    for k in range(1, K + 1):
        w = p[f"bank{k}_w"]                       # (out, in, k)
        for j in range(k):
            ti = (j - k // 2) + 2                 # tap index for offset in {-2..+1}
            wbank[ti * C:(ti + 1) * C, (k - 1) * D:k * D] = w[:, :, j].T

    def wide3(w):                                 # (out, in, 3) -> (in, 3*out)
        return np.concatenate([w[:, :, j].T for j in range(3)], axis=1)

    wp1 = wide3(p["proj1_w"])                     # (4D, 3D)
    wp2 = wide3(p["proj2_w"])                     # (D, 3D)
    hw = [np.concatenate([p[f"hw{i}_w1"], p[f"hw{i}_w2"]], axis=1) for i in range(NH)]
    wih = np.concatenate([p["gru_fwd_wih"], p["gru_bwd_wih"]], axis=1)   # (D, 6H)
    whh = np.zeros((2 * H, 6 * H), np.float32)    # block-diag recurrent weight
    whh[0:H, 0:3 * H] = p["gru_fwd_whh"]
    whh[H:2 * H, 3 * H:6 * H] = p["gru_bwd_whh"]

    wbig = np.concatenate(
        [pad_lanes(m) for m in [wbank, wp1, wp2] + hw + [wih, whh]], axis=0)

    # small per-channel vectors packed into (8, 128)
    bkg = np.concatenate([p[f"bank{k}_g"] for k in range(1, K + 1)], axis=1)
    bkb = np.concatenate([p[f"bank{k}_b"] for k in range(1, K + 1)], axis=1)
    row2 = np.concatenate([p["proj1_g"], p["proj1_b"], p["proj2_g"], p["proj2_b"]], axis=1)
    row3 = np.concatenate(
        sum([[p[f"hw{i}_b1"], p[f"hw{i}_b2"]] for i in range(NH)], []), axis=1)
    bih = np.concatenate([p["gru_fwd_bih"], p["gru_bwd_bih"]], axis=1)
    bhh = np.concatenate([p["gru_fwd_bhh"], p["gru_bwd_bhh"]], axis=1)
    bninv = np.zeros((1, K * D), np.float32)      # 1 / (#rows in each bank's stats)
    oddc = np.zeros((1, K * D), np.float32)       # 1.0 where bank kernel is odd
    for k in range(1, K + 1):
        t_out = seq + 1 if k % 2 == 0 else seq
        bninv[0, (k - 1) * D:k * D] = 1.0 / float(batch * t_out)
        oddc[0, (k - 1) * D:k * D] = 0.0 if k % 2 == 0 else 1.0
    vecs = np.concatenate(
        [pad_lanes(v) for v in [bkg, bkb, row2, row3, bih, bhh, bninv, oddc]], axis=0)
    return jnp.asarray(wbig), jnp.asarray(vecs)


# ----------------------------- forward wrapper --------------------------------
def cbhg_forward(wbig, vecs, x):
    """x: (B, in_channels, T) -> (B, T, channels), like CBHG.forward."""
    B, C, T = x.shape
    D, H = CHANNELS, GRU_H
    RB = B * (T + 1)

    # im2col slab for the conv bank, TIME-MAJOR rows r = t*B + b, taps (-2,-1,0,+1)
    xt = jnp.transpose(x, (0, 2, 1))                              # (B, T, C)
    xp = jnp.pad(xt, ((0, 0), (2, 2), (0, 0)))                    # (B, T+4, C)
    cols = jnp.concatenate(
        [xp[:, 2 + o: 2 + o + T + 1, :] for o in (-2, -1, 0, 1)], axis=-1)
    cols = jnp.transpose(cols, (1, 0, 2)).reshape(RB, 4 * C)      # (B*(T+1), 128)

    kernel = functools.partial(_cbhg_kernel, B=B, T=T, C=C, D=D, H=H, NH=NUM_HIGHWAYS)
    out = pl.pallas_call(
        kernel,
        out_shape=jax.ShapeDtypeStruct((B, T * 2 * H), jnp.float32),
        grid=(1,),
        in_specs=[
            pl.BlockSpec((RB, 4 * C), lambda i: (0, 0)),
            pl.BlockSpec(wbig.shape, lambda i: (0, 0)),
            pl.BlockSpec(vecs.shape, lambda i: (0, 0)),
        ],
        out_specs=pl.BlockSpec((B, T * 2 * H), lambda i: (0, 0)),
        compiler_params=pltpu.CompilerParams(dimension_semantics=("arbitrary",)),
    )(cols, wbig, vecs)
    return out.reshape(B, T, 2 * H)


# ----------------------------- parameters ------------------------------------
def init_params(key):
    D, H = CHANNELS, GRU_H
    keys = iter(jax.random.split(key, 64))

    def nrm(shape, scale=0.1):
        return (scale * jax.random.normal(next(keys), shape)).astype(jnp.float32)

    p = {}
    # conv bank (BatchNormConv: conv has no bias; BN gamma=1, beta=0)
    for k in range(1, K_BANK + 1):
        p[f"bank{k}_w"] = nrm((D, IN_CHANNELS, k))
        p[f"bank{k}_g"] = jnp.ones((1, D), jnp.float32)
        p[f"bank{k}_b"] = jnp.zeros((1, D), jnp.float32)
    # projections
    p["proj1_w"] = nrm((PROJ_CHANNELS[0], K_BANK * D, 3))
    p["proj1_g"] = jnp.ones((1, PROJ_CHANNELS[0]), jnp.float32)
    p["proj1_b"] = jnp.zeros((1, PROJ_CHANNELS[0]), jnp.float32)
    p["proj2_w"] = nrm((PROJ_CHANNELS[1], PROJ_CHANNELS[0], 3))
    p["proj2_g"] = jnp.ones((1, PROJ_CHANNELS[1]), jnp.float32)
    p["proj2_b"] = jnp.zeros((1, PROJ_CHANNELS[1]), jnp.float32)
    # highways (W1 bias fixed to 0 at construction, like the PyTorch module)
    for i in range(NUM_HIGHWAYS):
        p[f"hw{i}_w1"], p[f"hw{i}_b1"] = nrm((D, D)), jnp.zeros((1, D), jnp.float32)
        p[f"hw{i}_w2"], p[f"hw{i}_b2"] = nrm((D, D)), nrm((1, D))
    # bidirectional GRU, gate order (r, z, n) like PyTorch
    for d in ("fwd", "bwd"):
        p[f"gru_{d}_wih"] = nrm((D, 3 * H))
        p[f"gru_{d}_whh"] = nrm((H, 3 * H))
        p[f"gru_{d}_bih"] = nrm((1, 3 * H))
        p[f"gru_{d}_bhh"] = nrm((1, 3 * H))
    return p


# ----------------------------- main -------------------------------------------
if __name__ == "__main__":
    root = jax.random.PRNGKey(0)
    k_params, k_x = jax.random.split(root)
    params = init_params(k_params)
    x = (0.5 * jax.random.normal(k_x, (BATCH, IN_CHANNELS, SEQ))).astype(jnp.float32)

    wbig, vecs = pack_params(params, BATCH, SEQ)      # one-time host packing
    fwd = jax.jit(cbhg_forward)
    out = jax.block_until_ready(fwd(wbig, vecs, x))
    assert out.shape == (BATCH, SEQ, CHANNELS), out.shape
    assert bool(jnp.all(jnp.isfinite(out)))
    print("KERNEL_OK")
</pallas_src>

<mosaic_0001>
module attributes {stable_mosaic.version = 11 : i64} {
  func.func @_cbhg_kernel(%arg0: i32, %arg1: memref<18x128xf32, #tpu.memory_space<vmem>>, %arg2: memref<416x128xf32, #tpu.memory_space<vmem>>, %arg3: memref<8x128xf32, #tpu.memory_space<vmem>>, %arg4: memref<2x256xf32, #tpu.memory_space<vmem>>) attributes {dimension_semantics = [#tpu.dimension_semantics<arbitrary>], iteration_bounds = array<i64: 1>, scalar_prefetch = 0 : i64, scratch_operands = 0 : i64, tpu.core_type = #tpu.core_type<tc>, window_params = [{pipeline_mode = #tpu.pipeline_mode<synchronous>, transform_indices = @transform_0, window_bounds = array<i64: 18, 128>}, {pipeline_mode = #tpu.pipeline_mode<synchronous>, transform_indices = @transform_1, window_bounds = array<i64: 416, 128>}, {pipeline_mode = #tpu.pipeline_mode<synchronous>, transform_indices = @transform_2, window_bounds = array<i64: 8, 128>}, {pipeline_mode = #tpu.pipeline_mode<synchronous>, transform_indices = @transform_3, window_bounds = array<i64: 2, 256>}]} {
    %c0 = arith.constant 0 : index
    %c0_0 = arith.constant 0 : index
    %0 = vector.load %arg3[%c0, %c0_0] : memref<8x128xf32, #tpu.memory_space<vmem>>, vector<8x128xf32>
    %1 = vector.extract_strided_slice %0 {offsets = [0, 0], sizes = [1, 128], strides = [1, 1]} : vector<8x128xf32> to vector<1x128xf32>
    %2 = vector.extract_strided_slice %0 {offsets = [1, 0], sizes = [1, 128], strides = [1, 1]} : vector<8x128xf32> to vector<1x128xf32>
    %3 = vector.extract_strided_slice %0 {offsets = [2, 0], sizes = [1, 32], strides = [1, 1]} : vector<8x128xf32> to vector<1x32xf32>
    %4 = vector.extract_strided_slice %0 {offsets = [2, 32], sizes = [1, 32], strides = [1, 1]} : vector<8x128xf32> to vector<1x32xf32>
    %5 = vector.extract_strided_slice %0 {offsets = [2, 64], sizes = [1, 32], strides = [1, 1]} : vector<8x128xf32> to vector<1x32xf32>
    %6 = vector.extract_strided_slice %0 {offsets = [2, 96], sizes = [1, 32], strides = [1, 1]} : vector<8x128xf32> to vector<1x32xf32>
    %7 = vector.extract_strided_slice %0 {offsets = [4, 0], sizes = [1, 128], strides = [1, 1]} : vector<8x128xf32> to vector<1x128xf32>
    %8 = vector.extract_strided_slice %0 {offsets = [5, 0], sizes = [1, 128], strides = [1, 1]} : vector<8x128xf32> to vector<1x128xf32>
    %9 = vector.extract_strided_slice %0 {offsets = [6, 0], sizes = [1, 128], strides = [1, 1]} : vector<8x128xf32> to vector<1x128xf32>
    %10 = vector.extract_strided_slice %0 {offsets = [7, 0], sizes = [1, 128], strides = [1, 1]} : vector<8x128xf32> to vector<1x128xf32>
    %11 = tpu.iota {dimensions = array<i32: 0>} : vector<18x1xi32>
    %12 = tpu.iota {dimensions = array<i32: 0>} : vector<16x1xi32>
    %c16_i32 = arith.constant 16 : i32
    %13 = vector.broadcast %c16_i32 : i32 to vector<18x1xi32>
    %14 = arith.cmpi sge, %11, %13 : vector<18x1xi32>
    %15 = arith.extui %14 : vector<18x1xi1> to vector<18x1xi32>
    %16 = arith.sitofp %15 : vector<18x1xi32> to vector<18x1xf32>
    %c2_i32 = arith.constant 2 : i32
    %17 = vector.broadcast %c2_i32 : i32 to vector<16x1xi32>
    %18 = arith.cmpi slt, %12, %17 : vector<16x1xi32>
    %c14_i32 = arith.constant 14 : i32
    %19 = vector.broadcast %c14_i32 : i32 to vector<16x1xi32>
    %20 = arith.cmpi sge, %12, %19 : vector<16x1xi32>
    %c0_1 = arith.constant 0 : index
    %c0_2 = arith.constant 0 : index
    %21 = vector.load %arg1[%c0_1, %c0_2] : memref<18x128xf32, #tpu.memory_space<vmem>>, vector<18x128xf32>
    %c0_3 = arith.constant 0 : index
    %c0_4 = arith.constant 0 : index
    %22 = vector.load %arg2[%c0_3, %c0_4] : memref<416x128xf32, #tpu.memory_space<vmem>>, vector<128x128xf32>
    %cst = arith.constant dense<0.000000e+00> : vector<18x128xf32>
    %23 = tpu.matmul %21, %22, %cst {dimension_numbers = #tpu.dot_dimension_numbers<[1], [0], [0], [1], [0, 0, 1, 1], [], []>} : vector<18x128xf32>, vector<128x128xf32>, vector<18x128xf32> -> vector<18x128xf32>
    %cst_5 = arith.constant 0.000000e+00 : f32
    %24 = vector.broadcast %cst_5 : f32 to vector<18x128xf32>
    %25 = arith.maximumf %23, %24 : vector<18x128xf32>
    %26 = vector.broadcast %16 : vector<18x1xf32> to vector<18x128xf32>
    %27 = vector.broadcast %10 : vector<1x128xf32> to vector<18x128xf32>
    %28 = arith.mulf %26, %27 : vector<18x128xf32>
    %cst_6 = arith.constant 1.000000e+00 : f32
    %29 = vector.broadcast %cst_6 : f32 to vector<18x128xf32>
    %30 = arith.subf %29, %28 : vector<18x128xf32>
    %31 = arith.mulf %25, %30 : vector<18x128xf32>
    %cst_7 = arith.constant dense<0.000000e+00> : vector<128xf32>
    %32 = vector.multi_reduction <add>, %31, %cst_7 [0] : vector<18x128xf32> to vector<128xf32>
    %33 = vector.shape_cast %32 : vector<128xf32> to vector<1x128xf32>
    %34 = arith.mulf %33, %9 : vector<1x128xf32>
    %35 = vector.broadcast %34 : vector<1x128xf32> to vector<18x128xf32>
    %36 = arith.subf %25, %35 : vector<18x128xf32>
    %37 = arith.mulf %36, %30 : vector<18x128xf32>
    %38 = arith.mulf %37, %37 : vector<18x128xf32>
    %cst_8 = arith.constant dense<0.000000e+00> : vector<128xf32>
    %39 = vector.multi_reduction <add>, %38, %cst_8 [0] : vector<18x128xf32> to vector<128xf32>
    %40 = vector.shape_cast %39 : vector<128xf32> to vector<1x128xf32>
    %41 = arith.mulf %40, %9 : vector<1x128xf32>
    %42 = vector.broadcast %34 : vector<1x128xf32> to vector<18x128xf32>
    %43 = arith.subf %25, %42 : vector<18x128xf32>
    %44 = vector.broadcast %1 : vector<1x128xf32> to vector<18x128xf32>
    %45 = arith.mulf %44, %43 : vector<18x128xf32>
    %cst_9 = arith.constant 9.99999974E-6 : f32
    %46 = vector.broadcast %cst_9 : f32 to vector<1x128xf32>
    %47 = arith.addf %41, %46 : vector<1x128xf32>
    %48 = math.rsqrt %47 : vector<1x128xf32>
    %49 = vector.broadcast %48 : vector<1x128xf32> to vector<18x128xf32>
    %50 = arith.mulf %45, %49 : vector<18x128xf32>
    %51 = vector.broadcast %2 : vector<1x128xf32> to vector<18x128xf32>
    %52 = arith.addf %50, %51 : vector<18x128xf32>
    %53 = vector.extract_strided_slice %52 {offsets = [0, 0], sizes = [16, 128], strides = [1, 1]} : vector<18x128xf32> to vector<16x128xf32>
    %c2_i32_10 = arith.constant 2 : i32
    %54 = tpu.dynamic_rotate %53 by %c2_i32_10 dim 0 : vector<16x128xf32>, i32 -> vector<16x128xf32>
    %55 = vector.shape_cast %18 : vector<16x1xi1> to vector<16x1xi1>
    %56 = vector.broadcast %55 : vector<16x1xi1> to vector<16x128xi1>
    %57 = arith.select %56, %53, %54 : vector<16x128xi1>, vector<16x128xf32>
    %58 = arith.maximumf %53, %57 : vector<16x128xf32>
    %c128 = arith.constant 128 : index
    %c0_11 = arith.constant 0 : index
    %59 = vector.load %arg2[%c128, %c0_11] : memref<416x128xf32, #tpu.memory_space<vmem>>, vector<128x128xf32>
    %cst_12 = arith.constant dense<0.000000e+00> : vector<16x128xf32>
    %60 = tpu.matmul %58, %59, %cst_12 {dimension_numbers = #tpu.dot_dimension_numbers<[1], [0], [0], [1], [0, 0, 1, 1], [], []>} : vector<16x128xf32>, vector<128x128xf32>, vector<16x128xf32> -> vector<16x128xf32>
    %c2_i32_13 = arith.constant 2 : i32
    %61 = tpu.dynamic_rotate %60 by %c2_i32_13 dim 0 : vector<16x128xf32>, i32 -> vector<16x128xf32>
    %cst_14 = arith.constant 0.000000e+00 : f32
    %62 = vector.shape_cast %18 : vector<16x1xi1> to vector<16x1xi1>
    %63 = vector.broadcast %62 : vector<16x1xi1> to vector<16x128xi1>
    %64 = vector.broadcast %cst_14 : f32 to vector<16x128xf32>
    %65 = arith.select %63, %64, %61 : vector<16x128xi1>, vector<16x128xf32>
    %66 = vector.extract_strided_slice %65 {offsets = [0, 0], sizes = [16, 32], strides = [1, 1]} : vector<16x128xf32> to vector<16x32xf32>
    %67 = vector.extract_strided_slice %60 {offsets = [0, 32], sizes = [16, 32], strides = [1, 1]} : vector<16x128xf32> to vector<16x32xf32>
    %68 = arith.addf %66, %67 : vector<16x32xf32>
    %c14_i32_15 = arith.constant 14 : i32
    %69 = tpu.dynamic_rotate %60 by %c14_i32_15 dim 0 : vector<16x128xf32>, i32 -> vector<16x128xf32>
    %cst_16 = arith.constant 0.000000e+00 : f32
    %70 = vector.shape_cast %20 : vector<16x1xi1> to vector<16x1xi1>
    %71 = vector.broadcast %70 : vector<16x1xi1> to vector<16x128xi1>
    %72 = vector.broadcast %cst_16 : f32 to vector<16x128xf32>
    %73 = arith.select %71, %72, %69 : vector<16x128xi1>, vector<16x128xf32>
    %74 = vector.extract_strided_slice %73 {offsets = [0, 64], sizes = [16, 32], strides = [1, 1]} : vector<16x128xf32> to vector<16x32xf32>
    %75 = arith.addf %68, %74 : vector<16x32xf32>
    %cst_17 = arith.constant 0.000000e+00 : f32
    %76 = vector.broadcast %cst_17 : f32 to vector<16x32xf32>
    %77 = arith.maximumf %75, %76 : vector<16x32xf32>
    %cst_18 = arith.constant dense<0.000000e+00> : vector<32xf32>
    %78 = vector.multi_reduction <add>, %77, %cst_18 [0] : vector<16x32xf32> to vector<32xf32>
    %79 = vector.shape_cast %78 : vector<32xf32> to vector<1x32xf32>
    %cst_19 = arith.constant 1.600000e+01 : f32
    %80 = vector.broadcast %cst_19 : f32 to vector<1x32xf32>
    %81 = arith.divf %79, %80 : vector<1x32xf32>
    %82 = vector.broadcast %81 : vector<1x32xf32> to vector<16x32xf32>
    %83 = arith.subf %77, %82 : vector<16x32xf32>
    %84 = arith.mulf %83, %83 : vector<16x32xf32>
    %cst_20 = arith.constant dense<0.000000e+00> : vector<32xf32>
    %85 = vector.multi_reduction <add>, %84, %cst_20 [0] : vector<16x32xf32> to vector<32xf32>
    %86 = vector.shape_cast %85 : vector<32xf32> to vector<1x32xf32>
    %cst_21 = arith.constant 1.600000e+01 : f32
    %87 = vector.broadcast %cst_21 : f32 to vector<1x32xf32>
    %88 = arith.divf %86, %87 : vector<1x32xf32>
    %89 = vector.broadcast %3 : vector<1x32xf32> to vector<16x32xf32>
    %90 = arith.mulf %89, %83 : vector<16x32xf32>
    %cst_22 = arith.constant 9.99999974E-6 : f32
    %91 = vector.broadcast %cst_22 : f32 to vector<1x32xf32>
    %92 = arith.addf %88, %91 : vector<1x32xf32>
    %93 = math.rsqrt %92 : vector<1x32xf32>
    %94 = vector.broadcast %93 : vector<1x32xf32> to vector<16x32xf32>
    %95 = arith.mulf %90, %94 : vector<16x32xf32>
    %96 = vector.broadcast %4 : vector<1x32xf32> to vector<16x32xf32>
    %97 = arith.addf %95, %96 : vector<16x32xf32>
    %c256 = arith.constant 256 : index
    %c0_23 = arith.constant 0 : index
    %98 = vector.load %arg2[%c256, %c0_23] : memref<416x128xf32, #tpu.memory_space<vmem>>, vector<32x128xf32>
    %cst_24 = arith.constant dense<0.000000e+00> : vector<16x128xf32>
    %99 = tpu.matmul %97, %98, %cst_24 {dimension_numbers = #tpu.dot_dimension_numbers<[1], [0], [0], [1], [0, 0, 1, 1], [], []>} : vector<16x32xf32>, vector<32x128xf32>, vector<16x128xf32> -> vector<16x128xf32>
    %c2_i32_25 = arith.constant 2 : i32
    %100 = tpu.dynamic_rotate %99 by %c2_i32_25 dim 0 : vector<16x128xf32>, i32 -> vector<16x128xf32>
    %cst_26 = arith.constant 0.000000e+00 : f32
    %101 = vector.shape_cast %18 : vector<16x1xi1> to vector<16x1xi1>
    %102 = vector.broadcast %101 : vector<16x1xi1> to vector<16x128xi1>
    %103 = vector.broadcast %cst_26 : f32 to vector<16x128xf32>
    %104 = arith.select %102, %103, %100 : vector<16x128xi1>, vector<16x128xf32>
    %105 = vector.extract_strided_slice %104 {offsets = [0, 0], sizes = [16, 32], strides = [1, 1]} : vector<16x128xf32> to vector<16x32xf32>
    %106 = vector.extract_strided_slice %99 {offsets = [0, 32], sizes = [16, 32], strides = [1, 1]} : vector<16x128xf32> to vector<16x32xf32>
    %107 = arith.addf %105, %106 : vector<16x32xf32>
    %c14_i32_27 = arith.constant 14 : i32
    %108 = tpu.dynamic_rotate %99 by %c14_i32_27 dim 0 : vector<16x128xf32>, i32 -> vector<16x128xf32>
    %cst_28 = arith.constant 0.000000e+00 : f32
    %109 = vector.shape_cast %20 : vector<16x1xi1> to vector<16x1xi1>
    %110 = vector.broadcast %109 : vector<16x1xi1> to vector<16x128xi1>
    %111 = vector.broadcast %cst_28 : f32 to vector<16x128xf32>
    %112 = arith.select %110, %111, %108 : vector<16x128xi1>, vector<16x128xf32>
    %113 = vector.extract_strided_slice %112 {offsets = [0, 64], sizes = [16, 32], strides = [1, 1]} : vector<16x128xf32> to vector<16x32xf32>
    %114 = arith.addf %107, %113 : vector<16x32xf32>
    %115 = vector.extract_strided_slice %21 {offsets = [0, 64], sizes = [16, 32], strides = [1, 1]} : vector<18x128xf32> to vector<16x32xf32>
    %cst_29 = arith.constant dense<0.000000e+00> : vector<32xf32>
    %116 = vector.multi_reduction <add>, %114, %cst_29 [0] : vector<16x32xf32> to vector<32xf32>
    %117 = vector.shape_cast %116 : vector<32xf32> to vector<1x32xf32>
    %cst_30 = arith.constant 1.600000e+01 : f32
    %118 = vector.broadcast %cst_30 : f32 to vector<1x32xf32>
    %119 = arith.divf %117, %118 : vector<1x32xf32>
    %120 = vector.broadcast %119 : vector<1x32xf32> to vector<16x32xf32>
    %121 = arith.subf %114, %120 : vector<16x32xf32>
    %122 = arith.mulf %121, %121 : vector<16x32xf32>
    %cst_31 = arith.constant dense<0.000000e+00> : vector<32xf32>
    %123 = vector.multi_reduction <add>, %122, %cst_31 [0] : vector<16x32xf32> to vector<32xf32>
    %124 = vector.shape_cast %123 : vector<32xf32> to vector<1x32xf32>
    %cst_32 = arith.constant 1.600000e+01 : f32
    %125 = vector.broadcast %cst_32 : f32 to vector<1x32xf32>
    %126 = arith.divf %124, %125 : vector<1x32xf32>
    %127 = vector.broadcast %5 : vector<1x32xf32> to vector<16x32xf32>
    %128 = arith.mulf %127, %121 : vector<16x32xf32>
    %cst_33 = arith.constant 9.99999974E-6 : f32
    %129 = vector.broadcast %cst_33 : f32 to vector<1x32xf32>
    %130 = arith.addf %126, %129 : vector<1x32xf32>
    %131 = math.rsqrt %130 : vector<1x32xf32>
    %132 = vector.broadcast %131 : vector<1x32xf32> to vector<16x32xf32>
    %133 = arith.mulf %128, %132 : vector<16x32xf32>
    %134 = vector.broadcast %6 : vector<1x32xf32> to vector<16x32xf32>
    %135 = arith.addf %133, %134 : vector<16x32xf32>
    %136 = arith.addf %135, %115 : vector<16x32xf32>
    %c288 = arith.constant 288 : index
    %c0_34 = arith.constant 0 : index
    %137 = vector.load %arg2[%c288, %c0_34] : memref<416x128xf32, #tpu.memory_space<vmem>>, vector<32x128xf32>
    %cst_35 = arith.constant dense<0.000000e+00> : vector<16x128xf32>
    %138 = tpu.matmul %136, %137, %cst_35 {dimension_numbers = #tpu.dot_dimension_numbers<[1], [0], [0], [1], [0, 0, 1, 1], [], []>} : vector<16x32xf32>, vector<32x128xf32>, vector<16x128xf32> -> vector<16x128xf32>
    %139 = vector.extract_strided_slice %138 {offsets = [0, 0], sizes = [16, 32], strides = [1, 1]} : vector<16x128xf32> to vector<16x32xf32>
    %140 = vector.extract_strided_slice %0 {offsets = [3, 0], sizes = [1, 32], strides = [1, 1]} : vector<8x128xf32> to vector<1x32xf32>
    %141 = vector.broadcast %140 : vector<1x32xf32> to vector<16x32xf32>
    %142 = arith.addf %139, %141 : vector<16x32xf32>
    %143 = vector.extract_strided_slice %138 {offsets = [0, 32], sizes = [16, 32], strides = [1, 1]} : vector<16x128xf32> to vector<16x32xf32>
    %144 = vector.extract_strided_slice %0 {offsets = [3, 32], sizes = [1, 32], strides = [1, 1]} : vector<8x128xf32> to vector<1x32xf32>
    %145 = vector.broadcast %144 : vector<1x32xf32> to vector<16x32xf32>
    %146 = arith.addf %143, %145 : vector<16x32xf32>
    %147 = arith.negf %146 : vector<16x32xf32>
    %148 = math.exp %147 : vector<16x32xf32>
    %cst_36 = arith.constant 1.000000e+00 : f32
    %149 = vector.broadcast %cst_36 : f32 to vector<16x32xf32>
    %150 = arith.addf %149, %148 : vector<16x32xf32>
    %151 = arith.divf %149, %150 : vector<16x32xf32>
    %cst_37 = arith.constant 0.000000e+00 : f32
    %152 = vector.broadcast %cst_37 : f32 to vector<16x32xf32>
    %153 = arith.maximumf %142, %152 : vector<16x32xf32>
    %154 = arith.mulf %151, %153 : vector<16x32xf32>
    %cst_38 = arith.constant 1.000000e+00 : f32
    %155 = vector.broadcast %cst_38 : f32 to vector<16x32xf32>
    %156 = arith.subf %155, %151 : vector<16x32xf32>
    %157 = arith.mulf %156, %136 : vector<16x32xf32>
    %158 = arith.addf %154, %157 : vector<16x32xf32>
    %c320 = arith.constant 320 : index
    %c0_39 = arith.constant 0 : index
    %159 = vector.load %arg2[%c320, %c0_39] : memref<416x128xf32, #tpu.memory_space<vmem>>, vector<32x128xf32>
    %cst_40 = arith.constant dense<0.000000e+00> : vector<16x128xf32>
    %160 = tpu.matmul %158, %159, %cst_40 {dimension_numbers = #tpu.dot_dimension_numbers<[1], [0], [0], [1], [0, 0, 1, 1], [], []>} : vector<16x32xf32>, vector<32x128xf32>, vector<16x128xf32> -> vector<16x128xf32>
    %161 = vector.extract_strided_slice %160 {offsets = [0, 0], sizes = [16, 32], strides = [1, 1]} : vector<16x128xf32> to vector<16x32xf32>
    %162 = vector.extract_strided_slice %0 {offsets = [3, 64], sizes = [1, 32], strides = [1, 1]} : vector<8x128xf32> to vector<1x32xf32>
    %163 = vector.broadcast %162 : vector<1x32xf32> to vector<16x32xf32>
    %164 = arith.addf %161, %163 : vector<16x32xf32>
    %165 = vector.extract_strided_slice %160 {offsets = [0, 32], sizes = [16, 32], strides = [1, 1]} : vector<16x128xf32> to vector<16x32xf32>
    %166 = vector.extract_strided_slice %0 {offsets = [3, 96], sizes = [1, 32], strides = [1, 1]} : vector<8x128xf32> to vector<1x32xf32>
    %167 = vector.broadcast %166 : vector<1x32xf32> to vector<16x32xf32>
    %168 = arith.addf %165, %167 : vector<16x32xf32>
    %169 = arith.negf %168 : vector<16x32xf32>
    %170 = math.exp %169 : vector<16x32xf32>
    %cst_41 = arith.constant 1.000000e+00 : f32
    %171 = vector.broadcast %cst_41 : f32 to vector<16x32xf32>
    %172 = arith.addf %171, %170 : vector<16x32xf32>
    %173 = arith.divf %171, %172 : vector<16x32xf32>
    %cst_42 = arith.constant 0.000000e+00 : f32
    %174 = vector.broadcast %cst_42 : f32 to vector<16x32xf32>
    %175 = arith.maximumf %164, %174 : vector<16x32xf32>
    %176 = arith.mulf %173, %175 : vector<16x32xf32>
    %cst_43 = arith.constant 1.000000e+00 : f32
    %177 = vector.broadcast %cst_43 : f32 to vector<16x32xf32>
    %178 = arith.subf %177, %173 : vector<16x32xf32>
    %179 = arith.mulf %178, %158 : vector<16x32xf32>
    %180 = arith.addf %176, %179 : vector<16x32xf32>
    %c352 = arith.constant 352 : index
    %c0_44 = arith.constant 0 : index
    %181 = vector.load %arg2[%c352, %c0_44] : memref<416x128xf32, #tpu.memory_space<vmem>>, vector<32x128xf32>
    %cst_45 = arith.constant dense<0.000000e+00> : vector<16x128xf32>
    %182 = tpu.matmul %180, %181, %cst_45 {dimension_numbers = #tpu.dot_dimension_numbers<[1], [0], [0], [1], [0, 0, 1, 1], [], []>} : vector<16x32xf32>, vector<32x128xf32>, vector<16x128xf32> -> vector<16x128xf32>
    %183 = vector.broadcast %7 : vector<1x128xf32> to vector<16x128xf32>
    %184 = arith.addf %182, %183 : vector<16x128xf32>
    %c384 = arith.constant 384 : index
    %c0_46 = arith.constant 0 : index
    %185 = vector.load %arg2[%c384, %c0_46] : memref<416x128xf32, #tpu.memory_space<vmem>>, vector<32x128xf32>
    %cst_47 = arith.constant 0.000000e+00 : f32
    %186 = vector.broadcast %cst_47 : f32 to vector<2x32xf32>
    %cst_48 = arith.constant dense<0.000000e+00> : vector<2x128xf32>
    %187 = tpu.matmul %186, %185, %cst_48 {dimension_numbers = #tpu.dot_dimension_numbers<[1], [0], [0], [1], [0, 0, 1, 1], [], []>} : vector<2x32xf32>, vector<32x128xf32>, vector<2x128xf32> -> vector<2x128xf32>
    %188 = vector.broadcast %8 : vector<1x128xf32> to vector<2x128xf32>
    %189 = arith.addf %187, %188 : vector<2x128xf32>
    %190 = vector.extract_strided_slice %184 {offsets = [0, 0], sizes = [2, 48], strides = [1, 1]} : vector<16x128xf32> to vector<2x48xf32>
    %191 = vector.extract_strided_slice %189 {offsets = [0, 0], sizes = [2, 48], strides = [1, 1]} : vector<2x128xf32> to vector<2x48xf32>
    %192 = vector.extract_strided_slice %186 {offsets = [0, 0], sizes = [2, 16], strides = [1, 1]} : vector<2x32xf32> to vector<2x16xf32>
    %193 = vector.extract_strided_slice %190 {offsets = [0, 0], sizes = [2, 16], strides = [1, 1]} : vector<2x48xf32> to vector<2x16xf32>
    %194 = vector.extract_strided_slice %191 {offsets = [0, 0], sizes = [2, 16], strides = [1, 1]} : vector<2x48xf32> to vector<2x16xf32>
    %195 = arith.addf %193, %194 : vector<2x16xf32>
    %196 = arith.negf %195 : vector<2x16xf32>
    %197 = math.exp %196 : vector<2x16xf32>
    %cst_49 = arith.constant 1.000000e+00 : f32
    %198 = vector.broadcast %cst_49 : f32 to vector<2x16xf32>
    %199 = arith.addf %198, %197 : vector<2x16xf32>
    %200 = arith.divf %198, %199 : vector<2x16xf32>
    %201 = vector.extract_strided_slice %190 {offsets = [0, 16], sizes = [2, 16], strides = [1, 1]} : vector<2x48xf32> to vector<2x16xf32>
    %202 = vector.extract_strided_slice %191 {offsets = [0, 16], sizes = [2, 16], strides = [1, 1]} : vector<2x48xf32> to vector<2x16xf32>
    %203 = arith.addf %201, %202 : vector<2x16xf32>
    %204 = arith.negf %203 : vector<2x16xf32>
    %205 = math.exp %204 : vector<2x16xf32>
    %cst_50 = arith.constant 1.000000e+00 : f32
    %206 = vector.broadcast %cst_50 : f32 to vector<2x16xf32>
    %207 = arith.addf %206, %205 : vector<2x16xf32>
    %208 = arith.divf %206, %207 : vector<2x16xf32>
    %209 = vector.extract_strided_slice %190 {offsets = [0, 32], sizes = [2, 16], strides = [1, 1]} : vector<2x48xf32> to vector<2x16xf32>
    %210 = vector.extract_strided_slice %191 {offsets = [0, 32], sizes = [2, 16], strides = [1, 1]} : vector<2x48xf32> to vector<2x16xf32>
    %211 = arith.mulf %200, %210 : vector<2x16xf32>
    %212 = arith.addf %209, %211 : vector<2x16xf32>
    %213 = math.tanh %212 : vector<2x16xf32>
    %cst_51 = arith.constant 1.000000e+00 : f32
    %214 = vector.broadcast %cst_51 : f32 to vector<2x16xf32>
    %215 = arith.subf %214, %208 : vector<2x16xf32>
    %216 = arith.mulf %215, %213 : vector<2x16xf32>
    %217 = arith.mulf %208, %192 : vector<2x16xf32>
    %218 = arith.addf %216, %217 : vector<2x16xf32>
    %219 = vector.extract_strided_slice %184 {offsets = [14, 48], sizes = [2, 48], strides = [1, 1]} : vector<16x128xf32> to vector<2x48xf32>
    %220 = vector.extract_strided_slice %189 {offsets = [0, 48], sizes = [2, 48], strides = [1, 1]} : vector<2x128xf32> to vector<2x48xf32>
    %221 = vector.extract_strided_slice %186 {offsets = [0, 16], sizes = [2, 16], strides = [1, 1]} : vector<2x32xf32> to vector<2x16xf32>
    %222 = vector.extract_strided_slice %219 {offsets = [0, 0], sizes = [2, 16], strides = [1, 1]} : vector<2x48xf32> to vector<2x16xf32>
    %223 = vector.extract_strided_slice %220 {offsets = [0, 0], sizes = [2, 16], strides = [1, 1]} : vector<2x48xf32> to vector<2x16xf32>
    %224 = arith.addf %222, %223 : vector<2x16xf32>
    %225 = arith.negf %224 : vector<2x16xf32>
    %226 = math.exp %225 : vector<2x16xf32>
    %cst_52 = arith.constant 1.000000e+00 : f32
    %227 = vector.broadcast %cst_52 : f32 to vector<2x16xf32>
    %228 = arith.addf %227, %226 : vector<2x16xf32>
    %229 = arith.divf %227, %228 : vector<2x16xf32>
    %230 = vector.extract_strided_slice %219 {offsets = [0, 16], sizes = [2, 16], strides = [1, 1]} : vector<2x48xf32> to vector<2x16xf32>
    %231 = vector.extract_strided_slice %220 {offsets = [0, 16], sizes = [2, 16], strides = [1, 1]} : vector<2x48xf32> to vector<2x16xf32>
    %232 = arith.addf %230, %231 : vector<2x16xf32>
    %233 = arith.negf %232 : vector<2x16xf32>
    %234 = math.exp %233 : vector<2x16xf32>
    %cst_53 = arith.constant 1.000000e+00 : f32
    %235 = vector.broadcast %cst_53 : f32 to vector<2x16xf32>
    %236 = arith.addf %235, %234 : vector<2x16xf32>
    %237 = arith.divf %235, %236 : vector<2x16xf32>
    %238 = vector.extract_strided_slice %219 {offsets = [0, 32], sizes = [2, 16], strides = [1, 1]} : vector<2x48xf32> to vector<2x16xf32>
    %239 = vector.extract_strided_slice %220 {offsets = [0, 32], sizes = [2, 16], strides = [1, 1]} : vector<2x48xf32> to vector<2x16xf32>
    %240 = arith.mulf %229, %239 : vector<2x16xf32>
    %241 = arith.addf %238, %240 : vector<2x16xf32>
    %242 = math.tanh %241 : vector<2x16xf32>
    %cst_54 = arith.constant 1.000000e+00 : f32
    %243 = vector.broadcast %cst_54 : f32 to vector<2x16xf32>
    %244 = arith.subf %243, %237 : vector<2x16xf32>
    %245 = arith.mulf %244, %242 : vector<2x16xf32>
    %246 = arith.mulf %237, %221 : vector<2x16xf32>
    %247 = arith.addf %245, %246 : vector<2x16xf32>
    %248 = tpu.concatenate %218, %247 in 1 : vector<2x16xf32>, vector<2x16xf32> -> vector<2x32xf32>
    %cst_55 = arith.constant dense<0.000000e+00> : vector<2x128xf32>
    %249 = tpu.matmul %248, %185, %cst_55 {dimension_numbers = #tpu.dot_dimension_numbers<[1], [0], [0], [1], [0, 0, 1, 1], [], []>} : vector<2x32xf32>, vector<32x128xf32>, vector<2x128xf32> -> vector<2x128xf32>
    %250 = vector.broadcast %8 : vector<1x128xf32> to vector<2x128xf32>
    %251 = arith.addf %249, %250 : vector<2x128xf32>
    %252 = vector.extract_strided_slice %184 {offsets = [2, 0], sizes = [2, 48], strides = [1, 1]} : vector<16x128xf32> to vector<2x48xf32>
    %253 = vector.extract_strided_slice %251 {offsets = [0, 0], sizes = [2, 48], strides = [1, 1]} : vector<2x128xf32> to vector<2x48xf32>
    %254 = vector.extract_strided_slice %248 {offsets = [0, 0], sizes = [2, 16], strides = [1, 1]} : vector<2x32xf32> to vector<2x16xf32>
    %255 = vector.extract_strided_slice %252 {offsets = [0, 0], sizes = [2, 16], strides = [1, 1]} : vector<2x48xf32> to vector<2x16xf32>
    %256 = vector.extract_strided_slice %253 {offsets = [0, 0], sizes = [2, 16], strides = [1, 1]} : vector<2x48xf32> to vector<2x16xf32>
    %257 = arith.addf %255, %256 : vector<2x16xf32>
    %258 = arith.negf %257 : vector<2x16xf32>
    %259 = math.exp %258 : vector<2x16xf32>
    %cst_56 = arith.constant 1.000000e+00 : f32
    %260 = vector.broadcast %cst_56 : f32 to vector<2x16xf32>
    %261 = arith.addf %260, %259 : vector<2x16xf32>
    %262 = arith.divf %260, %261 : vector<2x16xf32>
    %263 = vector.extract_strided_slice %252 {offsets = [0, 16], sizes = [2, 16], strides = [1, 1]} : vector<2x48xf32> to vector<2x16xf32>
    %264 = vector.extract_strided_slice %253 {offsets = [0, 16], sizes = [2, 16], strides = [1, 1]} : vector<2x48xf32> to vector<2x16xf32>
    %265 = arith.addf %263, %264 : vector<2x16xf32>
    %266 = arith.negf %265 : vector<2x16xf32>
    %267 = math.exp %266 : vector<2x16xf32>
    %cst_57 = arith.constant 1.000000e+00 : f32
    %268 = vector.broadcast %cst_57 : f32 to vector<2x16xf32>
    %269 = arith.addf %268, %267 : vector<2x16xf32>
    %270 = arith.divf %268, %269 : vector<2x16xf32>
    %271 = vector.extract_strided_slice %252 {offsets = [0, 32], sizes = [2, 16], strides = [1, 1]} : vector<2x48xf32> to vector<2x16xf32>
    %272 = vector.extract_strided_slice %253 {offsets = [0, 32], sizes = [2, 16], strides = [1, 1]} : vector<2x48xf32> to vector<2x16xf32>
    %273 = arith.mulf %262, %272 : vector<2x16xf32>
    %274 = arith.addf %271, %273 : vector<2x16xf32>
    %275 = math.tanh %274 : vector<2x16xf32>
    %cst_58 = arith.constant 1.000000e+00 : f32
    %276 = vector.broadcast %cst_58 : f32 to vector<2x16xf32>
    %277 = arith.subf %276, %270 : vector<2x16xf32>
    %278 = arith.mulf %277, %275 : vector<2x16xf32>
    %279 = arith.mulf %270, %254 : vector<2x16xf32>
    %280 = arith.addf %278, %279 : vector<2x16xf32>
    %281 = vector.extract_strided_slice %184 {offsets = [12, 48], sizes = [2, 48], strides = [1, 1]} : vector<16x128xf32> to vector<2x48xf32>
    %282 = vector.extract_strided_slice %251 {offsets = [0, 48], sizes = [2, 48], strides = [1, 1]} : vector<2x128xf32> to vector<2x48xf32>
    %283 = vector.extract_strided_slice %248 {offsets = [0, 16], sizes = [2, 16], strides = [1, 1]} : vector<2x32xf32> to vector<2x16xf32>
    %284 = vector.extract_strided_slice %281 {offsets = [0, 0], sizes = [2, 16], strides = [1, 1]} : vector<2x48xf32> to vector<2x16xf32>
    %285 = vector.extract_strided_slice %282 {offsets = [0, 0], sizes = [2, 16], strides = [1, 1]} : vector<2x48xf32> to vector<2x16xf32>
    %286 = arith.addf %284, %285 : vector<2x16xf32>
    %287 = arith.negf %286 : vector<2x16xf32>
    %288 = math.exp %287 : vector<2x16xf32>
    %cst_59 = arith.constant 1.000000e+00 : f32
    %289 = vector.broadcast %cst_59 : f32 to vector<2x16xf32>
    %290 = arith.addf %289, %288 : vector<2x16xf32>
    %291 = arith.divf %289, %290 : vector<2x16xf32>
    %292 = vector.extract_strided_slice %281 {offsets = [0, 16], sizes = [2, 16], strides = [1, 1]} : vector<2x48xf32> to vector<2x16xf32>
    %293 = vector.extract_strided_slice %282 {offsets = [0, 16], sizes = [2, 16], strides = [1, 1]} : vector<2x48xf32> to vector<2x16xf32>
    %294 = arith.addf %292, %293 : vector<2x16xf32>
    %295 = arith.negf %294 : vector<2x16xf32>
    %296 = math.exp %295 : vector<2x16xf32>
    %cst_60 = arith.constant 1.000000e+00 : f32
    %297 = vector.broadcast %cst_60 : f32 to vector<2x16xf32>
    %298 = arith.addf %297, %296 : vector<2x16xf32>
    %299 = arith.divf %297, %298 : vector<2x16xf32>
    %300 = vector.extract_strided_slice %281 {offsets = [0, 32], sizes = [2, 16], strides = [1, 1]} : vector<2x48xf32> to vector<2x16xf32>
    %301 = vector.extract_strided_slice %282 {offsets = [0, 32], sizes = [2, 16], strides = [1, 1]} : vector<2x48xf32> to vector<2x16xf32>
    %302 = arith.mulf %291, %301 : vector<2x16xf32>
    %303 = arith.addf %300, %302 : vector<2x16xf32>
    %304 = math.tanh %303 : vector<2x16xf32>
    %cst_61 = arith.constant 1.000000e+00 : f32
    %305 = vector.broadcast %cst_61 : f32 to vector<2x16xf32>
    %306 = arith.subf %305, %299 : vector<2x16xf32>
    %307 = arith.mulf %306, %304 : vector<2x16xf32>
    %308 = arith.mulf %299, %283 : vector<2x16xf32>
    %309 = arith.addf %307, %308 : vector<2x16xf32>
    %310 = tpu.concatenate %280, %309 in 1 : vector<2x16xf32>, vector<2x16xf32> -> vector<2x32xf32>
    %cst_62 = arith.constant dense<0.000000e+00> : vector<2x128xf32>
    %311 = tpu.matmul %310, %185, %cst_62 {dimension_numbers = #tpu.dot_dimension_numbers<[1], [0], [0], [1], [0, 0, 1, 1], [], []>} : vector<2x32xf32>, vector<32x128xf32>, vector<2x128xf32> -> vector<2x128xf32>
    %312 = vector.broadcast %8 : vector<1x128xf32> to vector<2x128xf32>
    %313 = arith.addf %311, %312 : vector<2x128xf32>
    %314 = vector.extract_strided_slice %184 {offsets = [4, 0], sizes = [2, 48], strides = [1, 1]} : vector<16x128xf32> to vector<2x48xf32>
    %315 = vector.extract_strided_slice %313 {offsets = [0, 0], sizes = [2, 48], strides = [1, 1]} : vector<2x128xf32> to vector<2x48xf32>
    %316 = vector.extract_strided_slice %310 {offsets = [0, 0], sizes = [2, 16], strides = [1, 1]} : vector<2x32xf32> to vector<2x16xf32>
    %317 = vector.extract_strided_slice %314 {offsets = [0, 0], sizes = [2, 16], strides = [1, 1]} : vector<2x48xf32> to vector<2x16xf32>
    %318 = vector.extract_strided_slice %315 {offsets = [0, 0], sizes = [2, 16], strides = [1, 1]} : vector<2x48xf32> to vector<2x16xf32>
    %319 = arith.addf %317, %318 : vector<2x16xf32>
    %320 = arith.negf %319 : vector<2x16xf32>
    %321 = math.exp %320 : vector<2x16xf32>
    %cst_63 = arith.constant 1.000000e+00 : f32
    %322 = vector.broadcast %cst_63 : f32 to vector<2x16xf32>
    %323 = arith.addf %322, %321 : vector<2x16xf32>
    %324 = arith.divf %322, %323 : vector<2x16xf32>
    %325 = vector.extract_strided_slice %314 {offsets = [0, 16], sizes = [2, 16], strides = [1, 1]} : vector<2x48xf32> to vector<2x16xf32>
    %326 = vector.extract_strided_slice %315 {offsets = [0, 16], sizes = [2, 16], strides = [1, 1]} : vector<2x48xf32> to vector<2x16xf32>
    %327 = arith.addf %325, %326 : vector<2x16xf32>
    %328 = arith.negf %327 : vector<2x16xf32>
    %329 = math.exp %328 : vector<2x16xf32>
    %cst_64 = arith.constant 1.000000e+00 : f32
    %330 = vector.broadcast %cst_64 : f32 to vector<2x16xf32>
    %331 = arith.addf %330, %329 : vector<2x16xf32>
    %332 = arith.divf %330, %331 : vector<2x16xf32>
    %333 = vector.extract_strided_slice %314 {offsets = [0, 32], sizes = [2, 16], strides = [1, 1]} : vector<2x48xf32> to vector<2x16xf32>
    %334 = vector.extract_strided_slice %315 {offsets = [0, 32], sizes = [2, 16], strides = [1, 1]} : vector<2x48xf32> to vector<2x16xf32>
    %335 = arith.mulf %324, %334 : vector<2x16xf32>
    %336 = arith.addf %333, %335 : vector<2x16xf32>
    %337 = math.tanh %336 : vector<2x16xf32>
    %cst_65 = arith.constant 1.000000e+00 : f32
    %338 = vector.broadcast %cst_65 : f32 to vector<2x16xf32>
    %339 = arith.subf %338, %332 : vector<2x16xf32>
    %340 = arith.mulf %339, %337 : vector<2x16xf32>
    %341 = arith.mulf %332, %316 : vector<2x16xf32>
    %342 = arith.addf %340, %341 : vector<2x16xf32>
    %343 = vector.extract_strided_slice %184 {offsets = [10, 48], sizes = [2, 48], strides = [1, 1]} : vector<16x128xf32> to vector<2x48xf32>
    %344 = vector.extract_strided_slice %313 {offsets = [0, 48], sizes = [2, 48], strides = [1, 1]} : vector<2x128xf32> to vector<2x48xf32>
    %345 = vector.extract_strided_slice %310 {offsets = [0, 16], sizes = [2, 16], strides = [1, 1]} : vector<2x32xf32> to vector<2x16xf32>
    %346 = vector.extract_strided_slice %343 {offsets = [0, 0], sizes = [2, 16], strides = [1, 1]} : vector<2x48xf32> to vector<2x16xf32>
    %347 = vector.extract_strided_slice %344 {offsets = [0, 0], sizes = [2, 16], strides = [1, 1]} : vector<2x48xf32> to vector<2x16xf32>
    %348 = arith.addf %346, %347 : vector<2x16xf32>
    %349 = arith.negf %348 : vector<2x16xf32>
    %350 = math.exp %349 : vector<2x16xf32>
    %cst_66 = arith.constant 1.000000e+00 : f32
    %351 = vector.broadcast %cst_66 : f32 to vector<2x16xf32>
    %352 = arith.addf %351, %350 : vector<2x16xf32>
    %353 = arith.divf %351, %352 : vector<2x16xf32>
    %354 = vector.extract_strided_slice %343 {offsets = [0, 16], sizes = [2, 16], strides = [1, 1]} : vector<2x48xf32> to vector<2x16xf32>
    %355 = vector.extract_strided_slice %344 {offsets = [0, 16], sizes = [2, 16], strides = [1, 1]} : vector<2x48xf32> to vector<2x16xf32>
    %356 = arith.addf %354, %355 : vector<2x16xf32>
    %357 = arith.negf %356 : vector<2x16xf32>
    %358 = math.exp %357 : vector<2x16xf32>
    %cst_67 = arith.constant 1.000000e+00 : f32
    %359 = vector.broadcast %cst_67 : f32 to vector<2x16xf32>
    %360 = arith.addf %359, %358 : vector<2x16xf32>
    %361 = arith.divf %359, %360 : vector<2x16xf32>
    %362 = vector.extract_strided_slice %343 {offsets = [0, 32], sizes = [2, 16], strides = [1, 1]} : vector<2x48xf32> to vector<2x16xf32>
    %363 = vector.extract_strided_slice %344 {offsets = [0, 32], sizes = [2, 16], strides = [1, 1]} : vector<2x48xf32> to vector<2x16xf32>
    %364 = arith.mulf %353, %363 : vector<2x16xf32>
    %365 = arith.addf %362, %364 : vector<2x16xf32>
    %366 = math.tanh %365 : vector<2x16xf32>
    %cst_68 = arith.constant 1.000000e+00 : f32
    %367 = vector.broadcast %cst_68 : f32 to vector<2x16xf32>
    %368 = arith.subf %367, %361 : vector<2x16xf32>
    %369 = arith.mulf %368, %366 : vector<2x16xf32>
    %370 = arith.mulf %361, %345 : vector<2x16xf32>
    %371 = arith.addf %369, %370 : vector<2x16xf32>
    %372 = tpu.concatenate %342, %371 in 1 : vector<2x16xf32>, vector<2x16xf32> -> vector<2x32xf32>
    %cst_69 = arith.constant dense<0.000000e+00> : vector<2x128xf32>
    %373 = tpu.matmul %372, %185, %cst_69 {dimension_numbers = #tpu.dot_dimension_numbers<[1], [0], [0], [1], [0, 0, 1, 1], [], []>} : vector<2x32xf32>, vector<32x128xf32>, vector<2x128xf32> -> vector<2x128xf32>
    %374 = vector.broadcast %8 : vector<1x128xf32> to vector<2x128xf32>
    %375 = arith.addf %373, %374 : vector<2x128xf32>
    %376 = vector.extract_strided_slice %184 {offsets = [6, 0], sizes = [2, 48], strides = [1, 1]} : vector<16x128xf32> to vector<2x48xf32>
    %377 = vector.extract_strided_slice %375 {offsets = [0, 0], sizes = [2, 48], strides = [1, 1]} : vector<2x128xf32> to vector<2x48xf32>
    %378 = vector.extract_strided_slice %372 {offsets = [0, 0], sizes = [2, 16], strides = [1, 1]} : vector<2x32xf32> to vector<2x16xf32>
    %379 = vector.extract_strided_slice %376 {offsets = [0, 0], sizes = [2, 16], strides = [1, 1]} : vector<2x48xf32> to vector<2x16xf32>
    %380 = vector.extract_strided_slice %377 {offsets = [0, 0], sizes = [2, 16], strides = [1, 1]} : vector<2x48xf32> to vector<2x16xf32>
    %381 = arith.addf %379, %380 : vector<2x16xf32>
    %382 = arith.negf %381 : vector<2x16xf32>
    %383 = math.exp %382 : vector<2x16xf32>
    %cst_70 = arith.constant 1.000000e+00 : f32
    %384 = vector.broadcast %cst_70 : f32 to vector<2x16xf32>
    %385 = arith.addf %384, %383 : vector<2x16xf32>
    %386 = arith.divf %384, %385 : vector<2x16xf32>
    %387 = vector.extract_strided_slice %376 {offsets = [0, 16], sizes = [2, 16], strides = [1, 1]} : vector<2x48xf32> to vector<2x16xf32>
    %388 = vector.extract_strided_slice %377 {offsets = [0, 16], sizes = [2, 16], strides = [1, 1]} : vector<2x48xf32> to vector<2x16xf32>
    %389 = arith.addf %387, %388 : vector<2x16xf32>
    %390 = arith.negf %389 : vector<2x16xf32>
    %391 = math.exp %390 : vector<2x16xf32>
    %cst_71 = arith.constant 1.000000e+00 : f32
    %392 = vector.broadcast %cst_71 : f32 to vector<2x16xf32>
    %393 = arith.addf %392, %391 : vector<2x16xf32>
    %394 = arith.divf %392, %393 : vector<2x16xf32>
    %395 = vector.extract_strided_slice %376 {offsets = [0, 32], sizes = [2, 16], strides = [1, 1]} : vector<2x48xf32> to vector<2x16xf32>
    %396 = vector.extract_strided_slice %377 {offsets = [0, 32], sizes = [2, 16], strides = [1, 1]} : vector<2x48xf32> to vector<2x16xf32>
    %397 = arith.mulf %386, %396 : vector<2x16xf32>
    %398 = arith.addf %395, %397 : vector<2x16xf32>
    %399 = math.tanh %398 : vector<2x16xf32>
    %cst_72 = arith.constant 1.000000e+00 : f32
    %400 = vector.broadcast %cst_72 : f32 to vector<2x16xf32>
    %401 = arith.subf %400, %394 : vector<2x16xf32>
    %402 = arith.mulf %401, %399 : vector<2x16xf32>
    %403 = arith.mulf %394, %378 : vector<2x16xf32>
    %404 = arith.addf %402, %403 : vector<2x16xf32>
    %405 = vector.extract_strided_slice %184 {offsets = [8, 48], sizes = [2, 48], strides = [1, 1]} : vector<16x128xf32> to vector<2x48xf32>
    %406 = vector.extract_strided_slice %375 {offsets = [0, 48], sizes = [2, 48], strides = [1, 1]} : vector<2x128xf32> to vector<2x48xf32>
    %407 = vector.extract_strided_slice %372 {offsets = [0, 16], sizes = [2, 16], strides = [1, 1]} : vector<2x32xf32> to vector<2x16xf32>
    %408 = vector.extract_strided_slice %405 {offsets = [0, 0], sizes = [2, 16], strides = [1, 1]} : vector<2x48xf32> to vector<2x16xf32>
    %409 = vector.extract_strided_slice %406 {offsets = [0, 0], sizes = [2, 16], strides = [1, 1]} : vector<2x48xf32> to vector<2x16xf32>
    %410 = arith.addf %408, %409 : vector<2x16xf32>
    %411 = arith.negf %410 : vector<2x16xf32>
    %412 = math.exp %411 : vector<2x16xf32>
    %cst_73 = arith.constant 1.000000e+00 : f32
    %413 = vector.broadcast %cst_73 : f32 to vector<2x16xf32>
    %414 = arith.addf %413, %412 : vector<2x16xf32>
    %415 = arith.divf %413, %414 : vector<2x16xf32>
    %416 = vector.extract_strided_slice %405 {offsets = [0, 16], sizes = [2, 16], strides = [1, 1]} : vector<2x48xf32> to vector<2x16xf32>
    %417 = vector.extract_strided_slice %406 {offsets = [0, 16], sizes = [2, 16], strides = [1, 1]} : vector<2x48xf32> to vector<2x16xf32>
    %418 = arith.addf %416, %417 : vector<2x16xf32>
    %419 = arith.negf %418 : vector<2x16xf32>
    %420 = math.exp %419 : vector<2x16xf32>
    %cst_74 = arith.constant 1.000000e+00 : f32
    %421 = vector.broadcast %cst_74 : f32 to vector<2x16xf32>
    %422 = arith.addf %421, %420 : vector<2x16xf32>
    %423 = arith.divf %421, %422 : vector<2x16xf32>
    %424 = vector.extract_strided_slice %405 {offsets = [0, 32], sizes = [2, 16], strides = [1, 1]} : vector<2x48xf32> to vector<2x16xf32>
    %425 = vector.extract_strided_slice %406 {offsets = [0, 32], sizes = [2, 16], strides = [1, 1]} : vector<2x48xf32> to vector<2x16xf32>
    %426 = arith.mulf %415, %425 : vector<2x16xf32>
    %427 = arith.addf %424, %426 : vector<2x16xf32>
    %428 = math.tanh %427 : vector<2x16xf32>
    %cst_75 = arith.constant 1.000000e+00 : f32
    %429 = vector.broadcast %cst_75 : f32 to vector<2x16xf32>
    %430 = arith.subf %429, %423 : vector<2x16xf32>
    %431 = arith.mulf %430, %428 : vector<2x16xf32>
    %432 = arith.mulf %423, %407 : vector<2x16xf32>
    %433 = arith.addf %431, %432 : vector<2x16xf32>
    %434 = tpu.concatenate %404, %433 in 1 : vector<2x16xf32>, vector<2x16xf32> -> vector<2x32xf32>
    %cst_76 = arith.constant dense<0.000000e+00> : vector<2x128xf32>
    %435 = tpu.matmul %434, %185, %cst_76 {dimension_numbers = #tpu.dot_dimension_numbers<[1], [0], [0], [1], [0, 0, 1, 1], [], []>} : vector<2x32xf32>, vector<32x128xf32>, vector<2x128xf32> -> vector<2x128xf32>
    %436 = vector.broadcast %8 : vector<1x128xf32> to vector<2x128xf32>
    %437 = arith.addf %435, %436 : vector<2x128xf32>
    %438 = vector.extract_strided_slice %184 {offsets = [8, 0], sizes = [2, 48], strides = [1, 1]} : vector<16x128xf32> to vector<2x48xf32>
    %439 = vector.extract_strided_slice %437 {offsets = [0, 0], sizes = [2, 48], strides = [1, 1]} : vector<2x128xf32> to vector<2x48xf32>
    %440 = vector.extract_strided_slice %434 {offsets = [0, 0], sizes = [2, 16], strides = [1, 1]} : vector<2x32xf32> to vector<2x16xf32>
    %441 = vector.extract_strided_slice %438 {offsets = [0, 0], sizes = [2, 16], strides = [1, 1]} : vector<2x48xf32> to vector<2x16xf32>
    %442 = vector.extract_strided_slice %439 {offsets = [0, 0], sizes = [2, 16], strides = [1, 1]} : vector<2x48xf32> to vector<2x16xf32>
    %443 = arith.addf %441, %442 : vector<2x16xf32>
    %444 = arith.negf %443 : vector<2x16xf32>
    %445 = math.exp %444 : vector<2x16xf32>
    %cst_77 = arith.constant 1.000000e+00 : f32
    %446 = vector.broadcast %cst_77 : f32 to vector<2x16xf32>
    %447 = arith.addf %446, %445 : vector<2x16xf32>
    %448 = arith.divf %446, %447 : vector<2x16xf32>
    %449 = vector.extract_strided_slice %438 {offsets = [0, 16], sizes = [2, 16], strides = [1, 1]} : vector<2x48xf32> to vector<2x16xf32>
    %450 = vector.extract_strided_slice %439 {offsets = [0, 16], sizes = [2, 16], strides = [1, 1]} : vector<2x48xf32> to vector<2x16xf32>
    %451 = arith.addf %449, %450 : vector<2x16xf32>
    %452 = arith.negf %451 : vector<2x16xf32>
    %453 = math.exp %452 : vector<2x16xf32>
    %cst_78 = arith.constant 1.000000e+00 : f32
    %454 = vector.broadcast %cst_78 : f32 to vector<2x16xf32>
    %455 = arith.addf %454, %453 : vector<2x16xf32>
    %456 = arith.divf %454, %455 : vector<2x16xf32>
    %457 = vector.extract_strided_slice %438 {offsets = [0, 32], sizes = [2, 16], strides = [1, 1]} : vector<2x48xf32> to vector<2x16xf32>
    %458 = vector.extract_strided_slice %439 {offsets = [0, 32], sizes = [2, 16], strides = [1, 1]} : vector<2x48xf32> to vector<2x16xf32>
    %459 = arith.mulf %448, %458 : vector<2x16xf32>
    %460 = arith.addf %457, %459 : vector<2x16xf32>
    %461 = math.tanh %460 : vector<2x16xf32>
    %cst_79 = arith.constant 1.000000e+00 : f32
    %462 = vector.broadcast %cst_79 : f32 to vector<2x16xf32>
    %463 = arith.subf %462, %456 : vector<2x16xf32>
    %464 = arith.mulf %463, %461 : vector<2x16xf32>
    %465 = arith.mulf %456, %440 : vector<2x16xf32>
    %466 = arith.addf %464, %465 : vector<2x16xf32>
    %467 = vector.extract_strided_slice %184 {offsets = [6, 48], sizes = [2, 48], strides = [1, 1]} : vector<16x128xf32> to vector<2x48xf32>
    %468 = vector.extract_strided_slice %437 {offsets = [0, 48], sizes = [2, 48], strides = [1, 1]} : vector<2x128xf32> to vector<2x48xf32>
    %469 = vector.extract_strided_slice %434 {offsets = [0, 16], sizes = [2, 16], strides = [1, 1]} : vector<2x32xf32> to vector<2x16xf32>
    %470 = vector.extract_strided_slice %467 {offsets = [0, 0], sizes = [2, 16], strides = [1, 1]} : vector<2x48xf32> to vector<2x16xf32>
    %471 = vector.extract_strided_slice %468 {offsets = [0, 0], sizes = [2, 16], strides = [1, 1]} : vector<2x48xf32> to vector<2x16xf32>
    %472 = arith.addf %470, %471 : vector<2x16xf32>
    %473 = arith.negf %472 : vector<2x16xf32>
    %474 = math.exp %473 : vector<2x16xf32>
    %cst_80 = arith.constant 1.000000e+00 : f32
    %475 = vector.broadcast %cst_80 : f32 to vector<2x16xf32>
    %476 = arith.addf %475, %474 : vector<2x16xf32>
    %477 = arith.divf %475, %476 : vector<2x16xf32>
    %478 = vector.extract_strided_slice %467 {offsets = [0, 16], sizes = [2, 16], strides = [1, 1]} : vector<2x48xf32> to vector<2x16xf32>
    %479 = vector.extract_strided_slice %468 {offsets = [0, 16], sizes = [2, 16], strides = [1, 1]} : vector<2x48xf32> to vector<2x16xf32>
    %480 = arith.addf %478, %479 : vector<2x16xf32>
    %481 = arith.negf %480 : vector<2x16xf32>
    %482 = math.exp %481 : vector<2x16xf32>
    %cst_81 = arith.constant 1.000000e+00 : f32
    %483 = vector.broadcast %cst_81 : f32 to vector<2x16xf32>
    %484 = arith.addf %483, %482 : vector<2x16xf32>
    %485 = arith.divf %483, %484 : vector<2x16xf32>
    %486 = vector.extract_strided_slice %467 {offsets = [0, 32], sizes = [2, 16], strides = [1, 1]} : vector<2x48xf32> to vector<2x16xf32>
    %487 = vector.extract_strided_slice %468 {offsets = [0, 32], sizes = [2, 16], strides = [1, 1]} : vector<2x48xf32> to vector<2x16xf32>
    %488 = arith.mulf %477, %487 : vector<2x16xf32>
    %489 = arith.addf %486, %488 : vector<2x16xf32>
    %490 = math.tanh %489 : vector<2x16xf32>
    %cst_82 = arith.constant 1.000000e+00 : f32
    %491 = vector.broadcast %cst_82 : f32 to vector<2x16xf32>
    %492 = arith.subf %491, %485 : vector<2x16xf32>
    %493 = arith.mulf %492, %490 : vector<2x16xf32>
    %494 = arith.mulf %485, %469 : vector<2x16xf32>
    %495 = arith.addf %493, %494 : vector<2x16xf32>
    %496 = tpu.concatenate %466, %495 in 1 : vector<2x16xf32>, vector<2x16xf32> -> vector<2x32xf32>
    %cst_83 = arith.constant dense<0.000000e+00> : vector<2x128xf32>
    %497 = tpu.matmul %496, %185, %cst_83 {dimension_numbers = #tpu.dot_dimension_numbers<[1], [0], [0], [1], [0, 0, 1, 1], [], []>} : vector<2x32xf32>, vector<32x128xf32>, vector<2x128xf32> -> vector<2x128xf32>
    %498 = vector.broadcast %8 : vector<1x128xf32> to vector<2x128xf32>
    %499 = arith.addf %497, %498 : vector<2x128xf32>
    %500 = vector.extract_strided_slice %184 {offsets = [10, 0], sizes = [2, 48], strides = [1, 1]} : vector<16x128xf32> to vector<2x48xf32>
    %501 = vector.extract_strided_slice %499 {offsets = [0, 0], sizes = [2, 48], strides = [1, 1]} : vector<2x128xf32> to vector<2x48xf32>
    %502 = vector.extract_strided_slice %496 {offsets = [0, 0], sizes = [2, 16], strides = [1, 1]} : vector<2x32xf32> to vector<2x16xf32>
    %503 = vector.extract_strided_slice %500 {offsets = [0, 0], sizes = [2, 16], strides = [1, 1]} : vector<2x48xf32> to vector<2x16xf32>
    %504 = vector.extract_strided_slice %501 {offsets = [0, 0], sizes = [2, 16], strides = [1, 1]} : vector<2x48xf32> to vector<2x16xf32>
    %505 = arith.addf %503, %504 : vector<2x16xf32>
    %506 = arith.negf %505 : vector<2x16xf32>
    %507 = math.exp %506 : vector<2x16xf32>
    %cst_84 = arith.constant 1.000000e+00 : f32
    %508 = vector.broadcast %cst_84 : f32 to vector<2x16xf32>
    %509 = arith.addf %508, %507 : vector<2x16xf32>
    %510 = arith.divf %508, %509 : vector<2x16xf32>
    %511 = vector.extract_strided_slice %500 {offsets = [0, 16], sizes = [2, 16], strides = [1, 1]} : vector<2x48xf32> to vector<2x16xf32>
    %512 = vector.extract_strided_slice %501 {offsets = [0, 16], sizes = [2, 16], strides = [1, 1]} : vector<2x48xf32> to vector<2x16xf32>
    %513 = arith.addf %511, %512 : vector<2x16xf32>
    %514 = arith.negf %513 : vector<2x16xf32>
    %515 = math.exp %514 : vector<2x16xf32>
    %cst_85 = arith.constant 1.000000e+00 : f32
    %516 = vector.broadcast %cst_85 : f32 to vector<2x16xf32>
    %517 = arith.addf %516, %515 : vector<2x16xf32>
    %518 = arith.divf %516, %517 : vector<2x16xf32>
    %519 = vector.extract_strided_slice %500 {offsets = [0, 32], sizes = [2, 16], strides = [1, 1]} : vector<2x48xf32> to vector<2x16xf32>
    %520 = vector.extract_strided_slice %501 {offsets = [0, 32], sizes = [2, 16], strides = [1, 1]} : vector<2x48xf32> to vector<2x16xf32>
    %521 = arith.mulf %510, %520 : vector<2x16xf32>
    %522 = arith.addf %519, %521 : vector<2x16xf32>
    %523 = math.tanh %522 : vector<2x16xf32>
    %cst_86 = arith.constant 1.000000e+00 : f32
    %524 = vector.broadcast %cst_86 : f32 to vector<2x16xf32>
    %525 = arith.subf %524, %518 : vector<2x16xf32>
    %526 = arith.mulf %525, %523 : vector<2x16xf32>
    %527 = arith.mulf %518, %502 : vector<2x16xf32>
    %528 = arith.addf %526, %527 : vector<2x16xf32>
    %529 = vector.extract_strided_slice %184 {offsets = [4, 48], sizes = [2, 48], strides = [1, 1]} : vector<16x128xf32> to vector<2x48xf32>
    %530 = vector.extract_strided_slice %499 {offsets = [0, 48], sizes = [2, 48], strides = [1, 1]} : vector<2x128xf32> to vector<2x48xf32>
    %531 = vector.extract_strided_slice %496 {offsets = [0, 16], sizes = [2, 16], strides = [1, 1]} : vector<2x32xf32> to vector<2x16xf32>
    %532 = vector.extract_strided_slice %529 {offsets = [0, 0], sizes = [2, 16], strides = [1, 1]} : vector<2x48xf32> to vector<2x16xf32>
    %533 = vector.extract_strided_slice %530 {offsets = [0, 0], sizes = [2, 16], strides = [1, 1]} : vector<2x48xf32> to vector<2x16xf32>
    %534 = arith.addf %532, %533 : vector<2x16xf32>
    %535 = arith.negf %534 : vector<2x16xf32>
    %536 = math.exp %535 : vector<2x16xf32>
    %cst_87 = arith.constant 1.000000e+00 : f32
    %537 = vector.broadcast %cst_87 : f32 to vector<2x16xf32>
    %538 = arith.addf %537, %536 : vector<2x16xf32>
    %539 = arith.divf %537, %538 : vector<2x16xf32>
    %540 = vector.extract_strided_slice %529 {offsets = [0, 16], sizes = [2, 16], strides = [1, 1]} : vector<2x48xf32> to vector<2x16xf32>
    %541 = vector.extract_strided_slice %530 {offsets = [0, 16], sizes = [2, 16], strides = [1, 1]} : vector<2x48xf32> to vector<2x16xf32>
    %542 = arith.addf %540, %541 : vector<2x16xf32>
    %543 = arith.negf %542 : vector<2x16xf32>
    %544 = math.exp %543 : vector<2x16xf32>
    %cst_88 = arith.constant 1.000000e+00 : f32
    %545 = vector.broadcast %cst_88 : f32 to vector<2x16xf32>
    %546 = arith.addf %545, %544 : vector<2x16xf32>
    %547 = arith.divf %545, %546 : vector<2x16xf32>
    %548 = vector.extract_strided_slice %529 {offsets = [0, 32], sizes = [2, 16], strides = [1, 1]} : vector<2x48xf32> to vector<2x16xf32>
    %549 = vector.extract_strided_slice %530 {offsets = [0, 32], sizes = [2, 16], strides = [1, 1]} : vector<2x48xf32> to vector<2x16xf32>
    %550 = arith.mulf %539, %549 : vector<2x16xf32>
    %551 = arith.addf %548, %550 : vector<2x16xf32>
    %552 = math.tanh %551 : vector<2x16xf32>
    %cst_89 = arith.constant 1.000000e+00 : f32
    %553 = vector.broadcast %cst_89 : f32 to vector<2x16xf32>
    %554 = arith.subf %553, %547 : vector<2x16xf32>
    %555 = arith.mulf %554, %552 : vector<2x16xf32>
    %556 = arith.mulf %547, %531 : vector<2x16xf32>
    %557 = arith.addf %555, %556 : vector<2x16xf32>
    %558 = tpu.concatenate %528, %557 in 1 : vector<2x16xf32>, vector<2x16xf32> -> vector<2x32xf32>
    %cst_90 = arith.constant dense<0.000000e+00> : vector<2x128xf32>
    %559 = tpu.matmul %558, %185, %cst_90 {dimension_numbers = #tpu.dot_dimension_numbers<[1], [0], [0], [1], [0, 0, 1, 1], [], []>} : vector<2x32xf32>, vector<32x128xf32>, vector<2x128xf32> -> vector<2x128xf32>
    %560 = vector.broadcast %8 : vector<1x128xf32> to vector<2x128xf32>
    %561 = arith.addf %559, %560 : vector<2x128xf32>
    %562 = vector.extract_strided_slice %184 {offsets = [12, 0], sizes = [2, 48], strides = [1, 1]} : vector<16x128xf32> to vector<2x48xf32>
    %563 = vector.extract_strided_slice %561 {offsets = [0, 0], sizes = [2, 48], strides = [1, 1]} : vector<2x128xf32> to vector<2x48xf32>
    %564 = vector.extract_strided_slice %558 {offsets = [0, 0], sizes = [2, 16], strides = [1, 1]} : vector<2x32xf32> to vector<2x16xf32>
    %565 = vector.extract_strided_slice %562 {offsets = [0, 0], sizes = [2, 16], strides = [1, 1]} : vector<2x48xf32> to vector<2x16xf32>
    %566 = vector.extract_strided_slice %563 {offsets = [0, 0], sizes = [2, 16], strides = [1, 1]} : vector<2x48xf32> to vector<2x16xf32>
    %567 = arith.addf %565, %566 : vector<2x16xf32>
    %568 = arith.negf %567 : vector<2x16xf32>
    %569 = math.exp %568 : vector<2x16xf32>
    %cst_91 = arith.constant 1.000000e+00 : f32
    %570 = vector.broadcast %cst_91 : f32 to vector<2x16xf32>
    %571 = arith.addf %570, %569 : vector<2x16xf32>
    %572 = arith.divf %570, %571 : vector<2x16xf32>
    %573 = vector.extract_strided_slice %562 {offsets = [0, 16], sizes = [2, 16], strides = [1, 1]} : vector<2x48xf32> to vector<2x16xf32>
    %574 = vector.extract_strided_slice %563 {offsets = [0, 16], sizes = [2, 16], strides = [1, 1]} : vector<2x48xf32> to vector<2x16xf32>
    %575 = arith.addf %573, %574 : vector<2x16xf32>
    %576 = arith.negf %575 : vector<2x16xf32>
    %577 = math.exp %576 : vector<2x16xf32>
    %cst_92 = arith.constant 1.000000e+00 : f32
    %578 = vector.broadcast %cst_92 : f32 to vector<2x16xf32>
    %579 = arith.addf %578, %577 : vector<2x16xf32>
    %580 = arith.divf %578, %579 : vector<2x16xf32>
    %581 = vector.extract_strided_slice %562 {offsets = [0, 32], sizes = [2, 16], strides = [1, 1]} : vector<2x48xf32> to vector<2x16xf32>
    %582 = vector.extract_strided_slice %563 {offsets = [0, 32], sizes = [2, 16], strides = [1, 1]} : vector<2x48xf32> to vector<2x16xf32>
    %583 = arith.mulf %572, %582 : vector<2x16xf32>
    %584 = arith.addf %581, %583 : vector<2x16xf32>
    %585 = math.tanh %584 : vector<2x16xf32>
    %cst_93 = arith.constant 1.000000e+00 : f32
    %586 = vector.broadcast %cst_93 : f32 to vector<2x16xf32>
    %587 = arith.subf %586, %580 : vector<2x16xf32>
    %588 = arith.mulf %587, %585 : vector<2x16xf32>
    %589 = arith.mulf %580, %564 : vector<2x16xf32>
    %590 = arith.addf %588, %589 : vector<2x16xf32>
    %591 = vector.extract_strided_slice %184 {offsets = [2, 48], sizes = [2, 48], strides = [1, 1]} : vector<16x128xf32> to vector<2x48xf32>
    %592 = vector.extract_strided_slice %561 {offsets = [0, 48], sizes = [2, 48], strides = [1, 1]} : vector<2x128xf32> to vector<2x48xf32>
    %593 = vector.extract_strided_slice %558 {offsets = [0, 16], sizes = [2, 16], strides = [1, 1]} : vector<2x32xf32> to vector<2x16xf32>
    %594 = vector.extract_strided_slice %591 {offsets = [0, 0], sizes = [2, 16], strides = [1, 1]} : vector<2x48xf32> to vector<2x16xf32>
    %595 = vector.extract_strided_slice %592 {offsets = [0, 0], sizes = [2, 16], strides = [1, 1]} : vector<2x48xf32> to vector<2x16xf32>
    %596 = arith.addf %594, %595 : vector<2x16xf32>
    %597 = arith.negf %596 : vector<2x16xf32>
    %598 = math.exp %597 : vector<2x16xf32>
    %cst_94 = arith.constant 1.000000e+00 : f32
    %599 = vector.broadcast %cst_94 : f32 to vector<2x16xf32>
    %600 = arith.addf %599, %598 : vector<2x16xf32>
    %601 = arith.divf %599, %600 : vector<2x16xf32>
    %602 = vector.extract_strided_slice %591 {offsets = [0, 16], sizes = [2, 16], strides = [1, 1]} : vector<2x48xf32> to vector<2x16xf32>
    %603 = vector.extract_strided_slice %592 {offsets = [0, 16], sizes = [2, 16], strides = [1, 1]} : vector<2x48xf32> to vector<2x16xf32>
    %604 = arith.addf %602, %603 : vector<2x16xf32>
    %605 = arith.negf %604 : vector<2x16xf32>
    %606 = math.exp %605 : vector<2x16xf32>
    %cst_95 = arith.constant 1.000000e+00 : f32
    %607 = vector.broadcast %cst_95 : f32 to vector<2x16xf32>
    %608 = arith.addf %607, %606 : vector<2x16xf32>
    %609 = arith.divf %607, %608 : vector<2x16xf32>
    %610 = vector.extract_strided_slice %591 {offsets = [0, 32], sizes = [2, 16], strides = [1, 1]} : vector<2x48xf32> to vector<2x16xf32>
    %611 = vector.extract_strided_slice %592 {offsets = [0, 32], sizes = [2, 16], strides = [1, 1]} : vector<2x48xf32> to vector<2x16xf32>
    %612 = arith.mulf %601, %611 : vector<2x16xf32>
    %613 = arith.addf %610, %612 : vector<2x16xf32>
    %614 = math.tanh %613 : vector<2x16xf32>
    %cst_96 = arith.constant 1.000000e+00 : f32
    %615 = vector.broadcast %cst_96 : f32 to vector<2x16xf32>
    %616 = arith.subf %615, %609 : vector<2x16xf32>
    %617 = arith.mulf %616, %614 : vector<2x16xf32>
    %618 = arith.mulf %609, %593 : vector<2x16xf32>
    %619 = arith.addf %617, %618 : vector<2x16xf32>
    %620 = tpu.concatenate %590, %619 in 1 : vector<2x16xf32>, vector<2x16xf32> -> vector<2x32xf32>
    %cst_97 = arith.constant dense<0.000000e+00> : vector<2x128xf32>
    %621 = tpu.matmul %620, %185, %cst_97 {dimension_numbers = #tpu.dot_dimension_numbers<[1], [0], [0], [1], [0, 0, 1, 1], [], []>} : vector<2x32xf32>, vector<32x128xf32>, vector<2x128xf32> -> vector<2x128xf32>
    %622 = vector.broadcast %8 : vector<1x128xf32> to vector<2x128xf32>
    %623 = arith.addf %621, %622 : vector<2x128xf32>
    %624 = vector.extract_strided_slice %184 {offsets = [14, 0], sizes = [2, 48], strides = [1, 1]} : vector<16x128xf32> to vector<2x48xf32>
    %625 = vector.extract_strided_slice %623 {offsets = [0, 0], sizes = [2, 48], strides = [1, 1]} : vector<2x128xf32> to vector<2x48xf32>
    %626 = vector.extract_strided_slice %620 {offsets = [0, 0], sizes = [2, 16], strides = [1, 1]} : vector<2x32xf32> to vector<2x16xf32>
    %627 = vector.extract_strided_slice %624 {offsets = [0, 0], sizes = [2, 16], strides = [1, 1]} : vector<2x48xf32> to vector<2x16xf32>
    %628 = vector.extract_strided_slice %625 {offsets = [0, 0], sizes = [2, 16], strides = [1, 1]} : vector<2x48xf32> to vector<2x16xf32>
    %629 = arith.addf %627, %628 : vector<2x16xf32>
    %630 = arith.negf %629 : vector<2x16xf32>
    %631 = math.exp %630 : vector<2x16xf32>
    %cst_98 = arith.constant 1.000000e+00 : f32
    %632 = vector.broadcast %cst_98 : f32 to vector<2x16xf32>
    %633 = arith.addf %632, %631 : vector<2x16xf32>
    %634 = arith.divf %632, %633 : vector<2x16xf32>
    %635 = vector.extract_strided_slice %624 {offsets = [0, 16], sizes = [2, 16], strides = [1, 1]} : vector<2x48xf32> to vector<2x16xf32>
    %636 = vector.extract_strided_slice %625 {offsets = [0, 16], sizes = [2, 16], strides = [1, 1]} : vector<2x48xf32> to vector<2x16xf32>
    %637 = arith.addf %635, %636 : vector<2x16xf32>
    %638 = arith.negf %637 : vector<2x16xf32>
    %639 = math.exp %638 : vector<2x16xf32>
    %cst_99 = arith.constant 1.000000e+00 : f32
    %640 = vector.broadcast %cst_99 : f32 to vector<2x16xf32>
    %641 = arith.addf %640, %639 : vector<2x16xf32>
    %642 = arith.divf %640, %641 : vector<2x16xf32>
    %643 = vector.extract_strided_slice %624 {offsets = [0, 32], sizes = [2, 16], strides = [1, 1]} : vector<2x48xf32> to vector<2x16xf32>
    %644 = vector.extract_strided_slice %625 {offsets = [0, 32], sizes = [2, 16], strides = [1, 1]} : vector<2x48xf32> to vector<2x16xf32>
    %645 = arith.mulf %634, %644 : vector<2x16xf32>
    %646 = arith.addf %643, %645 : vector<2x16xf32>
    %647 = math.tanh %646 : vector<2x16xf32>
    %cst_100 = arith.constant 1.000000e+00 : f32
    %648 = vector.broadcast %cst_100 : f32 to vector<2x16xf32>
    %649 = arith.subf %648, %642 : vector<2x16xf32>
    %650 = arith.mulf %649, %647 : vector<2x16xf32>
    %651 = arith.mulf %642, %626 : vector<2x16xf32>
    %652 = arith.addf %650, %651 : vector<2x16xf32>
    %653 = vector.extract_strided_slice %184 {offsets = [0, 48], sizes = [2, 48], strides = [1, 1]} : vector<16x128xf32> to vector<2x48xf32>
    %654 = vector.extract_strided_slice %623 {offsets = [0, 48], sizes = [2, 48], strides = [1, 1]} : vector<2x128xf32> to vector<2x48xf32>
    %655 = vector.extract_strided_slice %620 {offsets = [0, 16], sizes = [2, 16], strides = [1, 1]} : vector<2x32xf32> to vector<2x16xf32>
    %656 = vector.extract_strided_slice %653 {offsets = [0, 0], sizes = [2, 16], strides = [1, 1]} : vector<2x48xf32> to vector<2x16xf32>
    %657 = vector.extract_strided_slice %654 {offsets = [0, 0], sizes = [2, 16], strides = [1, 1]} : vector<2x48xf32> to vector<2x16xf32>
    %658 = arith.addf %656, %657 : vector<2x16xf32>
    %659 = arith.negf %658 : vector<2x16xf32>
    %660 = math.exp %659 : vector<2x16xf32>
    %cst_101 = arith.constant 1.000000e+00 : f32
    %661 = vector.broadcast %cst_101 : f32 to vector<2x16xf32>
    %662 = arith.addf %661, %660 : vector<2x16xf32>
    %663 = arith.divf %661, %662 : vector<2x16xf32>
    %664 = vector.extract_strided_slice %653 {offsets = [0, 16], sizes = [2, 16], strides = [1, 1]} : vector<2x48xf32> to vector<2x16xf32>
    %665 = vector.extract_strided_slice %654 {offsets = [0, 16], sizes = [2, 16], strides = [1, 1]} : vector<2x48xf32> to vector<2x16xf32>
    %666 = arith.addf %664, %665 : vector<2x16xf32>
    %667 = arith.negf %666 : vector<2x16xf32>
    %668 = math.exp %667 : vector<2x16xf32>
    %cst_102 = arith.constant 1.000000e+00 : f32
    %669 = vector.broadcast %cst_102 : f32 to vector<2x16xf32>
    %670 = arith.addf %669, %668 : vector<2x16xf32>
    %671 = arith.divf %669, %670 : vector<2x16xf32>
    %672 = vector.extract_strided_slice %653 {offsets = [0, 32], sizes = [2, 16], strides = [1, 1]} : vector<2x48xf32> to vector<2x16xf32>
    %673 = vector.extract_strided_slice %654 {offsets = [0, 32], sizes = [2, 16], strides = [1, 1]} : vector<2x48xf32> to vector<2x16xf32>
    %674 = arith.mulf %663, %673 : vector<2x16xf32>
    %675 = arith.addf %672, %674 : vector<2x16xf32>
    %676 = math.tanh %675 : vector<2x16xf32>
    %cst_103 = arith.constant 1.000000e+00 : f32
    %677 = vector.broadcast %cst_103 : f32 to vector<2x16xf32>
    %678 = arith.subf %677, %671 : vector<2x16xf32>
    %679 = arith.mulf %678, %676 : vector<2x16xf32>
    %680 = arith.mulf %671, %655 : vector<2x16xf32>
    %681 = arith.addf %679, %680 : vector<2x16xf32>
    %682 = tpu.concatenate %218, %681, %280, %619, %342, %557, %404, %495, %466, %433, %528, %371, %590, %309, %652, %247 in 1 : vector<2x16xf32>, vector<2x16xf32>, vector<2x16xf32>, vector<2x16xf32>, vector<2x16xf32>, vector<2x16xf32>, vector<2x16xf32>, vector<2x16xf32>, vector<2x16xf32>, vector<2x16xf32>, vector<2x16xf32>, vector<2x16xf32>, vector<2x16xf32>, vector<2x16xf32>, vector<2x16xf32>, vector<2x16xf32> -> vector<2x256xf32>
    %c0_104 = arith.constant 0 : index
    %c0_105 = arith.constant 0 : index
    %683 = vector.load %arg4[%c0_104, %c0_105] : memref<2x256xf32, #tpu.memory_space<vmem>>, vector<2x256xf32>
    tpu.vector_store %arg4[%c0_104, %c0_105], %682 {strides = array<i32>} : memref<2x256xf32, #tpu.memory_space<vmem>>, vector<2x256xf32>,
    return
  }
  func.func @transform_0(%arg0: i32) -> (i32, i32) {
    %c0_i32 = arith.constant 0 : i32
    %c0_i32_0 = arith.constant 0 : i32
    %c0_i32_1 = arith.constant 0 : i32
    return %c0_i32, %c0_i32_0 : i32, i32
  }
  func.func @transform_1(%arg0: i32) -> (i32, i32) {
    %c0_i32 = arith.constant 0 : i32
    %c0_i32_0 = arith.constant 0 : i32
    %c0_i32_1 = arith.constant 0 : i32
    return %c0_i32, %c0_i32_0 : i32, i32
  }
  func.func @transform_2(%arg0: i32) -> (i32, i32) {
    %c0_i32 = arith.constant 0 : i32
    %c0_i32_0 = arith.constant 0 : i32
    %c0_i32_1 = arith.constant 0 : i32
    return %c0_i32, %c0_i32_0 : i32, i32
  }
  func.func @transform_3(%arg0: i32) -> (i32, i32) {
    %c0_i32 = arith.constant 0 : i32
    %c0_i32_0 = arith.constant 0 : i32
    %c0_i32_1 = arith.constant 0 : i32
    return %c0_i32, %c0_i32_0 : i32, i32
  }
}

</mosaic_0001>

<llo_original>
// kernel: cbhg_forward.1
$region0: #{cbhg_forward.1}
  #allocation0 [shape = 'u32[]', space=smem, size = 0x4, offset = 0x4, fixed_abs, tag = 'smem constant byte address 0x4 - core index']
  #allocation1 [shape = 'u32[144,128]{1,0:T(1,128)}', space=vmem, size = 0x12000, scoped, tag = 'internal scratch']
  %s0 = inlined_call_operand.vmem [shape: f32[18,128], index: 0, kind: input, shape index: {}]
  %s1 = inlined_call_operand.hbm [shape: f32[416,128], index: 1, kind: input, shape index: {}]
  %s2 = inlined_call_operand.vmem [shape: f32[8,128], index: 2, kind: input, shape index: {}]
  %s3 = inlined_call_operand.vmem [shape: f32[2,256], index: 3, kind: output, shape index: {}]
  %s4 = sld [smem:[#allocation0]]
  $region26: #{cbhg_forward.1} parent=0
    _
  %s6 = ssub.s32 1, %s4
  %s7 = scalar_select 0, %s6, %s4
  $region1: #{cbhg_forward.1} parent=0
    #allocation2 [shape = 'u8[212992]{0}', space=vmem, size = 0x34000, scoped, tag = 'input window, operand 1, single buffered']
    #allocation3 [shape = 's32[1]{0}', space=sflag, size = 0x4, scoped, tag = 'scoped memory for cbhg_forward.1']
    %8 = vsyncpa [#allocation3], 0
    // Predicated region
    $region2: #{cbhg_forward.1} parent=1 // pred_check
      _
    $region3: #{cbhg_forward.1} parent=1 // pred_check_branch
      %10 = sbr.rel (0) target = $region5
    $region4: #{cbhg_forward.1} parent=1 // pred_region
      _
    $region5: #{cbhg_forward.1} parent=1 // pred_fallthru
      _
    // Predicated region
    $region6: #{cbhg_forward.1} parent=1 // pred_check
      _
    $region7: #{cbhg_forward.1} parent=1 // pred_check_branch
      %12 = sbr.rel (0) target = $region9
    $region8: #{cbhg_forward.1} parent=1 // pred_region
      %s14 = ssub.s32 6656, 6656
      %15 = vsyncadd [#allocation3], %s14
      %s16 = sshll.u32 [#allocation2], 4
      %s17 = int_to_ptr.vmem [resolvable:$true] %s16
      %22 = dma.hbm_to_vmem [thread:$0]  %s1, 6656, %s17, [#allocation3], 128, 128, 8
    $region9: #{cbhg_forward.1} parent=1 // pred_fallthru
      _
    // Predicated region
    $region10: #{cbhg_forward.1} parent=1 // pred_check
      _
    $region11: #{cbhg_forward.1} parent=1 // pred_check_branch
      %24 = sbr.rel (0) target = $region13
    $region12: #{cbhg_forward.1} parent=1 // pred_region
      _
    $region13: #{cbhg_forward.1} parent=1 // pred_fallthru
      _
    // Predicated region
    $region14: #{cbhg_forward.1} parent=1 // pred_check
      _
    $region15: #{cbhg_forward.1} parent=1 // pred_check_branch
      %26 = sbr.rel (0) target = $region17
    $region16: #{cbhg_forward.1} parent=1 // pred_region
      %27 = dma.done [#allocation3], 6656
    $region17: #{cbhg_forward.1} parent=1 // pred_fallthru
      _
    %v28 = vld [vmem:[%s2] sm:$0xff]
    %v29 = vlaneseq
    %v30 = vshrl.u32 %v29, 7
    %v31 = vadd.s32 %v30, 8
    %v32 = vadd.s32 %v30, 16
    %vm33 = vcmp.ge.s32.totalorder %v30, 16
    %vm34 = vcmp.ge.s32.totalorder %v31, 16
    %vm35 = vcmp.ge.s32.totalorder %v32, 16
    %v36 = vsel %vm33, 1, 0
    %v37 = vsel %vm34, 1, 0
    %v38 = vsel %vm35, 1, 0
    %v39 = vcvt.s32.f32 %v36
    %v40 = vcvt.s32.f32 %v37
    %v41 = vcvt.s32.f32 %v38
    %vm42 = vcmp.lt.s32.totalorder %v30, 2
    %vm43 = vcmp.lt.s32.totalorder %v31, 2
    %vm44 = vcmp.ge.s32.totalorder %v30, 14
    %vm45 = vcmp.ge.s32.totalorder %v31, 14
    %v46 = vld [vmem:[%s0] sm:$0xff]
    %v47 = vld [vmem:[%s0 + $0x8] sm:$0xff]
    %v48 = vld [vmem:[%s0 + $0x10] sm:$0x3]
    %v49 = vld [vmem:[#allocation2] sm:$0xff]
    %v50 = vld [vmem:[#allocation2 + $0x8] sm:$0xff]
    %v51 = vld [vmem:[#allocation2 + $0x10] sm:$0xff]
    %v52 = vld [vmem:[#allocation2 + $0x18] sm:$0xff]
    %v53 = vld [vmem:[#allocation2 + $0x20] sm:$0xff]
    %v54 = vld [vmem:[#allocation2 + $0x28] sm:$0xff]
    %v55 = vld [vmem:[#allocation2 + $0x30] sm:$0xff]
    %v56 = vld [vmem:[#allocation2 + $0x38] sm:$0xff]
    %v57 = vld [vmem:[#allocation2 + $0x40] sm:$0xff]
    %v58 = vld [vmem:[#allocation2 + $0x48] sm:$0xff]
    %v59 = vld [vmem:[#allocation2 + $0x50] sm:$0xff]
    %v60 = vld [vmem:[#allocation2 + $0x58] sm:$0xff]
    %v61 = vld [vmem:[#allocation2 + $0x60] sm:$0xff]
    %v62 = vld [vmem:[#allocation2 + $0x68] sm:$0xff]
    %v63 = vld [vmem:[#allocation2 + $0x70] sm:$0xff]
    %v64 = vld [vmem:[#allocation2 + $0x78] sm:$0xff]
    %65 = vmatprep.subr.mxu0 0.0
    %66 = vmatpush1.msra.mxu0 %v49
    %67 = vmatprep.subr.mxu0 0.0
    %68 = vmatpush1.msra.mxu0 %v50
    %69 = vmatprep.subr.mxu0 0.0
    %70 = vmatpush1.msra.mxu0 %v51
    %71 = vmatprep.subr.mxu0 0.0
    %72 = vmatpush1.msra.mxu0 %v52
    %73 = vmatprep.subr.mxu0 0.0
    %74 = vmatpush1.msra.mxu0 %v53
    %75 = vmatprep.subr.mxu0 0.0
    %76 = vmatpush1.msra.mxu0 %v54
    %77 = vmatprep.subr.mxu0 0.0
    %78 = vmatpush1.msra.mxu0 %v55
    %79 = vmatprep.subr.mxu0 0.0
    %80 = vmatpush1.msra.mxu0 %v56
    %81 = vmatprep.subr.mxu0 0.0
    %82 = vmatpush1.msra.mxu0 %v57
    %83 = vmatprep.subr.mxu0 0.0
    %84 = vmatpush1.msra.mxu0 %v58
    %85 = vmatprep.subr.mxu0 0.0
    %86 = vmatpush1.msra.mxu0 %v59
    %87 = vmatprep.subr.mxu0 0.0
    %88 = vmatpush1.msra.mxu0 %v60
    %89 = vmatprep.subr.mxu0 0.0
    %90 = vmatpush1.msra.mxu0 %v61
    %91 = vmatprep.subr.mxu0 0.0
    %92 = vmatpush1.msra.mxu0 %v62
    %93 = vmatprep.subr.mxu0 0.0
    %94 = vmatpush1.msra.mxu0 %v63
    %95 = vmatprep.subr.mxu0 0.0
    %96 = vmatpush1.msra.mxu0 %v64
    %97 = vmatprep.subr.mxu0 0.0
    %98 = vmatpush1.msra.mxu0 0.0
    %99 = vmatprep.subr.mxu0 0.0
    %100 = vmatpush1.msra.mxu0 0.0
    %101 = vmatprep.subr.mxu0 0.0
    %102 = vmatpush1.msra.mxu0 0.0
    %103 = vmatprep.subr.mxu0 0.0
    %104 = vmatpush1.msra.mxu0 0.0
    %105 = vmatprep.subr.mxu0 0.0
    %106 = vmatpush1.msra.mxu0 0.0
    %107 = vmatprep.subr.mxu0 0.0
    %108 = vmatpush1.msra.mxu0 0.0
    %109 = vmatprep.subr.mxu0 0.0
    %110 = vmatpush1.msra.mxu0 0.0
    %111 = vmatprep.subr.mxu0 0.0
    %112 = vmatpush1.msra.mxu0 0.0
    %113 = vmatprep.subr.mxu0 0.0
    %114 = vmatpush1.msra.mxu0 0.0
    %115 = vmatprep.subr.mxu0 0.0
    %116 = vmatpush1.msra.mxu0 0.0
    %117 = vmatprep.subr.mxu0 0.0
    %118 = vmatpush1.msra.mxu0 0.0
    %119 = vmatprep.subr.mxu0 0.0
    %120 = vmatpush1.msra.mxu0 0.0
    %121 = vmatprep.subr.mxu0 0.0
    %122 = vmatpush1.msra.mxu0 0.0
    %123 = vmatprep.subr.mxu0 0.0
    %124 = vmatpush1.msra.mxu0 0.0
    %125 = vmatprep.subr.mxu0 0.0
    %126 = vmatpush1.msra.mxu0 0.0
    %127 = vmatprep.subr.mxu0 0.0
    %128 = vmatpush1.msra.mxu0 0.0
    %129 = vmatprep.mubr.f32.mxu0 0.0
    %130 = vmatmul.mubr.f32.gmra.mrb[0].mxu0 %v46
    %v131 = vpop.f32.mrb[0].mxu0
    %v132 = vadd.f32 0.0, %v131
    %v133 = vpop.f32.mrb[0].mxu0
    %134 = vmatprep.mubr.f32.mxu0 0.0
    %135 = vmatmul.mubr.f32.gmra.mrb[0].mxu0 %v47
    %v136 = vpop.f32.mrb[0].mxu0
    %v137 = vadd.f32 0.0, %v136
    %v138 = vpop.f32.mrb[0].mxu0
    %139 = vmatprep.mubr.f32.mxu0 0.0
    %140 = vmatmul.mubr.f32.gmra.mrb[0].mxu0 %v48
    %v141 = vpop.f32.mrb[0].mxu0
    %v142 = vadd.f32 0.0, %v141
    %v143 = vpop.f32.mrb[0].mxu0
    %144 = vdwg.mxu0
    %v145 = vmax.f32 %v132, 0.0
    %v146 = vmax.f32 %v137, 0.0
    %v147 = vmax.f32 %v142, 0.0
    %v148 = vlaneseq
    %v149 = vshrl.u32 %v148, 7
    %v150 = vsub.s32 7, %v149
    %v151 = vrot.slane %v28, %v150
    %v152 = vmul.f32 %v39, %v151
    %v153 = vmul.f32 %v40, %v151
    %v154 = vmul.f32 %v41, %v151
    %v155 = vsub.f32 1.0, %v152
    %v156 = vsub.f32 1.0, %v153
    %v157 = vsub.f32 1.0, %v154
    %v158 = vmul.f32 %v145, %v155
    %v159 = vmul.f32 %v146, %v156
    %v160 = vmul.f32 %v147, %v157
    %v161 = vadd.f32 %v158, %v159
    %vm162 = vcmask 1041408
    %v163 = vsel %vm162, %v160, 0.0
    %v164 = vadd.f32 %v161, %v163
    %v165 = vrot.slane %v164, 4
    %v166 = vadd.f32 %v164, %v165
    %v167 = vrot.slane %v166, 2
    %v168 = vadd.f32 %v166, %v167
    %v169 = vrot.slane %v168, 1
    %v170 = vadd.f32 %v168, %v169
    %v171 = vmul.f32 %v170, %v28
    %v172 = vlaneseq
    %v173 = vshrl.u32 %v172, 7
    %v174 = vsub.s32 6, %v173
    %v175 = vrot.slane %v171, %v174
    %v176 = vsub.f32 %v145, %v175
    %v177 = vsub.f32 %v146, %v175
    %v178 = vsub.f32 %v147, %v175
    %v179 = vmul.f32 %v176, %v155
    %v180 = vmul.f32 %v177, %v156
    %v181 = vmul.f32 %v178, %v157
    %v182 = vmul.f32 %v179, %v179
    %v183 = vmul.f32 %v180, %v180
    %v184 = vmul.f32 %v181, %v181
    %v185 = vadd.f32 %v182, %v183
    %v186 = vsel %vm162, %v184, 0.0
    %v187 = vadd.f32 %v185, %v186
    %v188 = vrot.slane %v187, 4
    %v189 = vadd.f32 %v187, %v188
    %v190 = vrot.slane %v189, 2
    %v191 = vadd.f32 %v189, %v190
    %v192 = vrot.slane %v191, 1
    %v193 = vadd.f32 %v191, %v192
    %v194 = vmul.f32 %v193, %v28
    %v195 = vlaneseq
    %v196 = vshrl.u32 %v195, 7
    %v197 = vsub.s32 0, %v196
    %v198 = vrot.slane %v28, %v197
    %v199 = vmul.f32 %v198, %v176
    %v200 = vmul.f32 %v198, %v177
    %v201 = vadd.f32 %v194, 1e-05
    %v202 = vrsqrt.pop %v201
    %v203 = vlaneseq
    %v204 = vshrl.u32 %v203, 7
    %v205 = vsub.s32 6, %v204
    %v206 = vrot.slane %v202, %v205
    %v207 = vmul.f32 %v199, %v206
    %v208 = vmul.f32 %v200, %v206
    %v209 = vlaneseq
    %v210 = vshrl.u32 %v209, 7
    %v211 = vsub.s32 1, %v210
    %v212 = vrot.slane %v28, %v211
    %v213 = vadd.f32 %v207, %v212
    %v214 = vadd.f32 %v208, %v212
    %v215 = vrot.slane %v213, 6
    %v216 = vrot.slane %v214, 6
    %v217 = vsel %vm42, %v215, %v216
    %v218 = vsel %vm42, %v216, %v215
    %v219 = vsel %vm42, 1, 0
    %v220 = vsel %vm43, 1, 0
    %vm221 = vcmp.eq.s32.totalorder %v219, 1
    %vm222 = vcmp.eq.s32.totalorder %v220, 1
    %v223 = vsel %vm221, %v213, %v218
    %v224 = vsel %vm222, %v214, %v217
    %v225 = vmax.f32 %v213, %v223
    %v226 = vmax.f32 %v214, %v224
    %v227 = vld [vmem:[#allocation2 + $0x80] sm:$0xff]
    %v228 = vld [vmem:[#allocation2 + $0x88] sm:$0xff]
    %v229 = vld [vmem:[#allocation2 + $0x90] sm:$0xff]
    %v230 = vld [vmem:[#allocation2 + $0x98] sm:$0xff]
    %v231 = vld [vmem:[#allocation2 + $0xa0] sm:$0xff]
    %v232 = vld [vmem:[#allocation2 + $0xa8] sm:$0xff]
    %v233 = vld [vmem:[#allocation2 + $0xb0] sm:$0xff]
    %v234 = vld [vmem:[#allocation2 + $0xb8] sm:$0xff]
    %v235 = vld [vmem:[#allocation2 + $0xc0] sm:$0xff]
    %v236 = vld [vmem:[#allocation2 + $0xc8] sm:$0xff]
    %v237 = vld [vmem:[#allocation2 + $0xd0] sm:$0xff]
    %v238 = vld [vmem:[#allocation2 + $0xd8] sm:$0xff]
    %v239 = vld [vmem:[#allocation2 + $0xe0] sm:$0xff]
    %v240 = vld [vmem:[#allocation2 + $0xe8] sm:$0xff]
    %v241 = vld [vmem:[#allocation2 + $0xf0] sm:$0xff]
    %v242 = vld [vmem:[#allocation2 + $0xf8] sm:$0xff]
    %243 = vmatprep.subr.mxu0 0.0
    %244 = vmatpush1.msra.mxu0 %v227
    %245 = vmatprep.subr.mxu0 0.0
    %246 = vmatpush1.msra.mxu0 %v228
    %247 = vmatprep.subr.mxu0 0.0
    %248 = vmatpush1.msra.mxu0 %v229
    %249 = vmatprep.subr.mxu0 0.0
    %250 = vmatpush1.msra.mxu0 %v230
    %251 = vmatprep.subr.mxu0 0.0
    %252 = vmatpush1.msra.mxu0 %v231
    %253 = vmatprep.subr.mxu0 0.0
    %254 = vmatpush1.msra.mxu0 %v232
    %255 = vmatprep.subr.mxu0 0.0
    %256 = vmatpush1.msra.mxu0 %v233
    %257 = vmatprep.subr.mxu0 0.0
    %258 = vmatpush1.msra.mxu0 %v234
    %259 = vmatprep.subr.mxu0 0.0
    %260 = vmatpush1.msra.mxu0 %v235
    %261 = vmatprep.subr.mxu0 0.0
    %262 = vmatpush1.msra.mxu0 %v236
    %263 = vmatprep.subr.mxu0 0.0
    %264 = vmatpush1.msra.mxu0 %v237
    %265 = vmatprep.subr.mxu0 0.0
    %266 = vmatpush1.msra.mxu0 %v238
    %267 = vmatprep.subr.mxu0 0.0
    %268 = vmatpush1.msra.mxu0 %v239
    %269 = vmatprep.subr.mxu0 0.0
    %270 = vmatpush1.msra.mxu0 %v240
    %271 = vmatprep.subr.mxu0 0.0
    %272 = vmatpush1.msra.mxu0 %v241
    %273 = vmatprep.subr.mxu0 0.0
    %274 = vmatpush1.msra.mxu0 %v242
    %275 = vmatprep.subr.mxu0 0.0
    %276 = vmatpush1.msra.mxu0 0.0
    %277 = vmatprep.subr.mxu0 0.0
    %278 = vmatpush1.msra.mxu0 0.0
    %279 = vmatprep.subr.mxu0 0.0
    %280 = vmatpush1.msra.mxu0 0.0
    %281 = vmatprep.subr.mxu0 0.0
    %282 = vmatpush1.msra.mxu0 0.0
    %283 = vmatprep.subr.mxu0 0.0
    %284 = vmatpush1.msra.mxu0 0.0
    %285 = vmatprep.subr.mxu0 0.0
    %286 = vmatpush1.msra.mxu0 0.0
    %287 = vmatprep.subr.mxu0 0.0
    %288 = vmatpush1.msra.mxu0 0.0
    %289 = vmatprep.subr.mxu0 0.0
    %290 = vmatpush1.msra.mxu0 0.0
    %291 = vmatprep.subr.mxu0 0.0
    %292 = vmatpush1.msra.mxu0 0.0
    %293 = vmatprep.subr.mxu0 0.0
    %294 = vmatpush1.msra.mxu0 0.0
    %295 = vmatprep.subr.mxu0 0.0
    %296 = vmatpush1.msra.mxu0 0.0
    %297 = vmatprep.subr.mxu0 0.0
    %298 = vmatpush1.msra.mxu0 0.0
    %299 = vmatprep.subr.mxu0 0.0
    %300 = vmatpush1.msra.mxu0 0.0
    %301 = vmatprep.subr.mxu0 0.0
    %302 = vmatpush1.msra.mxu0 0.0
    %303 = vmatprep.subr.mxu0 0.0
    %304 = vmatpush1.msra.mxu0 0.0
    %305 = vmatprep.subr.mxu0 0.0
    %306 = vmatpush1.msra.mxu0 0.0
    %307 = vmatprep.mubr.f32.mxu0 0.0
    %308 = vmatmul.mubr.f32.gmra.mrb[0].mxu0 %v225
    %v309 = vpop.f32.mrb[0].mxu0
    %v310 = vadd.f32 0.0, %v309
    %v311 = vpop.f32.mrb[0].mxu0
    %312 = vmatprep.mubr.f32.mxu0 0.0
    %313 = vmatmul.mubr.f32.gmra.mrb[0].mxu0 %v226
    %v314 = vpop.f32.mrb[0].mxu0
    %v315 = vadd.f32 0.0, %v314
    %v316 = vpop.f32.mrb[0].mxu0
    %317 = vdwg.mxu0
    %v318 = vrot.slane %v310, 6
    %v319 = vrot.slane %v315, 6
    %v320 = vsel %vm42, %v318, %v319
    %v321 = vsel %vm42, %v319, %v318
    %v322 = vsel %vm221, 0.0, %v321
    %v323 = vsel %vm222, 0.0, %v320
    %326 = vrot.lane.b32.xlu0 %v310, 96
    %v327 = vpop.permute.xlu0 %326
    %328 = vrot.lane.b32.xlu0 %v315, 96
    %v329 = vpop.permute.xlu0 %328
    %v332 = vadd.f32 %v322, %v327
    %v333 = vadd.f32 %v323, %v329
    %v334 = vrot.slane %v310, 2
    %v335 = vrot.slane %v315, 2
    %vm336 = vcmp.lt.s32.totalorder %v30, 6
    %v337 = vsel %vm336, %v334, %v335
    %v338 = vsel %vm336, %v335, %v334
    %v339 = vsel %vm44, 1, 0
    %v340 = vsel %vm45, 1, 0
    %vm341 = vcmp.eq.s32.totalorder %v339, 1
    %vm342 = vcmp.eq.s32.totalorder %v340, 1
    %v343 = vsel %vm341, 0.0, %v337
    %v344 = vsel %vm342, 0.0, %v338
    %347 = vrot.lane.b32.xlu0 %v343, 64
    %v348 = vpop.permute.xlu0 %347
    %349 = vrot.lane.b32.xlu0 %v344, 64
    %v350 = vpop.permute.xlu0 %349
    %v353 = vadd.f32 %v332, %v348
    %v354 = vadd.f32 %v333, %v350
    %v355 = vmax.f32 %v353, 0.0
    %v356 = vmax.f32 %v354, 0.0
    %vm357 = vcmask 261120
    %v358 = vsel %vm357, %v355, 0.0
    %v359 = vsel %vm357, %v356, 0.0
    %v360 = vadd.f32 %v358, %v359
    %v361 = vrot.slane %v360, 4
    %v362 = vadd.f32 %v360, %v361
    %v363 = vrot.slane %v362, 2
    %v364 = vadd.f32 %v362, %v363
    %v365 = vrot.slane %v364, 1
    %v366 = vadd.f32 %v364, %v365
    %v367 = vrcp.pop 16.0
    %v368 = vmul.f32 %v366, %v367
    %v369 = vsub.f32 %v355, %v368
    %v370 = vsub.f32 %v356, %v368
    %v371 = vmul.f32 %v369, %v369
    %v372 = vmul.f32 %v370, %v370
    %v373 = vsel %vm357, %v371, 0.0
    %v374 = vsel %vm357, %v372, 0.0
    %v375 = vadd.f32 %v373, %v374
    %v376 = vrot.slane %v375, 4
    %v377 = vadd.f32 %v375, %v376
    %v378 = vrot.slane %v377, 2
    %v379 = vadd.f32 %v377, %v378
    %v380 = vrot.slane %v379, 1
    %v381 = vadd.f32 %v379, %v380
    %v382 = vmul.f32 %v381, %v367
    %v383 = vlaneseq
    %v384 = vshrl.u32 %v383, 7
    %v385 = vsub.s32 2, %v384
    %v386 = vrot.slane %v28, %v385
    %v387 = vmul.f32 %v386, %v369
    %v388 = vmul.f32 %v386, %v370
    %v389 = vadd.f32 %v382, 1e-05
    %v390 = vrsqrt.pop %v389
    %v391 = vmul.f32 %v387, %v390
    %v392 = vmul.f32 %v388, %v390
    %394 = vrot.lane.b32.xlu0 %v386, 96
    %v395 = vpop.permute.xlu0 %394
    %v397 = vadd.f32 %v391, %v395
    %v398 = vadd.f32 %v392, %v395
    %v399 = vld [vmem:[#allocation2 + $0x100] sm:$0xff]
    %v400 = vld [vmem:[#allocation2 + $0x108] sm:$0xff]
    %v401 = vld [vmem:[#allocation2 + $0x110] sm:$0xff]
    %v402 = vld [vmem:[#allocation2 + $0x118] sm:$0xff]
    %v404 = vsel %vm357, %v397, 0
    %v407 = vsel %vm357, %v398, 0
    %409 = vmatprep.subr.mxu0 0.0
    %410 = vmatpush1.msra.mxu0 %v399
    %411 = vmatprep.subr.mxu0 0.0
    %412 = vmatpush1.msra.mxu0 %v400
    %413 = vmatprep.subr.mxu0 0.0
    %414 = vmatpush1.msra.mxu0 %v401
    %415 = vmatprep.subr.mxu0 0.0
    %416 = vmatpush1.msra.mxu0 %v402
    %417 = vmatprep.subr.mxu0 0.0
    %418 = vmatpush1.msra.mxu0 0.0
    %419 = vmatprep.subr.mxu0 0.0
    %420 = vmatpush1.msra.mxu0 0.0
    %421 = vmatprep.subr.mxu0 0.0
    %422 = vmatpush1.msra.mxu0 0.0
    %423 = vmatprep.subr.mxu0 0.0
    %424 = vmatpush1.msra.mxu0 0.0
    %425 = vmatprep.subr.mxu0 0.0
    %426 = vmatpush1.msra.mxu0 0.0
    %427 = vmatprep.subr.mxu0 0.0
    %428 = vmatpush1.msra.mxu0 0.0
    %429 = vmatprep.subr.mxu0 0.0
    %430 = vmatpush1.msra.mxu0 0.0
    %431 = vmatprep.subr.mxu0 0.0
    %432 = vmatpush1.msra.mxu0 0.0
    %433 = vmatprep.subr.mxu0 0.0
    %434 = vmatpush1.msra.mxu0 0.0
    %435 = vmatprep.subr.mxu0 0.0
    %436 = vmatpush1.msra.mxu0 0.0
    %437 = vmatprep.subr.mxu0 0.0
    %438 = vmatpush1.msra.mxu0 0.0
    %439 = vmatprep.subr.mxu0 0.0
    %440 = vmatpush1.msra.mxu0 0.0
    %441 = vmatprep.subr.mxu0 0.0
    %442 = vmatpush1.msra.mxu0 0.0
    %443 = vmatprep.subr.mxu0 0.0
    %444 = vmatpush1.msra.mxu0 0.0
    %445 = vmatprep.subr.mxu0 0.0
    %446 = vmatpush1.msra.mxu0 0.0
    %447 = vmatprep.subr.mxu0 0.0
    %448 = vmatpush1.msra.mxu0 0.0
    %449 = vmatprep.subr.mxu0 0.0
    %450 = vmatpush1.msra.mxu0 0.0
    %451 = vmatprep.subr.mxu0 0.0
    %452 = vmatpush1.msra.mxu0 0.0
    %453 = vmatprep.subr.mxu0 0.0
    %454 = vmatpush1.msra.mxu0 0.0
    %455 = vmatprep.subr.mxu0 0.0
    %456 = vmatpush1.msra.mxu0 0.0
    %457 = vmatprep.subr.mxu0 0.0
    %458 = vmatpush1.msra.mxu0 0.0
    %459 = vmatprep.subr.mxu0 0.0
    %460 = vmatpush1.msra.mxu0 0.0
    %461 = vmatprep.subr.mxu0 0.0
    %462 = vmatpush1.msra.mxu0 0.0
    %463 = vmatprep.subr.mxu0 0.0
    %464 = vmatpush1.msra.mxu0 0.0
    %465 = vmatprep.subr.mxu0 0.0
    %466 = vmatpush1.msra.mxu0 0.0
    %467 = vmatprep.subr.mxu0 0.0
    %468 = vmatpush1.msra.mxu0 0.0
    %469 = vmatprep.subr.mxu0 0.0
    %470 = vmatpush1.msra.mxu0 0.0
    %471 = vmatprep.subr.mxu0 0.0
    %472 = vmatpush1.msra.mxu0 0.0
    %473 = vmatprep.mubr.f32.mxu0 0.0
    %474 = vmatmul.mubr.f32.gmra.mrb[0].mxu0 %v404
    %v475 = vpop.f32.mrb[0].mxu0
    %v476 = vadd.f32 0.0, %v475
    %v477 = vpop.f32.mrb[0].mxu0
    %478 = vmatprep.mubr.f32.mxu0 0.0
    %479 = vmatmul.mubr.f32.gmra.mrb[0].mxu0 %v407
    %v480 = vpop.f32.mrb[0].mxu0
    %v481 = vadd.f32 0.0, %v480
    %v482 = vpop.f32.mrb[0].mxu0
    %483 = vdwg.mxu0
    %v484 = vrot.slane %v476, 6
    %v485 = vrot.slane %v481, 6
    %v486 = vsel %vm42, %v484, %v485
    %v487 = vsel %vm42, %v485, %v484
    %v488 = vsel %vm221, 0.0, %v487
    %v489 = vsel %vm222, 0.0, %v486
    %492 = vrot.lane.b32.xlu0 %v476, 96
    %v493 = vpop.permute.xlu0 %492
    %494 = vrot.lane.b32.xlu0 %v481, 96
    %v495 = vpop.permute.xlu0 %494
    %v498 = vadd.f32 %v488, %v493
    %v499 = vadd.f32 %v489, %v495
    %v500 = vrot.slane %v476, 2
    %v501 = vrot.slane %v481, 2
    %v502 = vsel %vm336, %v500, %v501
    %v503 = vsel %vm336, %v501, %v500
    %v504 = vsel %vm341, 0.0, %v502
    %v505 = vsel %vm342, 0.0, %v503
    %508 = vrot.lane.b32.xlu0 %v504, 64
    %v509 = vpop.permute.xlu0 %508
    %510 = vrot.lane.b32.xlu0 %v505, 64
    %v511 = vpop.permute.xlu0 %510
    %v514 = vadd.f32 %v498, %v509
    %v515 = vadd.f32 %v499, %v511
    %v516 = vsel %vm357, %v514, 0.0
    %v517 = vsel %vm357, %v515, 0.0
    %v518 = vadd.f32 %v516, %v517
    %v519 = vrot.slane %v518, 4
    %v520 = vadd.f32 %v518, %v519
    %v521 = vrot.slane %v520, 2
    %v522 = vadd.f32 %v520, %v521
    %v523 = vrot.slane %v522, 1
    %v524 = vadd.f32 %v522, %v523
    %v525 = vmul.f32 %v524, %v367
    %v526 = vsub.f32 %v514, %v525
    %v527 = vsub.f32 %v515, %v525
    %v528 = vmul.f32 %v526, %v526
    %v529 = vmul.f32 %v527, %v527
    %v530 = vsel %vm357, %v528, 0.0
    %v531 = vsel %vm357, %v529, 0.0
    %v532 = vadd.f32 %v530, %v531
    %v533 = vrot.slane %v532, 4
    %v534 = vadd.f32 %v532, %v533
    %v535 = vrot.slane %v534, 2
    %v536 = vadd.f32 %v534, %v535
    %v537 = vrot.slane %v536, 1
    %v538 = vadd.f32 %v536, %v537
    %v539 = vmul.f32 %v538, %v367
    %542 = vrot.lane.b32.xlu0 %v526, 64
    %v543 = vpop.permute.xlu0 %542
    %544 = vrot.lane.b32.xlu0 %v527, 64
    %v545 = vpop.permute.xlu0 %544
    %v548 = vmul.f32 %v386, %v543
    %v549 = vmul.f32 %v386, %v545
    %v550 = vadd.f32 %v539, 1e-05
    %v551 = vrsqrt.pop %v550
    %553 = vrot.lane.b32.xlu0 %v551, 64
    %v554 = vpop.permute.xlu0 %553
    %v556 = vmul.f32 %v548, %v554
    %v557 = vmul.f32 %v549, %v554
    %v558 = vadd.f32 %v556, %v395
    %v559 = vadd.f32 %v557, %v395
    %v560 = vadd.f32 %v558, %v46
    %v561 = vadd.f32 %v559, %v47
    %v562 = vld [vmem:[#allocation2 + $0x120] sm:$0xff]
    %v563 = vld [vmem:[#allocation2 + $0x128] sm:$0xff]
    %v564 = vld [vmem:[#allocation2 + $0x130] sm:$0xff]
    %v565 = vld [vmem:[#allocation2 + $0x138] sm:$0xff]
    %568 = vrot.lane.b32.xlu0 %v560, 64
    %v569 = vpop.permute.xlu0 %568
    %570 = vrot.lane.b32.xlu0 %v561, 64
    %v571 = vpop.permute.xlu0 %570
    %v572 = vsel %vm357, %v569, 0
    %v574 = vsel %vm357, %v571, 0
    %576 = vmatprep.subr.mxu0 0.0
    %577 = vmatpush1.msra.mxu0 %v562
    %578 = vmatprep.subr.mxu0 0.0
    %579 = vmatpush1.msra.mxu0 %v563
    %580 = vmatprep.subr.mxu0 0.0
    %581 = vmatpush1.msra.mxu0 %v564
    %582 = vmatprep.subr.mxu0 0.0
    %583 = vmatpush1.msra.mxu0 %v565
    %584 = vmatprep.subr.mxu0 0.0
    %585 = vmatpush1.msra.mxu0 0.0
    %586 = vmatprep.subr.mxu0 0.0
    %587 = vmatpush1.msra.mxu0 0.0
    %588 = vmatprep.subr.mxu0 0.0
    %589 = vmatpush1.msra.mxu0 0.0
    %590 = vmatprep.subr.mxu0 0.0
    %591 = vmatpush1.msra.mxu0 0.0
    %592 = vmatprep.subr.mxu0 0.0
    %593 = vmatpush1.msra.mxu0 0.0
    %594 = vmatprep.subr.mxu0 0.0
    %595 = vmatpush1.msra.mxu0 0.0
    %596 = vmatprep.subr.mxu0 0.0
    %597 = vmatpush1.msra.mxu0 0.0
    %598 = vmatprep.subr.mxu0 0.0
    %599 = vmatpush1.msra.mxu0 0.0
    %600 = vmatprep.subr.mxu0 0.0
    %601 = vmatpush1.msra.mxu0 0.0
    %602 = vmatprep.subr.mxu0 0.0
    %603 = vmatpush1.msra.mxu0 0.0
    %604 = vmatprep.subr.mxu0 0.0
    %605 = vmatpush1.msra.mxu0 0.0
    %606 = vmatprep.subr.mxu0 0.0
    %607 = vmatpush1.msra.mxu0 0.0
    %608 = vmatprep.subr.mxu0 0.0
    %609 = vmatpush1.msra.mxu0 0.0
    %610 = vmatprep.subr.mxu0 0.0
    %611 = vmatpush1.msra.mxu0 0.0
    %612 = vmatprep.subr.mxu0 0.0
    %613 = vmatpush1.msra.mxu0 0.0
    %614 = vmatprep.subr.mxu0 0.0
    %615 = vmatpush1.msra.mxu0 0.0
    %616 = vmatprep.subr.mxu0 0.0
    %617 = vmatpush1.msra.mxu0 0.0
    %618 = vmatprep.subr.mxu0 0.0
    %619 = vmatpush1.msra.mxu0 0.0
    %620 = vmatprep.subr.mxu0 0.0
    %621 = vmatpush1.msra.mxu0 0.0
    %622 = vmatprep.subr.mxu0 0.0
    %623 = vmatpush1.msra.mxu0 0.0
    %624 = vmatprep.subr.mxu0 0.0
    %625 = vmatpush1.msra.mxu0 0.0
    %626 = vmatprep.subr.mxu0 0.0
    %627 = vmatpush1.msra.mxu0 0.0
    %628 = vmatprep.subr.mxu0 0.0
    %629 = vmatpush1.msra.mxu0 0.0
    %630 = vmatprep.subr.mxu0 0.0
    %631 = vmatpush1.msra.mxu0 0.0
    %632 = vmatprep.subr.mxu0 0.0
    %633 = vmatpush1.msra.mxu0 0.0
    %634 = vmatprep.subr.mxu0 0.0
    %635 = vmatpush1.msra.mxu0 0.0
    %636 = vmatprep.subr.mxu0 0.0
    %637 = vmatpush1.msra.mxu0 0.0
    %638 = vmatprep.subr.mxu0 0.0
    %639 = vmatpush1.msra.mxu0 0.0
    %640 = vmatprep.mubr.f32.mxu0 0.0
    %641 = vmatmul.mubr.f32.gmra.mrb[0].mxu0 %v572
    %v642 = vpop.f32.mrb[0].mxu0
    %v643 = vadd.f32 0.0, %v642
    %v644 = vpop.f32.mrb[0].mxu0
    %645 = vmatprep.mubr.f32.mxu0 0.0
    %646 = vmatmul.mubr.f32.gmra.mrb[0].mxu0 %v574
    %v647 = vpop.f32.mrb[0].mxu0
    %v648 = vadd.f32 0.0, %v647
    %v649 = vpop.f32.mrb[0].mxu0
    %650 = vdwg.mxu0
    %v651 = vlaneseq
    %v652 = vshrl.u32 %v651, 7
    %v653 = vsub.s32 3, %v652
    %v654 = vrot.slane %v28, %v653
    %v655 = vadd.f32 %v643, %v654
    %v656 = vadd.f32 %v648, %v654
    %v657 = vxor.u32 %v655, 2147483648
    %v658 = vxor.u32 %v656, 2147483648
    %v659 = vmul.f32 %v657, 1.442695
    %v660 = vpow.pop %v659
    %v661 = vmul.f32 %v658, 1.442695
    %v662 = vpow.pop %v661
    %v663 = vadd.f32 %v660, 1.0
    %v664 = vadd.f32 %v662, 1.0
    %v665 = vrcp.pop %v663
    %v666 = vmul.f32 1.0, %v665
    %v667 = vrcp.pop %v664
    %v668 = vmul.f32 1.0, %v667
    %v669 = vmax.f32 %v655, 0.0
    %v670 = vmax.f32 %v656, 0.0
    %673 = vrot.lane.b32.xlu0 %v669, 32
    %v674 = vpop.permute.xlu0 %673
    %675 = vrot.lane.b32.xlu0 %v670, 32
    %v676 = vpop.permute.xlu0 %675
    %v679 = vmul.f32 %v666, %v674
    %v680 = vmul.f32 %v668, %v676
    %v681 = vsub.f32 1.0, %v666
    %v682 = vsub.f32 1.0, %v668
    %683 = vrot.lane.b32.xlu0 %v560, 96
    %v684 = vpop.permute.xlu0 %683
    %685 = vrot.lane.b32.xlu0 %v561, 96
    %v686 = vpop.permute.xlu0 %685
    %v689 = vmul.f32 %v681, %v684
    %v690 = vmul.f32 %v682, %v686
    %v691 = vadd.f32 %v679, %v689
    %v692 = vadd.f32 %v680, %v690
    %v693 = vld [vmem:[#allocation2 + $0x140] sm:$0xff]
    %v694 = vld [vmem:[#allocation2 + $0x148] sm:$0xff]
    %v695 = vld [vmem:[#allocation2 + $0x150] sm:$0xff]
    %v696 = vld [vmem:[#allocation2 + $0x158] sm:$0xff]
    %699 = vrot.lane.b32.xlu0 %v691, 96
    %v700 = vpop.permute.xlu0 %699
    %701 = vrot.lane.b32.xlu0 %v692, 96
    %v702 = vpop.permute.xlu0 %701
    %v703 = vsel %vm357, %v700, 0
    %v705 = vsel %vm357, %v702, 0
    %707 = vmatprep.subr.mxu0 0.0
    %708 = vmatpush1.msra.mxu0 %v693
    %709 = vmatprep.subr.mxu0 0.0
    %710 = vmatpush1.msra.mxu0 %v694
    %711 = vmatprep.subr.mxu0 0.0
    %712 = vmatpush1.msra.mxu0 %v695
    %713 = vmatprep.subr.mxu0 0.0
    %714 = vmatpush1.msra.mxu0 %v696
    %715 = vmatprep.subr.mxu0 0.0
    %716 = vmatpush1.msra.mxu0 0.0
    %717 = vmatprep.subr.mxu0 0.0
    %718 = vmatpush1.msra.mxu0 0.0
    %719 = vmatprep.subr.mxu0 0.0
    %720 = vmatpush1.msra.mxu0 0.0
    %721 = vmatprep.subr.mxu0 0.0
    %722 = vmatpush1.msra.mxu0 0.0
    %723 = vmatprep.subr.mxu0 0.0
    %724 = vmatpush1.msra.mxu0 0.0
    %725 = vmatprep.subr.mxu0 0.0
    %726 = vmatpush1.msra.mxu0 0.0
    %727 = vmatprep.subr.mxu0 0.0
    %728 = vmatpush1.msra.mxu0 0.0
    %729 = vmatprep.subr.mxu0 0.0
    %730 = vmatpush1.msra.mxu0 0.0
    %731 = vmatprep.subr.mxu0 0.0
    %732 = vmatpush1.msra.mxu0 0.0
    %733 = vmatprep.subr.mxu0 0.0
    %734 = vmatpush1.msra.mxu0 0.0
    %735 = vmatprep.subr.mxu0 0.0
    %736 = vmatpush1.msra.mxu0 0.0
    %737 = vmatprep.subr.mxu0 0.0
    %738 = vmatpush1.msra.mxu0 0.0
    %739 = vmatprep.subr.mxu0 0.0
    %740 = vmatpush1.msra.mxu0 0.0
    %741 = vmatprep.subr.mxu0 0.0
    %742 = vmatpush1.msra.mxu0 0.0
    %743 = vmatprep.subr.mxu0 0.0
    %744 = vmatpush1.msra.mxu0 0.0
    %745 = vmatprep.subr.mxu0 0.0
    %746 = vmatpush1.msra.mxu0 0.0
    %747 = vmatprep.subr.mxu0 0.0
    %748 = vmatpush1.msra.mxu0 0.0
    %749 = vmatprep.subr.mxu0 0.0
    %750 = vmatpush1.msra.mxu0 0.0
    %751 = vmatprep.subr.mxu0 0.0
    %752 = vmatpush1.msra.mxu0 0.0
    %753 = vmatprep.subr.mxu0 0.0
    %754 = vmatpush1.msra.mxu0 0.0
    %755 = vmatprep.subr.mxu0 0.0
    %756 = vmatpush1.msra.mxu0 0.0
    %757 = vmatprep.subr.mxu0 0.0
    %758 = vmatpush1.msra.mxu0 0.0
    %759 = vmatprep.subr.mxu0 0.0
    %760 = vmatpush1.msra.mxu0 0.0
    %761 = vmatprep.subr.mxu0 0.0
    %762 = vmatpush1.msra.mxu0 0.0
    %763 = vmatprep.subr.mxu0 0.0
    %764 = vmatpush1.msra.mxu0 0.0
    %765 = vmatprep.subr.mxu0 0.0
    %766 = vmatpush1.msra.mxu0 0.0
    %767 = vmatprep.subr.mxu0 0.0
    %768 = vmatpush1.msra.mxu0 0.0
    %769 = vmatprep.subr.mxu0 0.0
    %770 = vmatpush1.msra.mxu0 0.0
    %771 = vmatprep.mubr.f32.mxu0 0.0
    %772 = vmatmul.mubr.f32.gmra.mrb[0].mxu0 %v703
    %v773 = vpop.f32.mrb[0].mxu0
    %v774 = vadd.f32 0.0, %v773
    %v775 = vpop.f32.mrb[0].mxu0
    %776 = vmatprep.mubr.f32.mxu0 0.0
    %777 = vmatmul.mubr.f32.gmra.mrb[0].mxu0 %v705
    %v778 = vpop.f32.mrb[0].mxu0
    %v779 = vadd.f32 0.0, %v778
    %v780 = vpop.f32.mrb[0].mxu0
    %781 = vdwg.mxu0
    %783 = vrot.lane.b32.xlu0 %v654, 64
    %v784 = vpop.permute.xlu0 %783
    %v786 = vadd.f32 %v774, %v784
    %v787 = vadd.f32 %v779, %v784
    %v788 = vxor.u32 %v786, 2147483648
    %v789 = vxor.u32 %v787, 2147483648
    %v790 = vmul.f32 %v788, 1.442695
    %v791 = vpow.pop %v790
    %v792 = vmul.f32 %v789, 1.442695
    %v793 = vpow.pop %v792
    %v794 = vadd.f32 %v791, 1.0
    %v795 = vadd.f32 %v793, 1.0
    %v796 = vrcp.pop %v794
    %v797 = vmul.f32 1.0, %v796
    %v798 = vrcp.pop %v795
    %v799 = vmul.f32 1.0, %v798
    %v800 = vmax.f32 %v786, 0.0
    %v801 = vmax.f32 %v787, 0.0
    %804 = vrot.lane.b32.xlu0 %v800, 32
    %v805 = vpop.permute.xlu0 %804
    %806 = vrot.lane.b32.xlu0 %v801, 32
    %v807 = vpop.permute.xlu0 %806
    %v810 = vmul.f32 %v797, %v805
    %v811 = vmul.f32 %v799, %v807
    %v812 = vsub.f32 1.0, %v797
    %v813 = vsub.f32 1.0, %v799
    %v814 = vmul.f32 %v812, %v691
    %v815 = vmul.f32 %v813, %v692
    %v816 = vadd.f32 %v810, %v814
    %v817 = vadd.f32 %v811, %v815
    %v818 = vld [vmem:[#allocation2 + $0x160] sm:$0xff]
    %v819 = vld [vmem:[#allocation2 + $0x168] sm:$0xff]
    %v820 = vld [vmem:[#allocation2 + $0x170] sm:$0xff]
    %v821 = vld [vmem:[#allocation2 + $0x178] sm:$0xff]
    %v822 = vlaneseq
    %v823 = vshrl.u32 %v822, 7
    %v824 = vsub.s32 4, %v823
    %v825 = vrot.slane %v28, %v824
    %828 = vrot.lane.b32.xlu0 %v816, 96
    %v829 = vpop.permute.xlu0 %828
    %830 = vrot.lane.b32.xlu0 %v817, 96
    %v831 = vpop.permute.xlu0 %830
    %v832 = vsel %vm357, %v829, 0
    %v834 = vsel %vm357, %v831, 0
    %836 = vmatprep.subr.mxu0 0.0
    %837 = vmatpush1.msra.mxu0 %v818
    %838 = vmatprep.subr.mxu0 0.0
    %839 = vmatpush1.msra.mxu0 %v819
    %840 = vmatprep.subr.mxu0 0.0
    %841 = vmatpush1.msra.mxu0 %v820
    %842 = vmatprep.subr.mxu0 0.0
    %843 = vmatpush1.msra.mxu0 %v821
    %844 = vmatprep.subr.mxu0 0.0
    %845 = vmatpush1.msra.mxu0 0.0
    %846 = vmatprep.subr.mxu0 0.0
    %847 = vmatpush1.msra.mxu0 0.0
    %848 = vmatprep.subr.mxu0 0.0
    %849 = vmatpush1.msra.mxu0 0.0
    %850 = vmatprep.subr.mxu0 0.0
    %851 = vmatpush1.msra.mxu0 0.0
    %852 = vmatprep.subr.mxu0 0.0
    %853 = vmatpush1.msra.mxu0 0.0
    %854 = vmatprep.subr.mxu0 0.0
    %855 = vmatpush1.msra.mxu0 0.0
    %856 = vmatprep.subr.mxu0 0.0
    %857 = vmatpush1.msra.mxu0 0.0
    %858 = vmatprep.subr.mxu0 0.0
    %859 = vmatpush1.msra.mxu0 0.0
    %860 = vmatprep.subr.mxu0 0.0
    %861 = vmatpush1.msra.mxu0 0.0
    %862 = vmatprep.subr.mxu0 0.0
    %863 = vmatpush1.msra.mxu0 0.0
    %864 = vmatprep.subr.mxu0 0.0
    %865 = vmatpush1.msra.mxu0 0.0
    %866 = vmatprep.subr.mxu0 0.0
    %867 = vmatpush1.msra.mxu0 0.0
    %868 = vmatprep.subr.mxu0 0.0
    %869 = vmatpush1.msra.mxu0 0.0
    %870 = vmatprep.subr.mxu0 0.0
    %871 = vmatpush1.msra.mxu0 0.0
    %872 = vmatprep.subr.mxu0 0.0
    %873 = vmatpush1.msra.mxu0 0.0
    %874 = vmatprep.subr.mxu0 0.0
    %875 = vmatpush1.msra.mxu0 0.0
    %876 = vmatprep.subr.mxu0 0.0
    %877 = vmatpush1.msra.mxu0 0.0
    %878 = vmatprep.subr.mxu0 0.0
    %879 = vmatpush1.msra.mxu0 0.0
    %880 = vmatprep.subr.mxu0 0.0
    %881 = vmatpush1.msra.mxu0 0.0
    %882 = vmatprep.subr.mxu0 0.0
    %883 = vmatpush1.msra.mxu0 0.0
    %884 = vmatprep.subr.mxu0 0.0
    %885 = vmatpush1.msra.mxu0 0.0
    %886 = vmatprep.subr.mxu0 0.0
    %887 = vmatpush1.msra.mxu0 0.0
    %888 = vmatprep.subr.mxu0 0.0
    %889 = vmatpush1.msra.mxu0 0.0
    %890 = vmatprep.subr.mxu0 0.0
    %891 = vmatpush1.msra.mxu0 0.0
    %892 = vmatprep.subr.mxu0 0.0
    %893 = vmatpush1.msra.mxu0 0.0
    %894 = vmatprep.subr.mxu0 0.0
    %895 = vmatpush1.msra.mxu0 0.0
    %896 = vmatprep.subr.mxu0 0.0
    %897 = vmatpush1.msra.mxu0 0.0
    %898 = vmatprep.subr.mxu0 0.0
    %899 = vmatpush1.msra.mxu0 0.0
    %900 = vmatprep.mubr.f32.mxu0 0.0
    %901 = vmatmul.mubr.f32.gmra.mrb[0].mxu0 %v832
    %v902 = vpop.f32.mrb[0].mxu0
    %v903 = vadd.f32 %v825, %v902
    %v904 = vpop.f32.mrb[0].mxu0
    %905 = vmatprep.mubr.f32.mxu0 0.0
    %906 = vmatmul.mubr.f32.gmra.mrb[0].mxu0 %v834
    %v907 = vpop.f32.mrb[0].mxu0
    %v908 = vadd.f32 %v825, %v907
    %v909 = vpop.f32.mrb[0].mxu0
    %910 = vdwg.mxu0
    %v911 = vld [vmem:[#allocation2 + $0x180] sm:$0xff]
    %v912 = vld [vmem:[#allocation2 + $0x188] sm:$0xff]
    %v913 = vld [vmem:[#allocation2 + $0x190] sm:$0xff]
    %v914 = vld [vmem:[#allocation2 + $0x198] sm:$0xff]
    %v915 = vlaneseq
    %v916 = vshrl.u32 %v915, 7
    %v917 = vsub.s32 5, %v916
    %v918 = vrot.slane %v28, %v917
    %v920 = vsel %vm357, 0.0, 0
    %922 = vmatprep.subr.mxu0 0.0
    %923 = vmatpush1.msra.mxu0 %v911
    %924 = vmatprep.subr.mxu0 0.0
    %925 = vmatpush1.msra.mxu0 %v912
    %926 = vmatprep.subr.mxu0 0.0
    %927 = vmatpush1.msra.mxu0 %v913
    %928 = vmatprep.subr.mxu0 0.0
    %929 = vmatpush1.msra.mxu0 %v914
    %930 = vmatprep.subr.mxu0 0.0
    %931 = vmatpush1.msra.mxu0 0.0
    %932 = vmatprep.subr.mxu0 0.0
    %933 = vmatpush1.msra.mxu0 0.0
    %934 = vmatprep.subr.mxu0 0.0
    %935 = vmatpush1.msra.mxu0 0.0
    %936 = vmatprep.subr.mxu0 0.0
    %937 = vmatpush1.msra.mxu0 0.0
    %938 = vmatprep.subr.mxu0 0.0
    %939 = vmatpush1.msra.mxu0 0.0
    %940 = vmatprep.subr.mxu0 0.0
    %941 = vmatpush1.msra.mxu0 0.0
    %942 = vmatprep.subr.mxu0 0.0
    %943 = vmatpush1.msra.mxu0 0.0
    %944 = vmatprep.subr.mxu0 0.0
    %945 = vmatpush1.msra.mxu0 0.0
    %946 = vmatprep.subr.mxu0 0.0
    %947 = vmatpush1.msra.mxu0 0.0
    %948 = vmatprep.subr.mxu0 0.0
    %949 = vmatpush1.msra.mxu0 0.0
    %950 = vmatprep.subr.mxu0 0.0
    %951 = vmatpush1.msra.mxu0 0.0
    %952 = vmatprep.subr.mxu0 0.0
    %953 = vmatpush1.msra.mxu0 0.0
    %954 = vmatprep.subr.mxu0 0.0
    %955 = vmatpush1.msra.mxu0 0.0
    %956 = vmatprep.subr.mxu0 0.0
    %957 = vmatpush1.msra.mxu0 0.0
    %958 = vmatprep.subr.mxu0 0.0
    %959 = vmatpush1.msra.mxu0 0.0
    %960 = vmatprep.subr.mxu0 0.0
    %961 = vmatpush1.msra.mxu0 0.0
    %962 = vmatprep.subr.mxu0 0.0
    %963 = vmatpush1.msra.mxu0 0.0
    %964 = vmatprep.subr.mxu0 0.0
    %965 = vmatpush1.msra.mxu0 0.0
    %966 = vmatprep.subr.mxu0 0.0
    %967 = vmatpush1.msra.mxu0 0.0
    %968 = vmatprep.subr.mxu0 0.0
    %969 = vmatpush1.msra.mxu0 0.0
    %970 = vmatprep.subr.mxu0 0.0
    %971 = vmatpush1.msra.mxu0 0.0
    %972 = vmatprep.subr.mxu0 0.0
    %973 = vmatpush1.msra.mxu0 0.0
    %974 = vmatprep.subr.mxu0 0.0
    %975 = vmatpush1.msra.mxu0 0.0
    %976 = vmatprep.subr.mxu0 0.0
    %977 = vmatpush1.msra.mxu0 0.0
    %978 = vmatprep.subr.mxu0 0.0
    %979 = vmatpush1.msra.mxu0 0.0
    %980 = vmatprep.subr.mxu0 0.0
    %981 = vmatpush1.msra.mxu0 0.0
    %982 = vmatprep.subr.mxu0 0.0
    %983 = vmatpush1.msra.mxu0 0.0
    %984 = vmatprep.subr.mxu0 0.0
    %985 = vmatpush1.msra.mxu0 0.0
    %986 = vmatprep.mubr.f32.mxu0 0.0
    %987 = vmatmul.mubr.f32.gmra.mrb[0].mxu0 %v920
    %v988 = vpop.f32.mrb[0].mxu0
    %v989 = vadd.f32 %v918, %v988
    %v990 = vpop.f32.mrb[0].mxu0
    %991 = vdwg.mxu0
    %v992 = vadd.f32 %v903, %v989
    %v993 = vxor.u32 %v992, 2147483648
    %v994 = vmul.f32 %v993, 1.442695
    %v995 = vpow.pop %v994
    %v996 = vadd.f32 %v995, 1.0
    %v997 = vrcp.pop %v996
    %v998 = vmul.f32 1.0, %v997
    %1000 = vrot.lane.b32.xlu0 %v989, 96
    %v1001 = vpop.permute.xlu0 %1000
    %v1003 = vmul.f32 %v998, %v1001
    %1005 = vrot.lane.b32.xlu0 %v1003, 32
    %v1006 = vpop.permute.xlu0 %1005
    %v1008 = vadd.f32 %v903, %v1006
    %v1009 = vtanh.pop %v1008
    %v1010 = vsub.f32 1.0, %v998
    %1012 = vrot.lane.b32.xlu0 %v1009, 112
    %v1013 = vpop.permute.xlu0 %1012
    %v1015 = vmul.f32 %v1010, %v1013
    %v1016 = vmul.f32 %v998, 0.0
    %v1017 = vadd.f32 %v1015, %v1016
    %v1018 = vrot.slane %v989, 2
    %v1020 = vadd.f32 %v908, %v1018
    %v1021 = vxor.u32 %v1020, 2147483648
    %v1022 = vmul.f32 %v1021, 1.442695
    %v1023 = vpow.pop %v1022
    %v1024 = vadd.f32 %v1023, 1.0
    %v1025 = vrcp.pop %v1024
    %v1026 = vmul.f32 1.0, %v1025
    %1027 = vrot.lane.b32.xlu0 %v1018, 96
    %v1028 = vpop.permute.xlu0 %1027
    %v1030 = vmul.f32 %v1026, %v1028
    %1032 = vrot.lane.b32.xlu0 %v1030, 32
    %v1033 = vpop.permute.xlu0 %1032
    %v1035 = vadd.f32 %v908, %v1033
    %v1036 = vtanh.pop %v1035
    %v1037 = vsub.f32 1.0, %v1026
    %1039 = vrot.lane.b32.xlu0 %v1036, 112
    %v1040 = vpop.permute.xlu0 %1039
    %v1042 = vmul.f32 %v1037, %v1040
    %v1043 = vmul.f32 %v1026, 0.0
    %v1044 = vadd.f32 %v1042, %v1043
    %1046 = vrot.lane.b32.xlu0 %v1017, 112
    %v1047 = vpop.permute.xlu0 %1046
    %v1050 = vrot.slane %v1044, 6
    %1051 = vrot.lane.b32.xlu0 %v1050, 80
    %v1052 = vpop.permute.xlu0 %1051
    %vm1054 = vcmask 130048
    %v1055 = vsel %vm1054, %v1047, %v1052
    %v1057 = vsel %vm357, %v1055, 0
    %1059 = vmatprep.subr.mxu0 0.0
    %1060 = vmatpush1.msra.mxu0 %v911
    %1061 = vmatprep.subr.mxu0 0.0
    %1062 = vmatpush1.msra.mxu0 %v912
    %1063 = vmatprep.subr.mxu0 0.0
    %1064 = vmatpush1.msra.mxu0 %v913
    %1065 = vmatprep.subr.mxu0 0.0
    %1066 = vmatpush1.msra.mxu0 %v914
    %1067 = vmatprep.subr.mxu0 0.0
    %1068 = vmatpush1.msra.mxu0 0.0
    %1069 = vmatprep.subr.mxu0 0.0
    %1070 = vmatpush1.msra.mxu0 0.0
    %1071 = vmatprep.subr.mxu0 0.0
    %1072 = vmatpush1.msra.mxu0 0.0
    %1073 = vmatprep.subr.mxu0 0.0
    %1074 = vmatpush1.msra.mxu0 0.0
    %1075 = vmatprep.subr.mxu0 0.0
    %1076 = vmatpush1.msra.mxu0 0.0
    %1077 = vmatprep.subr.mxu0 0.0
    %1078 = vmatpush1.msra.mxu0 0.0
    %1079 = vmatprep.subr.mxu0 0.0
    %1080 = vmatpush1.msra.mxu0 0.0
    %1081 = vmatprep.subr.mxu0 0.0
    %1082 = vmatpush1.msra.mxu0 0.0
    %1083 = vmatprep.subr.mxu0 0.0
    %1084 = vmatpush1.msra.mxu0 0.0
    %1085 = vmatprep.subr.mxu0 0.0
    %1086 = vmatpush1.msra.mxu0 0.0
    %1087 = vmatprep.subr.mxu0 0.0
    %1088 = vmatpush1.msra.mxu0 0.0
    %1089 = vmatprep.subr.mxu0 0.0
    %1090 = vmatpush1.msra.mxu0 0.0
    %1091 = vmatprep.subr.mxu0 0.0
    %1092 = vmatpush1.msra.mxu0 0.0
    %1093 = vmatprep.subr.mxu0 0.0
    %1094 = vmatpush1.msra.mxu0 0.0
    %1095 = vmatprep.subr.mxu0 0.0
    %1096 = vmatpush1.msra.mxu0 0.0
    %1097 = vmatprep.subr.mxu0 0.0
    %1098 = vmatpush1.msra.mxu0 0.0
    %1099 = vmatprep.subr.mxu0 0.0
    %1100 = vmatpush1.msra.mxu0 0.0
    %1101 = vmatprep.subr.mxu0 0.0
    %1102 = vmatpush1.msra.mxu0 0.0
    %1103 = vmatprep.subr.mxu0 0.0
    %1104 = vmatpush1.msra.mxu0 0.0
    %1105 = vmatprep.subr.mxu0 0.0
    %1106 = vmatpush1.msra.mxu0 0.0
    %1107 = vmatprep.subr.mxu0 0.0
    %1108 = vmatpush1.msra.mxu0 0.0
    %1109 = vmatprep.subr.mxu0 0.0
    %1110 = vmatpush1.msra.mxu0 0.0
    %1111 = vmatprep.subr.mxu0 0.0
    %1112 = vmatpush1.msra.mxu0 0.0
    %1113 = vmatprep.subr.mxu0 0.0
    %1114 = vmatpush1.msra.mxu0 0.0
    %1115 = vmatprep.subr.mxu0 0.0
    %1116 = vmatpush1.msra.mxu0 0.0
    %1117 = vmatprep.subr.mxu0 0.0
    %1118 = vmatpush1.msra.mxu0 0.0
    %1119 = vmatprep.subr.mxu0 0.0
    %1120 = vmatpush1.msra.mxu0 0.0
    %1121 = vmatprep.subr.mxu0 0.0
    %1122 = vmatpush1.msra.mxu0 0.0
    %1123 = vmatprep.mubr.f32.mxu0 0.0
    %1124 = vmatmul.mubr.f32.gmra.mrb[0].mxu0 %v1057
    %v1125 = vpop.f32.mrb[0].mxu0
    %v1126 = vadd.f32 %v918, %v1125
    %v1127 = vpop.f32.mrb[0].mxu0
    %1128 = vdwg.mxu0
    %v1130 = vrot.slane %v1126, 6
    %v1132 = vadd.f32 %v903, %v1130
    %v1133 = vxor.u32 %v1132, 2147483648
    %v1134 = vmul.f32 %v1133, 1.442695
    %v1135 = vpow.pop %v1134
    %v1136 = vadd.f32 %v1135, 1.0
    %v1137 = vrcp.pop %v1136
    %v1138 = vmul.f32 1.0, %v1137
    %1139 = vrot.lane.b32.xlu0 %v1130, 96
    %v1140 = vpop.permute.xlu0 %1139
    %v1142 = vmul.f32 %v1138, %v1140
    %1144 = vrot.lane.b32.xlu0 %v1142, 32
    %v1145 = vpop.permute.xlu0 %1144
    %v1147 = vadd.f32 %v903, %v1145
    %v1148 = vtanh.pop %v1147
    %v1149 = vsub.f32 1.0, %v1138
    %1151 = vrot.lane.b32.xlu0 %v1148, 112
    %v1152 = vpop.permute.xlu0 %1151
    %v1154 = vmul.f32 %v1149, %v1152
    %v1155 = vrot.slane %v1055, 6
    %1156 = vrot.lane.b32.xlu0 %v1155, 16
    %v1157 = vpop.permute.xlu0 %1156
    %v1159 = vmul.f32 %v1138, %v1157
    %v1160 = vadd.f32 %v1154, %v1159
    %v1161 = vrot.slane %v1126, 4
    %v1163 = vadd.f32 %v908, %v1161
    %v1164 = vxor.u32 %v1163, 2147483648
    %v1165 = vmul.f32 %v1164, 1.442695
    %v1166 = vpow.pop %v1165
    %v1167 = vadd.f32 %v1166, 1.0
    %v1168 = vrcp.pop %v1167
    %v1169 = vmul.f32 1.0, %v1168
    %1170 = vrot.lane.b32.xlu0 %v1161, 96
    %v1171 = vpop.permute.xlu0 %1170
    %v1173 = vmul.f32 %v1169, %v1171
    %1175 = vrot.lane.b32.xlu0 %v1173, 32
    %v1176 = vpop.permute.xlu0 %1175
    %v1178 = vadd.f32 %v908, %v1176
    %v1179 = vtanh.pop %v1178
    %v1180 = vsub.f32 1.0, %v1169
    %1182 = vrot.lane.b32.xlu0 %v1179, 112
    %v1183 = vpop.permute.xlu0 %1182
    %v1185 = vmul.f32 %v1180, %v1183
    %v1186 = vrot.slane %v1055, 4
    %1187 = vrot.lane.b32.xlu0 %v1186, 48
    %v1188 = vpop.permute.xlu0 %1187
    %v1190 = vmul.f32 %v1169, %v1188
    %v1191 = vadd.f32 %v1185, %v1190
    %1193 = vrot.lane.b32.xlu0 %v1160, 112
    %v1194 = vpop.permute.xlu0 %1193
    %v1197 = vrot.slane %v1191, 2
    %1198 = vrot.lane.b32.xlu0 %v1197, 80
    %v1199 = vpop.permute.xlu0 %1198
    %v1201 = vsel %vm1054, %v1194, %v1199
    %v1203 = vrot.slane %v1201, 2
    %v1204 = vsel %vm357, %v1203, 0
    %1206 = vmatprep.subr.mxu0 0.0
    %1207 = vmatpush1.msra.mxu0 %v911
    %1208 = vmatprep.subr.mxu0 0.0
    %1209 = vmatpush1.msra.mxu0 %v912
    %1210 = vmatprep.subr.mxu0 0.0
    %1211 = vmatpush1.msra.mxu0 %v913
    %1212 = vmatprep.subr.mxu0 0.0
    %1213 = vmatpush1.msra.mxu0 %v914
    %1214 = vmatprep.subr.mxu0 0.0
    %1215 = vmatpush1.msra.mxu0 0.0
    %1216 = vmatprep.subr.mxu0 0.0
    %1217 = vmatpush1.msra.mxu0 0.0
    %1218 = vmatprep.subr.mxu0 0.0
    %1219 = vmatpush1.msra.mxu0 0.0
    %1220 = vmatprep.subr.mxu0 0.0
    %1221 = vmatpush1.msra.mxu0 0.0
    %1222 = vmatprep.subr.mxu0 0.0
    %1223 = vmatpush1.msra.mxu0 0.0
    %1224 = vmatprep.subr.mxu0 0.0
    %1225 = vmatpush1.msra.mxu0 0.0
    %1226 = vmatprep.subr.mxu0 0.0
    %1227 = vmatpush1.msra.mxu0 0.0
    %1228 = vmatprep.subr.mxu0 0.0
    %1229 = vmatpush1.msra.mxu0 0.0
    %1230 = vmatprep.subr.mxu0 0.0
    %1231 = vmatpush1.msra.mxu0 0.0
    %1232 = vmatprep.subr.mxu0 0.0
    %1233 = vmatpush1.msra.mxu0 0.0
    %1234 = vmatprep.subr.mxu0 0.0
    %1235 = vmatpush1.msra.mxu0 0.0
    %1236 = vmatprep.subr.mxu0 0.0
    %1237 = vmatpush1.msra.mxu0 0.0
    %1238 = vmatprep.subr.mxu0 0.0
    %1239 = vmatpush1.msra.mxu0 0.0
    %1240 = vmatprep.subr.mxu0 0.0
    %1241 = vmatpush1.msra.mxu0 0.0
    %1242 = vmatprep.subr.mxu0 0.0
    %1243 = vmatpush1.msra.mxu0 0.0
    %1244 = vmatprep.subr.mxu0 0.0
    %1245 = vmatpush1.msra.mxu0 0.0
    %1246 = vmatprep.subr.mxu0 0.0
    %1247 = vmatpush1.msra.mxu0 0.0
    %1248 = vmatprep.subr.mxu0 0.0
    %1249 = vmatpush1.msra.mxu0 0.0
    %1250 = vmatprep.subr.mxu0 0.0
    %1251 = vmatpush1.msra.mxu0 0.0
    %1252 = vmatprep.subr.mxu0 0.0
    %1253 = vmatpush1.msra.mxu0 0.0
    %1254 = vmatprep.subr.mxu0 0.0
    %1255 = vmatpush1.msra.mxu0 0.0
    %1256 = vmatprep.subr.mxu0 0.0
    %1257 = vmatpush1.msra.mxu0 0.0
    %1258 = vmatprep.subr.mxu0 0.0
    %1259 = vmatpush1.msra.mxu0 0.0
    %1260 = vmatprep.subr.mxu0 0.0
    %1261 = vmatpush1.msra.mxu0 0.0
    %1262 = vmatprep.subr.mxu0 0.0
    %1263 = vmatpush1.msra.mxu0 0.0
    %1264 = vmatprep.subr.mxu0 0.0
    %1265 = vmatpush1.msra.mxu0 0.0
    %1266 = vmatprep.subr.mxu0 0.0
    %1267 = vmatpush1.msra.mxu0 0.0
    %1268 = vmatprep.subr.mxu0 0.0
    %1269 = vmatpush1.msra.mxu0 0.0
    %1270 = vmatprep.mubr.f32.mxu0 0.0
    %1271 = vmatmul.mubr.f32.gmra.mrb[0].mxu0 %v1204
    %v1272 = vpop.f32.mrb[0].mxu0
    %v1273 = vadd.f32 %v918, %v1272
    %v1274 = vpop.f32.mrb[0].mxu0
    %1275 = vdwg.mxu0
    %v1277 = vrot.slane %v1273, 4
    %v1279 = vadd.f32 %v903, %v1277
    %v1280 = vxor.u32 %v1279, 2147483648
    %v1281 = vmul.f32 %v1280, 1.442695
    %v1282 = vpow.pop %v1281
    %v1283 = vadd.f32 %v1282, 1.0
    %v1284 = vrcp.pop %v1283
    %v1285 = vmul.f32 1.0, %v1284
    %1286 = vrot.lane.b32.xlu0 %v1277, 96
    %v1287 = vpop.permute.xlu0 %1286
    %v1289 = vmul.f32 %v1285, %v1287
    %1291 = vrot.lane.b32.xlu0 %v1289, 32
    %v1292 = vpop.permute.xlu0 %1291
    %v1294 = vadd.f32 %v903, %v1292
    %v1295 = vtanh.pop %v1294
    %v1296 = vsub.f32 1.0, %v1285
    %1298 = vrot.lane.b32.xlu0 %v1295, 112
    %v1299 = vpop.permute.xlu0 %1298
    %v1301 = vmul.f32 %v1296, %v1299
    %v1302 = vrot.slane %v1201, 6
    %1303 = vrot.lane.b32.xlu0 %v1302, 16
    %v1304 = vpop.permute.xlu0 %1303
    %v1306 = vmul.f32 %v1285, %v1304
    %v1307 = vadd.f32 %v1301, %v1306
    %v1308 = vrot.slane %v1273, 6
    %v1310 = vadd.f32 %v908, %v1308
    %v1311 = vxor.u32 %v1310, 2147483648
    %v1312 = vmul.f32 %v1311, 1.442695
    %v1313 = vpow.pop %v1312
    %v1314 = vadd.f32 %v1313, 1.0
    %v1315 = vrcp.pop %v1314
    %v1316 = vmul.f32 1.0, %v1315
    %1317 = vrot.lane.b32.xlu0 %v1308, 96
    %v1318 = vpop.permute.xlu0 %1317
    %v1320 = vmul.f32 %v1316, %v1318
    %1322 = vrot.lane.b32.xlu0 %v1320, 32
    %v1323 = vpop.permute.xlu0 %1322
    %v1325 = vadd.f32 %v908, %v1323
    %v1326 = vtanh.pop %v1325
    %v1327 = vsub.f32 1.0, %v1316
    %1329 = vrot.lane.b32.xlu0 %v1326, 112
    %v1330 = vpop.permute.xlu0 %1329
    %v1332 = vmul.f32 %v1327, %v1330
    %1333 = vrot.lane.b32.xlu0 %v1201, 48
    %v1334 = vpop.permute.xlu0 %1333
    %v1336 = vmul.f32 %v1316, %v1334
    %v1337 = vadd.f32 %v1332, %v1336
    %1339 = vrot.lane.b32.xlu0 %v1307, 112
    %v1340 = vpop.permute.xlu0 %1339
    %v1343 = vrot.slane %v1337, 6
    %1344 = vrot.lane.b32.xlu0 %v1343, 80
    %v1345 = vpop.permute.xlu0 %1344
    %v1347 = vsel %vm1054, %v1340, %v1345
    %v1349 = vrot.slane %v1347, 4
    %v1350 = vsel %vm357, %v1349, 0
    %1352 = vmatprep.subr.mxu0 0.0
    %1353 = vmatpush1.msra.mxu0 %v911
    %1354 = vmatprep.subr.mxu0 0.0
    %1355 = vmatpush1.msra.mxu0 %v912
    %1356 = vmatprep.subr.mxu0 0.0
    %1357 = vmatpush1.msra.mxu0 %v913
    %1358 = vmatprep.subr.mxu0 0.0
    %1359 = vmatpush1.msra.mxu0 %v914
    %1360 = vmatprep.subr.mxu0 0.0
    %1361 = vmatpush1.msra.mxu0 0.0
    %1362 = vmatprep.subr.mxu0 0.0
    %1363 = vmatpush1.msra.mxu0 0.0
    %1364 = vmatprep.subr.mxu0 0.0
    %1365 = vmatpush1.msra.mxu0 0.0
    %1366 = vmatprep.subr.mxu0 0.0
    %1367 = vmatpush1.msra.mxu0 0.0
    %1368 = vmatprep.subr.mxu0 0.0
    %1369 = vmatpush1.msra.mxu0 0.0
    %1370 = vmatprep.subr.mxu0 0.0
    %1371 = vmatpush1.msra.mxu0 0.0
    %1372 = vmatprep.subr.mxu0 0.0
    %1373 = vmatpush1.msra.mxu0 0.0
    %1374 = vmatprep.subr.mxu0 0.0
    %1375 = vmatpush1.msra.mxu0 0.0
    %1376 = vmatprep.subr.mxu0 0.0
    %1377 = vmatpush1.msra.mxu0 0.0
    %1378 = vmatprep.subr.mxu0 0.0
    %1379 = vmatpush1.msra.mxu0 0.0
    %1380 = vmatprep.subr.mxu0 0.0
    %1381 = vmatpush1.msra.mxu0 0.0
    %1382 = vmatprep.subr.mxu0 0.0
    %1383 = vmatpush1.msra.mxu0 0.0
    %1384 = vmatprep.subr.mxu0 0.0
    %1385 = vmatpush1.msra.mxu0 0.0
    %1386 = vmatprep.subr.mxu0 0.0
    %1387 = vmatpush1.msra.mxu0 0.0
    %1388 = vmatprep.subr.mxu0 0.0
    %1389 = vmatpush1.msra.mxu0 0.0
    %1390 = vmatprep.subr.mxu0 0.0
    %1391 = vmatpush1.msra.mxu0 0.0
    %1392 = vmatprep.subr.mxu0 0.0
    %1393 = vmatpush1.msra.mxu0 0.0
    %1394 = vmatprep.subr.mxu0 0.0
    %1395 = vmatpush1.msra.mxu0 0.0
    %1396 = vmatprep.subr.mxu0 0.0
    %1397 = vmatpush1.msra.mxu0 0.0
    %1398 = vmatprep.subr.mxu0 0.0
    %1399 = vmatpush1.msra.mxu0 0.0
    %1400 = vmatprep.subr.mxu0 0.0
    %1401 = vmatpush1.msra.mxu0 0.0
    %1402 = vmatprep.subr.mxu0 0.0
    %1403 = vmatpush1.msra.mxu0 0.0
    %1404 = vmatprep.subr.mxu0 0.0
    %1405 = vmatpush1.msra.mxu0 0.0
    %1406 = vmatprep.subr.mxu0 0.0
    %1407 = vmatpush1.msra.mxu0 0.0
    %1408 = vmatprep.subr.mxu0 0.0
    %1409 = vmatpush1.msra.mxu0 0.0
    %1410 = vmatprep.subr.mxu0 0.0
    %1411 = vmatpush1.msra.mxu0 0.0
    %1412 = vmatprep.subr.mxu0 0.0
    %1413 = vmatpush1.msra.mxu0 0.0
    %1414 = vmatprep.subr.mxu0 0.0
    %1415 = vmatpush1.msra.mxu0 0.0
    %1416 = vmatprep.mubr.f32.mxu0 0.0
    %1417 = vmatmul.mubr.f32.gmra.mrb[0].mxu0 %v1350
    %v1418 = vpop.f32.mrb[0].mxu0
    %v1419 = vadd.f32 %v918, %v1418
    %v1420 = vpop.f32.mrb[0].mxu0
    %1421 = vdwg.mxu0
    %v1423 = vrot.slane %v1419, 2
    %v1425 = vadd.f32 %v903, %v1423
    %v1426 = vxor.u32 %v1425, 2147483648
    %v1427 = vmul.f32 %v1426, 1.442695
    %v1428 = vpow.pop %v1427
    %v1429 = vadd.f32 %v1428, 1.0
    %v1430 = vrcp.pop %v1429
    %v1431 = vmul.f32 1.0, %v1430
    %1432 = vrot.lane.b32.xlu0 %v1423, 96
    %v1433 = vpop.permute.xlu0 %1432
    %v1435 = vmul.f32 %v1431, %v1433
    %1437 = vrot.lane.b32.xlu0 %v1435, 32
    %v1438 = vpop.permute.xlu0 %1437
    %v1440 = vadd.f32 %v903, %v1438
    %v1441 = vtanh.pop %v1440
    %v1442 = vsub.f32 1.0, %v1431
    %1444 = vrot.lane.b32.xlu0 %v1441, 112
    %v1445 = vpop.permute.xlu0 %1444
    %v1447 = vmul.f32 %v1442, %v1445
    %v1448 = vrot.slane %v1347, 6
    %1449 = vrot.lane.b32.xlu0 %v1448, 16
    %v1450 = vpop.permute.xlu0 %1449
    %v1452 = vmul.f32 %v1431, %v1450
    %v1453 = vadd.f32 %v1447, %v1452
    %v1454 = vadd.f32 %v908, %v1419
    %v1455 = vxor.u32 %v1454, 2147483648
    %v1456 = vmul.f32 %v1455, 1.442695
    %v1457 = vpow.pop %v1456
    %v1458 = vadd.f32 %v1457, 1.0
    %v1459 = vrcp.pop %v1458
    %v1460 = vmul.f32 1.0, %v1459
    %1461 = vrot.lane.b32.xlu0 %v1419, 96
    %v1462 = vpop.permute.xlu0 %1461
    %v1464 = vmul.f32 %v1460, %v1462
    %1466 = vrot.lane.b32.xlu0 %v1464, 32
    %v1467 = vpop.permute.xlu0 %1466
    %v1469 = vadd.f32 %v908, %v1467
    %v1470 = vtanh.pop %v1469
    %v1471 = vsub.f32 1.0, %v1460
    %1473 = vrot.lane.b32.xlu0 %v1470, 112
    %v1474 = vpop.permute.xlu0 %1473
    %v1476 = vmul.f32 %v1471, %v1474
    %1477 = vrot.lane.b32.xlu0 %v1349, 48
    %v1478 = vpop.permute.xlu0 %1477
    %v1480 = vmul.f32 %v1460, %v1478
    %v1481 = vadd.f32 %v1476, %v1480
    %1483 = vrot.lane.b32.xlu0 %v1453, 112
    %v1484 = vpop.permute.xlu0 %1483
    %v1487 = vrot.slane %v1481, 2
    %1488 = vrot.lane.b32.xlu0 %v1487, 80
    %v1489 = vpop.permute.xlu0 %1488
    %v1491 = vsel %vm1054, %v1484, %v1489
    %v1493 = vrot.slane %v1491, 6
    %v1494 = vsel %vm357, %v1493, 0
    %1496 = vmatprep.subr.mxu0 0.0
    %1497 = vmatpush1.msra.mxu0 %v911
    %1498 = vmatprep.subr.mxu0 0.0
    %1499 = vmatpush1.msra.mxu0 %v912
    %1500 = vmatprep.subr.mxu0 0.0
    %1501 = vmatpush1.msra.mxu0 %v913
    %1502 = vmatprep.subr.mxu0 0.0
    %1503 = vmatpush1.msra.mxu0 %v914
    %1504 = vmatprep.subr.mxu0 0.0
    %1505 = vmatpush1.msra.mxu0 0.0
    %1506 = vmatprep.subr.mxu0 0.0
    %1507 = vmatpush1.msra.mxu0 0.0
    %1508 = vmatprep.subr.mxu0 0.0
    %1509 = vmatpush1.msra.mxu0 0.0
    %1510 = vmatprep.subr.mxu0 0.0
    %1511 = vmatpush1.msra.mxu0 0.0
    %1512 = vmatprep.subr.mxu0 0.0
    %1513 = vmatpush1.msra.mxu0 0.0
    %1514 = vmatprep.subr.mxu0 0.0
    %1515 = vmatpush1.msra.mxu0 0.0
    %1516 = vmatprep.subr.mxu0 0.0
    %1517 = vmatpush1.msra.mxu0 0.0
    %1518 = vmatprep.subr.mxu0 0.0
    %1519 = vmatpush1.msra.mxu0 0.0
    %1520 = vmatprep.subr.mxu0 0.0
    %1521 = vmatpush1.msra.mxu0 0.0
    %1522 = vmatprep.subr.mxu0 0.0
    %1523 = vmatpush1.msra.mxu0 0.0
    %1524 = vmatprep.subr.mxu0 0.0
    %1525 = vmatpush1.msra.mxu0 0.0
    %1526 = vmatprep.subr.mxu0 0.0
    %1527 = vmatpush1.msra.mxu0 0.0
    %1528 = vmatprep.subr.mxu0 0.0
    %1529 = vmatpush1.msra.mxu0 0.0
    %1530 = vmatprep.subr.mxu0 0.0
    %1531 = vmatpush1.msra.mxu0 0.0
    %1532 = vmatprep.subr.mxu0 0.0
    %1533 = vmatpush1.msra.mxu0 0.0
    %1534 = vmatprep.subr.mxu0 0.0
    %1535 = vmatpush1.msra.mxu0 0.0
    %1536 = vmatprep.subr.mxu0 0.0
    %1537 = vmatpush1.msra.mxu0 0.0
    %1538 = vmatprep.subr.mxu0 0.0
    %1539 = vmatpush1.msra.mxu0 0.0
    %1540 = vmatprep.subr.mxu0 0.0
    %1541 = vmatpush1.msra.mxu0 0.0
    %1542 = vmatprep.subr.mxu0 0.0
    %1543 = vmatpush1.msra.mxu0 0.0
    %1544 = vmatprep.subr.mxu0 0.0
    %1545 = vmatpush1.msra.mxu0 0.0
    %1546 = vmatprep.subr.mxu0 0.0
    %1547 = vmatpush1.msra.mxu0 0.0
    %1548 = vmatprep.subr.mxu0 0.0
    %1549 = vmatpush1.msra.mxu0 0.0
    %1550 = vmatprep.subr.mxu0 0.0
    %1551 = vmatpush1.msra.mxu0 0.0
    %1552 = vmatprep.subr.mxu0 0.0
    %1553 = vmatpush1.msra.mxu0 0.0
    %1554 = vmatprep.subr.mxu0 0.0
    %1555 = vmatpush1.msra.mxu0 0.0
    %1556 = vmatprep.subr.mxu0 0.0
    %1557 = vmatpush1.msra.mxu0 0.0
    %1558 = vmatprep.subr.mxu0 0.0
    %1559 = vmatpush1.msra.mxu0 0.0
    %1560 = vmatprep.mubr.f32.mxu0 0.0
    %1561 = vmatmul.mubr.f32.gmra.mrb[0].mxu0 %v1494
    %v1562 = vpop.f32.mrb[0].mxu0
    %v1563 = vadd.f32 %v918, %v1562
    %v1564 = vpop.f32.mrb[0].mxu0
    %1565 = vdwg.mxu0
    %v1566 = vadd.f32 %v908, %v1563
    %v1567 = vxor.u32 %v1566, 2147483648
    %v1568 = vmul.f32 %v1567, 1.442695
    %v1569 = vpow.pop %v1568
    %v1570 = vadd.f32 %v1569, 1.0
    %v1571 = vrcp.pop %v1570
    %v1572 = vmul.f32 1.0, %v1571
    %1574 = vrot.lane.b32.xlu0 %v1563, 96
    %v1575 = vpop.permute.xlu0 %1574
    %v1577 = vmul.f32 %v1572, %v1575
    %1579 = vrot.lane.b32.xlu0 %v1577, 32
    %v1580 = vpop.permute.xlu0 %1579
    %v1582 = vadd.f32 %v908, %v1580
    %v1583 = vtanh.pop %v1582
    %v1584 = vsub.f32 1.0, %v1572
    %1586 = vrot.lane.b32.xlu0 %v1583, 112
    %v1587 = vpop.permute.xlu0 %1586
    %v1589 = vmul.f32 %v1584, %v1587
    %1590 = vrot.lane.b32.xlu0 %v1493, 16
    %v1591 = vpop.permute.xlu0 %1590
    %v1593 = vmul.f32 %v1572, %v1591
    %v1594 = vadd.f32 %v1589, %v1593
    %v1595 = vrot.slane %v1563, 2
    %v1597 = vadd.f32 %v903, %v1595
    %v1598 = vxor.u32 %v1597, 2147483648
    %v1599 = vmul.f32 %v1598, 1.442695
    %v1600 = vpow.pop %v1599
    %v1601 = vadd.f32 %v1600, 1.0
    %v1602 = vrcp.pop %v1601
    %v1603 = vmul.f32 1.0, %v1602
    %1604 = vrot.lane.b32.xlu0 %v1595, 96
    %v1605 = vpop.permute.xlu0 %1604
    %v1607 = vmul.f32 %v1603, %v1605
    %1609 = vrot.lane.b32.xlu0 %v1607, 32
    %v1610 = vpop.permute.xlu0 %1609
    %v1612 = vadd.f32 %v903, %v1610
    %v1613 = vtanh.pop %v1612
    %v1614 = vsub.f32 1.0, %v1603
    %1616 = vrot.lane.b32.xlu0 %v1613, 112
    %v1617 = vpop.permute.xlu0 %1616
    %v1619 = vmul.f32 %v1614, %v1617
    %1620 = vrot.lane.b32.xlu0 %v1491, 48
    %v1621 = vpop.permute.xlu0 %1620
    %v1623 = vmul.f32 %v1603, %v1621
    %v1624 = vadd.f32 %v1619, %v1623
    %1626 = vrot.lane.b32.xlu0 %v1594, 112
    %v1627 = vpop.permute.xlu0 %1626
    %v1630 = vrot.slane %v1624, 6
    %1631 = vrot.lane.b32.xlu0 %v1630, 80
    %v1632 = vpop.permute.xlu0 %1631
    %v1634 = vsel %vm1054, %v1627, %v1632
    %v1636 = vsel %vm357, %v1634, 0
    %1638 = vmatprep.subr.mxu0 0.0
    %1639 = vmatpush1.msra.mxu0 %v911
    %1640 = vmatprep.subr.mxu0 0.0
    %1641 = vmatpush1.msra.mxu0 %v912
    %1642 = vmatprep.subr.mxu0 0.0
    %1643 = vmatpush1.msra.mxu0 %v913
    %1644 = vmatprep.subr.mxu0 0.0
    %1645 = vmatpush1.msra.mxu0 %v914
    %1646 = vmatprep.subr.mxu0 0.0
    %1647 = vmatpush1.msra.mxu0 0.0
    %1648 = vmatprep.subr.mxu0 0.0
    %1649 = vmatpush1.msra.mxu0 0.0
    %1650 = vmatprep.subr.mxu0 0.0
    %1651 = vmatpush1.msra.mxu0 0.0
    %1652 = vmatprep.subr.mxu0 0.0
    %1653 = vmatpush1.msra.mxu0 0.0
    %1654 = vmatprep.subr.mxu0 0.0
    %1655 = vmatpush1.msra.mxu0 0.0
    %1656 = vmatprep.subr.mxu0 0.0
    %1657 = vmatpush1.msra.mxu0 0.0
    %1658 = vmatprep.subr.mxu0 0.0
    %1659 = vmatpush1.msra.mxu0 0.0
    %1660 = vmatprep.subr.mxu0 0.0
    %1661 = vmatpush1.msra.mxu0 0.0
    %1662 = vmatprep.subr.mxu0 0.0
    %1663 = vmatpush1.msra.mxu0 0.0
    %1664 = vmatprep.subr.mxu0 0.0
    %1665 = vmatpush1.msra.mxu0 0.0
    %1666 = vmatprep.subr.mxu0 0.0
    %1667 = vmatpush1.msra.mxu0 0.0
    %1668 = vmatprep.subr.mxu0 0.0
    %1669 = vmatpush1.msra.mxu0 0.0
    %1670 = vmatprep.subr.mxu0 0.0
    %1671 = vmatpush1.msra.mxu0 0.0
    %1672 = vmatprep.subr.mxu0 0.0
    %1673 = vmatpush1.msra.mxu0 0.0
    %1674 = vmatprep.subr.mxu0 0.0
    %1675 = vmatpush1.msra.mxu0 0.0
    %1676 = vmatprep.subr.mxu0 0.0
    %1677 = vmatpush1.msra.mxu0 0.0
    %1678 = vmatprep.subr.mxu0 0.0
    %1679 = vmatpush1.msra.mxu0 0.0
    %1680 = vmatprep.subr.mxu0 0.0
    %1681 = vmatpush1.msra.mxu0 0.0
    %1682 = vmatprep.subr.mxu0 0.0
    %1683 = vmatpush1.msra.mxu0 0.0
    %1684 = vmatprep.subr.mxu0 0.0
    %1685 = vmatpush1.msra.mxu0 0.0
    %1686 = vmatprep.subr.mxu0 0.0
    %1687 = vmatpush1.msra.mxu0 0.0
    %1688 = vmatprep.subr.mxu0 0.0
    %1689 = vmatpush1.msra.mxu0 0.0
    %1690 = vmatprep.subr.mxu0 0.0
    %1691 = vmatpush1.msra.mxu0 0.0
    %1692 = vmatprep.subr.mxu0 0.0
    %1693 = vmatpush1.msra.mxu0 0.0
    %1694 = vmatprep.subr.mxu0 0.0
    %1695 = vmatpush1.msra.mxu0 0.0
    %1696 = vmatprep.subr.mxu0 0.0
    %1697 = vmatpush1.msra.mxu0 0.0
    %1698 = vmatprep.subr.mxu0 0.0
    %1699 = vmatpush1.msra.mxu0 0.0
    %1700 = vmatprep.subr.mxu0 0.0
    %1701 = vmatpush1.msra.mxu0 0.0
    %1702 = vmatprep.mubr.f32.mxu0 0.0
    %1703 = vmatmul.mubr.f32.gmra.mrb[0].mxu0 %v1636
    %v1704 = vpop.f32.mrb[0].mxu0
    %v1705 = vadd.f32 %v918, %v1704
    %v1706 = vpop.f32.mrb[0].mxu0
    %1707 = vdwg.mxu0
    %v1709 = vrot.slane %v1705, 6
    %v1711 = vadd.f32 %v908, %v1709
    %v1712 = vxor.u32 %v1711, 2147483648
    %v1713 = vmul.f32 %v1712, 1.442695
    %v1714 = vpow.pop %v1713
    %v1715 = vadd.f32 %v1714, 1.0
    %v1716 = vrcp.pop %v1715
    %v1717 = vmul.f32 1.0, %v1716
    %1718 = vrot.lane.b32.xlu0 %v1709, 96
    %v1719 = vpop.permute.xlu0 %1718
    %v1721 = vmul.f32 %v1717, %v1719
    %1723 = vrot.lane.b32.xlu0 %v1721, 32
    %v1724 = vpop.permute.xlu0 %1723
    %v1726 = vadd.f32 %v908, %v1724
    %v1727 = vtanh.pop %v1726
    %v1728 = vsub.f32 1.0, %v1717
    %1730 = vrot.lane.b32.xlu0 %v1727, 112
    %v1731 = vpop.permute.xlu0 %1730
    %v1733 = vmul.f32 %v1728, %v1731
    %v1734 = vrot.slane %v1634, 6
    %1735 = vrot.lane.b32.xlu0 %v1734, 16
    %v1736 = vpop.permute.xlu0 %1735
    %v1738 = vmul.f32 %v1717, %v1736
    %v1739 = vadd.f32 %v1733, %v1738
    %v1740 = vrot.slane %v1705, 4
    %v1742 = vadd.f32 %v903, %v1740
    %v1743 = vxor.u32 %v1742, 2147483648
    %v1744 = vmul.f32 %v1743, 1.442695
    %v1745 = vpow.pop %v1744
    %v1746 = vadd.f32 %v1745, 1.0
    %v1747 = vrcp.pop %v1746
    %v1748 = vmul.f32 1.0, %v1747
    %1749 = vrot.lane.b32.xlu0 %v1740, 96
    %v1750 = vpop.permute.xlu0 %1749
    %v1752 = vmul.f32 %v1748, %v1750
    %1754 = vrot.lane.b32.xlu0 %v1752, 32
    %v1755 = vpop.permute.xlu0 %1754
    %v1757 = vadd.f32 %v903, %v1755
    %v1758 = vtanh.pop %v1757
    %v1759 = vsub.f32 1.0, %v1748
    %1761 = vrot.lane.b32.xlu0 %v1758, 112
    %v1762 = vpop.permute.xlu0 %1761
    %v1764 = vmul.f32 %v1759, %v1762
    %v1765 = vrot.slane %v1634, 4
    %1766 = vrot.lane.b32.xlu0 %v1765, 48
    %v1767 = vpop.permute.xlu0 %1766
    %v1769 = vmul.f32 %v1748, %v1767
    %v1770 = vadd.f32 %v1764, %v1769
    %1772 = vrot.lane.b32.xlu0 %v1739, 112
    %v1773 = vpop.permute.xlu0 %1772
    %v1776 = vrot.slane %v1770, 2
    %1777 = vrot.lane.b32.xlu0 %v1776, 80
    %v1778 = vpop.permute.xlu0 %1777
    %v1780 = vsel %vm1054, %v1773, %v1778
    %v1782 = vrot.slane %v1780, 2
    %v1783 = vsel %vm357, %v1782, 0
    %1785 = vmatprep.subr.mxu0 0.0
    %1786 = vmatpush1.msra.mxu0 %v911
    %1787 = vmatprep.subr.mxu0 0.0
    %1788 = vmatpush1.msra.mxu0 %v912
    %1789 = vmatprep.subr.mxu0 0.0
    %1790 = vmatpush1.msra.mxu0 %v913
    %1791 = vmatprep.subr.mxu0 0.0
    %1792 = vmatpush1.msra.mxu0 %v914
    %1793 = vmatprep.subr.mxu0 0.0
    %1794 = vmatpush1.msra.mxu0 0.0
    %1795 = vmatprep.subr.mxu0 0.0
    %1796 = vmatpush1.msra.mxu0 0.0
    %1797 = vmatprep.subr.mxu0 0.0
    %1798 = vmatpush1.msra.mxu0 0.0
    %1799 = vmatprep.subr.mxu0 0.0
    %1800 = vmatpush1.msra.mxu0 0.0
    %1801 = vmatprep.subr.mxu0 0.0
    %1802 = vmatpush1.msra.mxu0 0.0
    %1803 = vmatprep.subr.mxu0 0.0
    %1804 = vmatpush1.msra.mxu0 0.0
    %1805 = vmatprep.subr.mxu0 0.0
    %1806 = vmatpush1.msra.mxu0 0.0
    %1807 = vmatprep.subr.mxu0 0.0
    %1808 = vmatpush1.msra.mxu0 0.0
    %1809 = vmatprep.subr.mxu0 0.0
    %1810 = vmatpush1.msra.mxu0 0.0
    %1811 = vmatprep.subr.mxu0 0.0
    %1812 = vmatpush1.msra.mxu0 0.0
    %1813 = vmatprep.subr.mxu0 0.0
    %1814 = vmatpush1.msra.mxu0 0.0
    %1815 = vmatprep.subr.mxu0 0.0
    %1816 = vmatpush1.msra.mxu0 0.0
    %1817 = vmatprep.subr.mxu0 0.0
    %1818 = vmatpush1.msra.mxu0 0.0
    %1819 = vmatprep.subr.mxu0 0.0
    %1820 = vmatpush1.msra.mxu0 0.0
    %1821 = vmatprep.subr.mxu0 0.0
    %1822 = vmatpush1.msra.mxu0 0.0
    %1823 = vmatprep.subr.mxu0 0.0
    %1824 = vmatpush1.msra.mxu0 0.0
    %1825 = vmatprep.subr.mxu0 0.0
    %1826 = vmatpush1.msra.mxu0 0.0
    %1827 = vmatprep.subr.mxu0 0.0
    %1828 = vmatpush1.msra.mxu0 0.0
    %1829 = vmatprep.subr.mxu0 0.0
    %1830 = vmatpush1.msra.mxu0 0.0
    %1831 = vmatprep.subr.mxu0 0.0
    %1832 = vmatpush1.msra.mxu0 0.0
    %1833 = vmatprep.subr.mxu0 0.0
    %1834 = vmatpush1.msra.mxu0 0.0
    %1835 = vmatprep.subr.mxu0 0.0
    %1836 = vmatpush1.msra.mxu0 0.0
    %1837 = vmatprep.subr.mxu0 0.0
    %1838 = vmatpush1.msra.mxu0 0.0
    %1839 = vmatprep.subr.mxu0 0.0
    %1840 = vmatpush1.msra.mxu0 0.0
    %1841 = vmatprep.subr.mxu0 0.0
    %1842 = vmatpush1.msra.mxu0 0.0
    %1843 = vmatprep.subr.mxu0 0.0
    %1844 = vmatpush1.msra.mxu0 0.0
    %1845 = vmatprep.subr.mxu0 0.0
    %1846 = vmatpush1.msra.mxu0 0.0
    %1847 = vmatprep.subr.mxu0 0.0
    %1848 = vmatpush1.msra.mxu0 0.0
    %1849 = vmatprep.mubr.f32.mxu0 0.0
    %1850 = vmatmul.mubr.f32.gmra.mrb[0].mxu0 %v1783
    %v1851 = vpop.f32.mrb[0].mxu0
    %v1852 = vadd.f32 %v918, %v1851
    %v1853 = vpop.f32.mrb[0].mxu0
    %1854 = vdwg.mxu0
    %v1856 = vrot.slane %v1852, 4
    %v1858 = vadd.f32 %v908, %v1856
    %v1859 = vxor.u32 %v1858, 2147483648
    %v1860 = vmul.f32 %v1859, 1.442695
    %v1861 = vpow.pop %v1860
    %v1862 = vadd.f32 %v1861, 1.0
    %v1863 = vrcp.pop %v1862
    %v1864 = vmul.f32 1.0, %v1863
    %1865 = vrot.lane.b32.xlu0 %v1856, 96
    %v1866 = vpop.permute.xlu0 %1865
    %v1868 = vmul.f32 %v1864, %v1866
    %1870 = vrot.lane.b32.xlu0 %v1868, 32
    %v1871 = vpop.permute.xlu0 %1870
    %v1873 = vadd.f32 %v908, %v1871
    %v1874 = vtanh.pop %v1873
    %v1875 = vsub.f32 1.0, %v1864
    %1877 = vrot.lane.b32.xlu0 %v1874, 112
    %v1878 = vpop.permute.xlu0 %1877
    %v1880 = vmul.f32 %v1875, %v1878
    %v1881 = vrot.slane %v1780, 6
    %1882 = vrot.lane.b32.xlu0 %v1881, 16
    %v1883 = vpop.permute.xlu0 %1882
    %v1885 = vmul.f32 %v1864, %v1883
    %v1886 = vadd.f32 %v1880, %v1885
    %v1887 = vrot.slane %v1852, 6
    %v1889 = vadd.f32 %v903, %v1887
    %v1890 = vxor.u32 %v1889, 2147483648
    %v1891 = vmul.f32 %v1890, 1.442695
    %v1892 = vpow.pop %v1891
    %v1893 = vadd.f32 %v1892, 1.0
    %v1894 = vrcp.pop %v1893
    %v1895 = vmul.f32 1.0, %v1894
    %1896 = vrot.lane.b32.xlu0 %v1887, 96
    %v1897 = vpop.permute.xlu0 %1896
    %v1899 = vmul.f32 %v1895, %v1897
    %1901 = vrot.lane.b32.xlu0 %v1899, 32
    %v1902 = vpop.permute.xlu0 %1901
    %v1904 = vadd.f32 %v903, %v1902
    %v1905 = vtanh.pop %v1904
    %v1906 = vsub.f32 1.0, %v1895
    %1908 = vrot.lane.b32.xlu0 %v1905, 112
    %v1909 = vpop.permute.xlu0 %1908
    %v1911 = vmul.f32 %v1906, %v1909
    %1912 = vrot.lane.b32.xlu0 %v1780, 48
    %v1913 = vpop.permute.xlu0 %1912
    %v1915 = vmul.f32 %v1895, %v1913
    %v1916 = vadd.f32 %v1911, %v1915
    %1918 = vrot.lane.b32.xlu0 %v1886, 112
    %v1919 = vpop.permute.xlu0 %1918
    %v1922 = vrot.slane %v1916, 6
    %1923 = vrot.lane.b32.xlu0 %v1922, 80
    %v1924 = vpop.permute.xlu0 %1923
    %v1926 = vsel %vm1054, %v1919, %v1924
    %v1928 = vrot.slane %v1926, 4
    %v1929 = vsel %vm357, %v1928, 0
    %1931 = vmatprep.subr.mxu0 0.0
    %1932 = vmatpush1.msra.mxu0 %v911
    %1933 = vmatprep.subr.mxu0 0.0
    %1934 = vmatpush1.msra.mxu0 %v912
    %1935 = vmatprep.subr.mxu0 0.0
    %1936 = vmatpush1.msra.mxu0 %v913
    %1937 = vmatprep.subr.mxu0 0.0
    %1938 = vmatpush1.msra.mxu0 %v914
    %1939 = vmatprep.subr.mxu0 0.0
    %1940 = vmatpush1.msra.mxu0 0.0
    %1941 = vmatprep.subr.mxu0 0.0
    %1942 = vmatpush1.msra.mxu0 0.0
    %1943 = vmatprep.subr.mxu0 0.0
    %1944 = vmatpush1.msra.mxu0 0.0
    %1945 = vmatprep.subr.mxu0 0.0
    %1946 = vmatpush1.msra.mxu0 0.0
    %1947 = vmatprep.subr.mxu0 0.0
    %1948 = vmatpush1.msra.mxu0 0.0
    %1949 = vmatprep.subr.mxu0 0.0
    %1950 = vmatpush1.msra.mxu0 0.0
    %1951 = vmatprep.subr.mxu0 0.0
    %1952 = vmatpush1.msra.mxu0 0.0
    %1953 = vmatprep.subr.mxu0 0.0
    %1954 = vmatpush1.msra.mxu0 0.0
    %1955 = vmatprep.subr.mxu0 0.0
    %1956 = vmatpush1.msra.mxu0 0.0
    %1957 = vmatprep.subr.mxu0 0.0
    %1958 = vmatpush1.msra.mxu0 0.0
    %1959 = vmatprep.subr.mxu0 0.0
    %1960 = vmatpush1.msra.mxu0 0.0
    %1961 = vmatprep.subr.mxu0 0.0
    %1962 = vmatpush1.msra.mxu0 0.0
    %1963 = vmatprep.subr.mxu0 0.0
    %1964 = vmatpush1.msra.mxu0 0.0
    %1965 = vmatprep.subr.mxu0 0.0
    %1966 = vmatpush1.msra.mxu0 0.0
    %1967 = vmatprep.subr.mxu0 0.0
    %1968 = vmatpush1.msra.mxu0 0.0
    %1969 = vmatprep.subr.mxu0 0.0
    %1970 = vmatpush1.msra.mxu0 0.0
    %1971 = vmatprep.subr.mxu0 0.0
    %1972 = vmatpush1.msra.mxu0 0.0
    %1973 = vmatprep.subr.mxu0 0.0
    %1974 = vmatpush1.msra.mxu0 0.0
    %1975 = vmatprep.subr.mxu0 0.0
    %1976 = vmatpush1.msra.mxu0 0.0
    %1977 = vmatprep.subr.mxu0 0.0
    %1978 = vmatpush1.msra.mxu0 0.0
    %1979 = vmatprep.subr.mxu0 0.0
    %1980 = vmatpush1.msra.mxu0 0.0
    %1981 = vmatprep.subr.mxu0 0.0
    %1982 = vmatpush1.msra.mxu0 0.0
    %1983 = vmatprep.subr.mxu0 0.0
    %1984 = vmatpush1.msra.mxu0 0.0
    %1985 = vmatprep.subr.mxu0 0.0
    %1986 = vmatpush1.msra.mxu0 0.0
    %1987 = vmatprep.subr.mxu0 0.0
    %1988 = vmatpush1.msra.mxu0 0.0
    %1989 = vmatprep.subr.mxu0 0.0
    %1990 = vmatpush1.msra.mxu0 0.0
    %1991 = vmatprep.subr.mxu0 0.0
    %1992 = vmatpush1.msra.mxu0 0.0
    %1993 = vmatprep.subr.mxu0 0.0
    %1994 = vmatpush1.msra.mxu0 0.0
    %1995 = vmatprep.mubr.f32.mxu0 0.0
    %1996 = vmatmul.mubr.f32.gmra.mrb[0].mxu0 %v1929
    %v1997 = vpop.f32.mrb[0].mxu0
    %v1998 = vadd.f32 %v918, %v1997
    %v1999 = vpop.f32.mrb[0].mxu0
    %2000 = vdwg.mxu0
    %v2002 = vrot.slane %v1998, 2
    %v2004 = vadd.f32 %v908, %v2002
    %v2005 = vxor.u32 %v2004, 2147483648
    %v2006 = vmul.f32 %v2005, 1.442695
    %v2007 = vpow.pop %v2006
    %v2008 = vadd.f32 %v2007, 1.0
    %v2009 = vrcp.pop %v2008
    %v2010 = vmul.f32 1.0, %v2009
    %2011 = vrot.lane.b32.xlu0 %v2002, 96
    %v2012 = vpop.permute.xlu0 %2011
    %v2014 = vmul.f32 %v2010, %v2012
    %2016 = vrot.lane.b32.xlu0 %v2014, 32
    %v2017 = vpop.permute.xlu0 %2016
    %v2019 = vadd.f32 %v908, %v2017
    %v2020 = vtanh.pop %v2019
    %v2021 = vsub.f32 1.0, %v2010
    %2023 = vrot.lane.b32.xlu0 %v2020, 112
    %v2024 = vpop.permute.xlu0 %2023
    %v2026 = vmul.f32 %v2021, %v2024
    %v2027 = vrot.slane %v1926, 6
    %2028 = vrot.lane.b32.xlu0 %v2027, 16
    %v2029 = vpop.permute.xlu0 %2028
    %v2031 = vmul.f32 %v2010, %v2029
    %v2032 = vadd.f32 %v2026, %v2031
    %v2033 = vadd.f32 %v903, %v1998
    %v2034 = vxor.u32 %v2033, 2147483648
    %v2035 = vmul.f32 %v2034, 1.442695
    %v2036 = vpow.pop %v2035
    %v2037 = vadd.f32 %v2036, 1.0
    %v2038 = vrcp.pop %v2037
    %v2039 = vmul.f32 1.0, %v2038
    %2040 = vrot.lane.b32.xlu0 %v1998, 96
    %v2041 = vpop.permute.xlu0 %2040
    %v2043 = vmul.f32 %v2039, %v2041
    %2045 = vrot.lane.b32.xlu0 %v2043, 32
    %v2046 = vpop.permute.xlu0 %2045
    %v2048 = vadd.f32 %v903, %v2046
    %v2049 = vtanh.pop %v2048
    %v2050 = vsub.f32 1.0, %v2039
    %2052 = vrot.lane.b32.xlu0 %v2049, 112
    %v2053 = vpop.permute.xlu0 %2052
    %v2055 = vmul.f32 %v2050, %v2053
    %2056 = vrot.lane.b32.xlu0 %v1928, 48
    %v2057 = vpop.permute.xlu0 %2056
    %v2059 = vmul.f32 %v2039, %v2057
    %v2060 = vadd.f32 %v2055, %v2059
    %2062 = vrot.lane.b32.xlu0 %v2060, 80
    %v2063 = vpop.permute.xlu0 %2062
    %v2065 = vrot.slane %v1160, 2
    %2066 = vrot.lane.b32.xlu0 %v2065, 16
    %v2067 = vpop.permute.xlu0 %2066
    %v2069 = vrot.slane %v1916, 2
    %2070 = vrot.lane.b32.xlu0 %v2069, 112
    %v2071 = vpop.permute.xlu0 %2070
    %v2073 = vrot.slane %v1307, 4
    %2074 = vrot.lane.b32.xlu0 %v2073, 48
    %v2075 = vpop.permute.xlu0 %2074
    %v2077 = vrot.slane %v1770, 4
    %2078 = vrot.lane.b32.xlu0 %v2077, 16
    %v2079 = vpop.permute.xlu0 %2078
    %v2081 = vrot.slane %v1453, 6
    %2082 = vrot.lane.b32.xlu0 %v2081, 80
    %v2083 = vpop.permute.xlu0 %2082
    %2085 = vrot.lane.b32.xlu0 %v1630, 48
    %v2086 = vpop.permute.xlu0 %2085
    %2088 = vrot.lane.b32.xlu0 %v1481, 80
    %v2089 = vpop.permute.xlu0 %2088
    %v2091 = vrot.slane %v1739, 2
    %2092 = vrot.lane.b32.xlu0 %v2091, 16
    %v2093 = vpop.permute.xlu0 %2092
    %v2095 = vrot.slane %v1337, 2
    %2096 = vrot.lane.b32.xlu0 %v2095, 112
    %v2097 = vpop.permute.xlu0 %2096
    %v2099 = vrot.slane %v1886, 4
    %2100 = vrot.lane.b32.xlu0 %v2099, 48
    %v2101 = vpop.permute.xlu0 %2100
    %v2103 = vrot.slane %v1191, 4
    %2104 = vrot.lane.b32.xlu0 %v2103, 16
    %v2105 = vpop.permute.xlu0 %2104
    %v2108 = vrot.slane %v2032, 6
    %2109 = vrot.lane.b32.xlu0 %v2108, 80
    %v2110 = vpop.permute.xlu0 %2109
    %2112 = vrot.lane.b32.xlu0 %v1050, 48
    %v2113 = vpop.permute.xlu0 %2112
    %v2115 = vsel %vm1054, %v1047, %v2063
    %v2116 = vsel %vm357, %v2115, %v2067
    %vm2117 = vcmask 392192
    %v2118 = vsel %vm2117, %v2116, %v2071
    %vm2119 = vcmask 523264
    %v2120 = vsel %vm2119, %v2118, %v2075
    %vm2121 = vcmask 654336
    %v2122 = vsel %vm2121, %v2120, %v2079
    %vm2123 = vcmask 785408
    %v2124 = vsel %vm2123, %v2122, %v2083
    %vm2125 = vcmask 916480
    %v2126 = vsel %vm2125, %v2124, %v2086
    %v2127 = vsel %vm1054, %v1627, %v2089
    %v2128 = vsel %vm357, %v2127, %v2093
    %v2129 = vsel %vm2117, %v2128, %v2097
    %v2130 = vsel %vm2119, %v2129, %v2101
    %v2131 = vsel %vm2121, %v2130, %v2105
    %v2132 = vsel %vm2123, %v2131, %v2110
    %v2133 = vsel %vm2125, %v2132, %v2113
    %v2136 = vcombine.low %v2126, %v2133
    %v2138 = vunpack.c.l.s4 1983009808
    %v2139 = vunpack.c.0.s8 %v2138
    %v2140 = vlaneseq
    %v2141 = vshrl.u32 %v2140, 7
    %v2142 = vsub.s32 %v2139, %v2141
    %v2143 = vrot.slane %v2136, %v2142
    %2145 = vst [vmem:[%s3] sm:$0xf] %v2143
    // Predicated region
    $region18: #{cbhg_forward.1} parent=1 // pred_check
      _
    $region19: #{cbhg_forward.1} parent=1 // pred_check_branch
      %2147 = sbr.rel (0) target = $region21
    $region20: #{cbhg_forward.1} parent=1 // pred_region
      _
    $region21: #{cbhg_forward.1} parent=1 // pred_fallthru
      _
    // Predicated region
    $region22: #{cbhg_forward.1} parent=1 // pred_check
      _
    $region23: #{cbhg_forward.1} parent=1 // pred_check_branch
      %2149 = sbr.rel (0) target = $region25
    $region24: #{cbhg_forward.1} parent=1 // pred_region
      _
    $region25: #{cbhg_forward.1} parent=1 // pred_fallthru
      _
    %2150 = vsyncpa [#allocation3], 1

</llo_original>
